<compile_context>
chip_gen: v7x
topology: tpu7x:2x2x1
jax: 0.10.0
libtpu: 0.0.40
codegen_flags: <defaults>
</compile_context>

<pallas_src>
import functools

import jax
import jax.numpy as jnp
from jax import lax
from jax.experimental import pallas as pl
from jax.experimental.pallas import tpu as pltpu

EPS = 1e-5  # nn.InstanceNorm2d default eps


def _resblocks_kernel(x_ref, w_ref, o_ref, carry_ref, xpad_ref, acc_ref, *,
                      NB, H, W, Cp, num_blocks):
    """One full ResBlock (2x [conv3x3 -> IN(-> ReLU)]) + residual for one batch tile.

    Grid = (batch_tiles ["parallel"], num_blocks ["arbitrary"]).

    x_ref:     (NB, H, W, Cp)       input tile (block index constant over the block axis
                                    -> DMA'd once per batch tile)
    w_ref:     (1, 2, 9, Cp, Cp)    this ResBlock's two conv weights (streamed per step)
    o_ref:     (NB, H, W, Cp)       output tile (written only on the last block step)
    carry_ref: (NB, H, W, Cp) f32   activation carried across ResBlocks (= the residual)
    xpad_ref:  (NB, H+2, W+2, Cp)   zero-halo stage input (compute dtype; MXU operand)
    acc_ref:   (NB, H*W, Cp) f32    conv accumulator / InstanceNorm input
    """
    b = pl.program_id(1)
    M = NB * H * W
    inv_hw = jnp.float32(1.0 / (H * W))

    @pl.when(b == 0)
    def _init():
        # Zero only the 1-pixel halo border (the interior is rewritten every stage),
        # and load this batch tile into the f32 carry.
        zrow = jnp.zeros((NB, 1, W + 2, Cp), xpad_ref.dtype)
        zcol = jnp.zeros((NB, H + 2, 1, Cp), xpad_ref.dtype)
        xpad_ref[:, 0:1, :, :] = zrow
        xpad_ref[:, H + 1:H + 2, :, :] = zrow
        xpad_ref[:, :, 0:1, :] = zcol
        xpad_ref[:, :, W + 1:W + 2, :] = zcol
        carry_ref[...] = x_ref[...].astype(jnp.float32)

    def conv3x3_instancenorm(stage, apply_relu):
        # Stage input must already sit in the halo interior.
        # 3x3 conv as 9 tap-wise K=Cp MXU matmuls accumulated into the f32 VMEM acc
        # (no im2col slab: no 9x full-map gather stores, far less resident VMEM).
        for t in range(9):
            kh, kw = divmod(t, 3)
            tap = xpad_ref[:, kh:kh + H, kw:kw + W, :].reshape(M, Cp)
            part = jnp.dot(tap, w_ref[0, stage, t],
                           preferred_element_type=jnp.float32)
            part = part.reshape(NB, H * W, Cp)
            if t == 0:
                acc_ref[...] = part
            else:
                acc_ref[...] += part
        # InstanceNorm2d (affine=False, biased variance): centered two-pass stats in
        # f32 — matches PyTorch numerics, no cancellation / negative variance.
        a = acc_ref[...]                                    # (NB, H*W, Cp) f32
        mu = jnp.sum(a, axis=1, keepdims=True) * inv_hw     # (NB, 1, Cp)
        xc = a - mu
        var = jnp.sum(xc * xc, axis=1, keepdims=True) * inv_hw
        y = xc * lax.rsqrt(var + EPS)
        if apply_relu:
            y = jnp.maximum(y, 0.0)
        return y.reshape(NB, H, W, Cp)

    # ---- one ResBlock --------------------------------------------------------
    # Stage 1: conv -> IN -> ReLU   (input = carry; carry keeps holding the residual)
    xpad_ref[:, 1:H + 1, 1:W + 1, :] = carry_ref[...].astype(xpad_ref.dtype)
    y = conv3x3_instancenorm(stage=0, apply_relu=True)
    # Stage 2: conv -> IN
    xpad_ref[:, 1:H + 1, 1:W + 1, :] = y.astype(xpad_ref.dtype)
    y = conv3x3_instancenorm(stage=1, apply_relu=False)
    # Residual add; carry_ref still holds this ResBlock's input.
    carry_ref[...] = y + carry_ref[...]

    @pl.when(b == num_blocks - 1)
    def _finalize():
        o_ref[...] = carry_ref[...].astype(o_ref.dtype)


def _round_up(v, m):
    return (v + m - 1) // m * m


def res_blocks(x_nchw, weights, *, compute_dtype=jnp.float32, batch_tile=None):
    """ResBlocks(num_blocks, dim, norm='IN', activation='relu', pad_type='zero') forward.

    x_nchw:  (N, C, H, W)                     PyTorch layout.
    weights: (num_blocks, 2, 3, 3, C, C)      HWIO taps of the two bias-free 3x3 convs.
    compute_dtype: MXU operand dtype (f32 exact; bf16 for full MXU rate / half the
                   operand VMEM on v6e/v7x — IN stats and the carry stay f32).
    """
    N, C, H, W = x_nchw.shape
    num_blocks = int(weights.shape[0])

    # Lane-dense channel padding: C -> multiple of 128 so every VMEM store is an
    # unmasked, full-lane store and the MXU sees K = N = Cp.  Padded channels stay
    # exactly zero through conv / IN / ReLU / residual.
    Cp = C if C % 128 == 0 else _round_up(C, 128)

    x = jnp.transpose(x_nchw, (0, 2, 3, 1))                 # NCHW -> NHWC
    w = weights
    if Cp != C:
        x = jnp.pad(x, ((0, 0), (0, 0), (0, 0), (0, Cp - C)))
        w = jnp.pad(w, ((0, 0), (0, 0), (0, 0), (0, 0), (0, Cp - C), (0, Cp - C)))
    # (kh, kw) flattened tap-major; cast once on the host (no per-dot cast in-kernel).
    w = w.reshape(num_blocks, 2, 9, Cp, Cp).astype(compute_dtype)

    cbytes = jnp.dtype(compute_dtype).itemsize
    xbytes = jnp.dtype(x_nchw.dtype).itemsize

    # Generation-dependent VMEM budgeting (v7x: 64 MiB/TC; v5e/v6e: 128 MiB).
    try:
        vmem_cap = int(getattr(pltpu.get_tpu_info(), "vmem_capacity_bytes",
                               64 * 1024 * 1024))
    except Exception:  # conservative fallback (works everywhere)
        vmem_cap = 64 * 1024 * 1024
    budget = min(vmem_cap // 3, 40 * 1024 * 1024)

    # Per-batch-element working set: x (2 bufs) + out (2 bufs) + carry + acc + halo.
    per_elem = (H * W * Cp * (2 * xbytes + 2 * xbytes + 4 + 4)
                + (H + 2) * (W + 2) * Cp * cbytes)
    if batch_tile is None:
        NB = 1
        for cand in range(N, 0, -1):           # largest divisor of N under budget
            if N % cand == 0 and cand * per_elem <= budget:
                NB = cand
                break
    else:
        NB = batch_tile
    assert N % NB == 0, "batch_tile must divide N"

    vmem_limit = int(min(vmem_cap * 3 // 4, 100 * 1024 * 1024))

    kernel = functools.partial(_resblocks_kernel, NB=NB, H=H, W=W, Cp=Cp,
                               num_blocks=num_blocks)

    out = pl.pallas_call(
        kernel,
        out_shape=jax.ShapeDtypeStruct((N, H, W, Cp), x_nchw.dtype),
        grid_spec=pltpu.PrefetchScalarGridSpec(
            num_scalar_prefetch=0,
            grid=(N // NB, num_blocks),
            in_specs=[
                # x: block index constant over the block axis -> DMA'd once per tile.
                pl.BlockSpec((NB, H, W, Cp), lambda n, b: (n, 0, 0, 0)),
                # Weights: one ResBlock's weights per step, streamed / double-buffered
                # along the "arbitrary" block axis (bounded VMEM, DMA overlaps compute).
                pl.BlockSpec((1, 2, 9, Cp, Cp), lambda n, b: (b, 0, 0, 0, 0)),
            ],
            out_specs=pl.BlockSpec((NB, H, W, Cp), lambda n, b: (n, 0, 0, 0)),
            scratch_shapes=[
                pltpu.VMEM((NB, H, W, Cp), jnp.float32),            # carry / residual
                pltpu.VMEM((NB, H + 2, W + 2, Cp), compute_dtype),  # zero-halo input
                pltpu.VMEM((NB, H * W, Cp), jnp.float32),           # conv acc / IN in
            ]),
        compiler_params=pltpu.CompilerParams(
            dimension_semantics=("parallel", "arbitrary"),
            vmem_limit_bytes=vmem_limit),
    )(x, w)

    if Cp != C:
        out = out[..., :C]
    return jnp.transpose(out, (0, 3, 1, 2))                 # NHWC -> NCHW


# ---------------------------------------------------------------------------
# Pure-JAX reference (two-pass InstanceNorm, matches PyTorch semantics).
# ---------------------------------------------------------------------------
def _ref_res_blocks(x_nchw, weights):
    x = jnp.transpose(x_nchw, (0, 2, 3, 1))  # NHWC

    def conv(xi, w):  # w: (3,3,Cin,Cout) HWIO
        return lax.conv_general_dilated(
            xi, w, window_strides=(1, 1), padding="SAME",
            dimension_numbers=("NHWC", "HWIO", "NHWC"),
        )

    def inorm(y):
        mu = jnp.mean(y, axis=(1, 2), keepdims=True)
        var = jnp.mean((y - mu) ** 2, axis=(1, 2), keepdims=True)
        return (y - mu) * lax.rsqrt(var + EPS)

    for b in range(weights.shape[0]):
        res = x
        y = jnp.maximum(inorm(conv(x, weights[b, 0])), 0.0)
        y = inorm(conv(y, weights[b, 1]))
        x = y + res
    return jnp.transpose(x, (0, 3, 1, 2))


if __name__ == "__main__":
    # Shapes consistent with ResBlocks(num_blocks=2, dim=32) on 8x8 feature maps.
    N, C, H, W = 2, 32, 8, 8
    num_blocks = 2

    key = jax.random.PRNGKey(0)
    kx, kw = jax.random.split(key)
    x = jax.random.normal(kx, (N, C, H, W), dtype=jnp.float32)              # NCHW input
    weights = 0.05 * jax.random.normal(
        kw, (num_blocks, 2, 3, 3, C, C), dtype=jnp.float32)                 # HWIO taps

    out = jax.jit(res_blocks)(x, weights)
    out = jax.block_until_ready(out)

    ref = _ref_res_blocks(x, weights)
    assert out.shape == (N, C, H, W)
    assert jnp.allclose(out, ref, atol=1e-3, rtol=1e-3), "mismatch vs reference"

    print("KERNEL_OK")
</pallas_src>

<mosaic_0001>
module attributes {stable_mosaic.version = 11 : i64} {
  func.func @_resblocks_kernel(%arg0: i32, %arg1: i32, %arg2: memref<2x8x8x128xf32, #tpu.memory_space<vmem>>, %arg3: memref<1x2x9x128x128xf32, #tpu.memory_space<vmem>>, %arg4: memref<2x8x8x128xf32, #tpu.memory_space<vmem>>, %arg5: memref<2x8x8x128xf32, #tpu.memory_space<vmem>>, %arg6: memref<2x10x10x128xf32, #tpu.memory_space<vmem>>, %arg7: memref<2x64x128xf32, #tpu.memory_space<vmem>>) attributes {dimension_semantics = [#tpu.dimension_semantics<parallel>, #tpu.dimension_semantics<arbitrary>], iteration_bounds = array<i64: 1, 2>, scalar_prefetch = 0 : i64, scratch_operands = 3 : i64, tpu.core_type = #tpu.core_type<tc>, window_params = [{transform_indices = @transform_0, window_bounds = array<i64: 2, 8, 8, 128>}, {transform_indices = @transform_1, window_bounds = array<i64: 1, 2, 9, 128, 128>}, {transform_indices = @transform_2, window_bounds = array<i64: 2, 8, 8, 128>}]} {
    %c0_i32 = arith.constant 0 : i32
    %0 = arith.cmpi eq, %arg1, %c0_i32 : i32
    %1 = arith.extui %0 : i1 to i32
    %c0_i32_0 = arith.constant 0 : i32
    %2 = arith.cmpi ne, %1, %c0_i32_0 : i32
    scf.if %2 {
      %cst_311 = arith.constant 0.000000e+00 : f32
      %208 = vector.broadcast %cst_311 : f32 to vector<2x1x10x128xf32>
      %cst_312 = arith.constant 0.000000e+00 : f32
      %209 = vector.broadcast %cst_312 : f32 to vector<2x10x1x128xf32>
      %c0_313 = arith.constant 0 : index
      %c0_314 = arith.constant 0 : index
      %c0_315 = arith.constant 0 : index
      %c0_316 = arith.constant 0 : index
      %210 = vector.load %arg6[%c0_313, %c0_314, %c0_315, %c0_316] : memref<2x10x10x128xf32, #tpu.memory_space<vmem>>, vector<2x1x10x128xf32>
      tpu.vector_store %arg6[%c0_313, %c0_314, %c0_315, %c0_316], %208 {strides = array<i32>} : memref<2x10x10x128xf32, #tpu.memory_space<vmem>>, vector<2x1x10x128xf32>,
      %c0_317 = arith.constant 0 : index
      %c9 = arith.constant 9 : index
      %c0_318 = arith.constant 0 : index
      %c0_319 = arith.constant 0 : index
      %211 = vector.load %arg6[%c0_317, %c9, %c0_318, %c0_319] : memref<2x10x10x128xf32, #tpu.memory_space<vmem>>, vector<2x1x10x128xf32>
      tpu.vector_store %arg6[%c0_317, %c9, %c0_318, %c0_319], %208 {strides = array<i32>} : memref<2x10x10x128xf32, #tpu.memory_space<vmem>>, vector<2x1x10x128xf32>,
      %c0_320 = arith.constant 0 : index
      %c0_321 = arith.constant 0 : index
      %c0_322 = arith.constant 0 : index
      %c0_323 = arith.constant 0 : index
      %212 = vector.load %arg6[%c0_320, %c0_321, %c0_322, %c0_323] : memref<2x10x10x128xf32, #tpu.memory_space<vmem>>, vector<2x10x1x128xf32>
      tpu.vector_store %arg6[%c0_320, %c0_321, %c0_322, %c0_323], %209 {strides = array<i32>} : memref<2x10x10x128xf32, #tpu.memory_space<vmem>>, vector<2x10x1x128xf32>,
      %c0_324 = arith.constant 0 : index
      %c0_325 = arith.constant 0 : index
      %c9_326 = arith.constant 9 : index
      %c0_327 = arith.constant 0 : index
      %213 = vector.load %arg6[%c0_324, %c0_325, %c9_326, %c0_327] : memref<2x10x10x128xf32, #tpu.memory_space<vmem>>, vector<2x10x1x128xf32>
      tpu.vector_store %arg6[%c0_324, %c0_325, %c9_326, %c0_327], %209 {strides = array<i32>} : memref<2x10x10x128xf32, #tpu.memory_space<vmem>>, vector<2x10x1x128xf32>,
      %c0_328 = arith.constant 0 : index
      %c0_329 = arith.constant 0 : index
      %c0_330 = arith.constant 0 : index
      %c0_331 = arith.constant 0 : index
      %214 = vector.load %arg2[%c0_328, %c0_329, %c0_330, %c0_331] : memref<2x8x8x128xf32, #tpu.memory_space<vmem>>, vector<2x8x8x128xf32>
      %c0_332 = arith.constant 0 : index
      %c0_333 = arith.constant 0 : index
      %c0_334 = arith.constant 0 : index
      %c0_335 = arith.constant 0 : index
      %215 = vector.load %arg5[%c0_332, %c0_333, %c0_334, %c0_335] : memref<2x8x8x128xf32, #tpu.memory_space<vmem>>, vector<2x8x8x128xf32>
      tpu.vector_store %arg5[%c0_332, %c0_333, %c0_334, %c0_335], %214 {strides = array<i32>} : memref<2x8x8x128xf32, #tpu.memory_space<vmem>>, vector<2x8x8x128xf32>,
    } else {
    }
    %c0 = arith.constant 0 : index
    %c0_1 = arith.constant 0 : index
    %c0_2 = arith.constant 0 : index
    %c0_3 = arith.constant 0 : index
    %3 = vector.load %arg5[%c0, %c0_1, %c0_2, %c0_3] : memref<2x8x8x128xf32, #tpu.memory_space<vmem>>, vector<2x8x8x128xf32>
    %c0_4 = arith.constant 0 : index
    %c1 = arith.constant 1 : index
    %c1_5 = arith.constant 1 : index
    %c0_6 = arith.constant 0 : index
    %4 = vector.load %arg6[%c0_4, %c1, %c1_5, %c0_6] : memref<2x10x10x128xf32, #tpu.memory_space<vmem>>, vector<2x8x8x128xf32>
    tpu.vector_store %arg6[%c0_4, %c1, %c1_5, %c0_6], %3 {strides = array<i32>} : memref<2x10x10x128xf32, #tpu.memory_space<vmem>>, vector<2x8x8x128xf32>,
    %c0_7 = arith.constant 0 : index
    %c0_8 = arith.constant 0 : index
    %c0_9 = arith.constant 0 : index
    %c0_10 = arith.constant 0 : index
    %5 = vector.load %arg6[%c0_7, %c0_8, %c0_9, %c0_10] : memref<2x10x10x128xf32, #tpu.memory_space<vmem>>, vector<2x8x8x128xf32>
    %6 = vector.shape_cast %5 : vector<2x8x8x128xf32> to vector<128x128xf32>
    %c0_11 = arith.constant 0 : index
    %c0_12 = arith.constant 0 : index
    %c0_13 = arith.constant 0 : index
    %c0_14 = arith.constant 0 : index
    %c0_15 = arith.constant 0 : index
    %7 = vector.load %arg3[%c0_11, %c0_12, %c0_13, %c0_14, %c0_15] : memref<1x2x9x128x128xf32, #tpu.memory_space<vmem>>, vector<1x1x1x128x128xf32>
    %8 = vector.shape_cast %7 : vector<1x1x1x128x128xf32> to vector<128x128xf32>
    %cst = arith.constant dense<0.000000e+00> : vector<128x128xf32>
    %9 = tpu.matmul %6, %8, %cst {dimension_numbers = #tpu.dot_dimension_numbers<[1], [0], [0], [1], [0, 0, 1, 1], [], []>} : vector<128x128xf32>, vector<128x128xf32>, vector<128x128xf32> -> vector<128x128xf32>
    %10 = vector.shape_cast %9 : vector<128x128xf32> to vector<2x64x128xf32>
    %c0_16 = arith.constant 0 : index
    %c0_17 = arith.constant 0 : index
    %c0_18 = arith.constant 0 : index
    %11 = vector.load %arg7[%c0_16, %c0_17, %c0_18] : memref<2x64x128xf32, #tpu.memory_space<vmem>>, vector<2x64x128xf32>
    tpu.vector_store %arg7[%c0_16, %c0_17, %c0_18], %10 {strides = array<i32>} : memref<2x64x128xf32, #tpu.memory_space<vmem>>, vector<2x64x128xf32>,
    %c0_19 = arith.constant 0 : index
    %c0_20 = arith.constant 0 : index
    %c1_21 = arith.constant 1 : index
    %c0_22 = arith.constant 0 : index
    %12 = vector.load %arg6[%c0_19, %c0_20, %c1_21, %c0_22] : memref<2x10x10x128xf32, #tpu.memory_space<vmem>>, vector<2x8x8x128xf32>
    %13 = vector.shape_cast %12 : vector<2x8x8x128xf32> to vector<128x128xf32>
    %c0_23 = arith.constant 0 : index
    %c0_24 = arith.constant 0 : index
    %c1_25 = arith.constant 1 : index
    %c0_26 = arith.constant 0 : index
    %c0_27 = arith.constant 0 : index
    %14 = vector.load %arg3[%c0_23, %c0_24, %c1_25, %c0_26, %c0_27] : memref<1x2x9x128x128xf32, #tpu.memory_space<vmem>>, vector<1x1x1x128x128xf32>
    %15 = vector.shape_cast %14 : vector<1x1x1x128x128xf32> to vector<128x128xf32>
    %cst_28 = arith.constant dense<0.000000e+00> : vector<128x128xf32>
    %16 = tpu.matmul %13, %15, %cst_28 {dimension_numbers = #tpu.dot_dimension_numbers<[1], [0], [0], [1], [0, 0, 1, 1], [], []>} : vector<128x128xf32>, vector<128x128xf32>, vector<128x128xf32> -> vector<128x128xf32>
    %17 = vector.shape_cast %16 : vector<128x128xf32> to vector<2x64x128xf32>
    %c0_29 = arith.constant 0 : index
    %c0_30 = arith.constant 0 : index
    %c0_31 = arith.constant 0 : index
    %18 = vector.load %arg7[%c0_29, %c0_30, %c0_31] : memref<2x64x128xf32, #tpu.memory_space<vmem>>, vector<2x64x128xf32>
    %19 = arith.addf %18, %17 : vector<2x64x128xf32>
    %c0_32 = arith.constant 0 : index
    %c0_33 = arith.constant 0 : index
    %c0_34 = arith.constant 0 : index
    %20 = vector.load %arg7[%c0_32, %c0_33, %c0_34] : memref<2x64x128xf32, #tpu.memory_space<vmem>>, vector<2x64x128xf32>
    tpu.vector_store %arg7[%c0_32, %c0_33, %c0_34], %19 {strides = array<i32>} : memref<2x64x128xf32, #tpu.memory_space<vmem>>, vector<2x64x128xf32>,
    %c0_35 = arith.constant 0 : index
    %c0_36 = arith.constant 0 : index
    %c2 = arith.constant 2 : index
    %c0_37 = arith.constant 0 : index
    %21 = vector.load %arg6[%c0_35, %c0_36, %c2, %c0_37] : memref<2x10x10x128xf32, #tpu.memory_space<vmem>>, vector<2x8x8x128xf32>
    %22 = vector.shape_cast %21 : vector<2x8x8x128xf32> to vector<128x128xf32>
    %c0_38 = arith.constant 0 : index
    %c0_39 = arith.constant 0 : index
    %c2_40 = arith.constant 2 : index
    %c0_41 = arith.constant 0 : index
    %c0_42 = arith.constant 0 : index
    %23 = vector.load %arg3[%c0_38, %c0_39, %c2_40, %c0_41, %c0_42] : memref<1x2x9x128x128xf32, #tpu.memory_space<vmem>>, vector<1x1x1x128x128xf32>
    %24 = vector.shape_cast %23 : vector<1x1x1x128x128xf32> to vector<128x128xf32>
    %cst_43 = arith.constant dense<0.000000e+00> : vector<128x128xf32>
    %25 = tpu.matmul %22, %24, %cst_43 {dimension_numbers = #tpu.dot_dimension_numbers<[1], [0], [0], [1], [0, 0, 1, 1], [], []>} : vector<128x128xf32>, vector<128x128xf32>, vector<128x128xf32> -> vector<128x128xf32>
    %26 = vector.shape_cast %25 : vector<128x128xf32> to vector<2x64x128xf32>
    %c0_44 = arith.constant 0 : index
    %c0_45 = arith.constant 0 : index
    %c0_46 = arith.constant 0 : index
    %27 = vector.load %arg7[%c0_44, %c0_45, %c0_46] : memref<2x64x128xf32, #tpu.memory_space<vmem>>, vector<2x64x128xf32>
    %28 = arith.addf %27, %26 : vector<2x64x128xf32>
    %c0_47 = arith.constant 0 : index
    %c0_48 = arith.constant 0 : index
    %c0_49 = arith.constant 0 : index
    %29 = vector.load %arg7[%c0_47, %c0_48, %c0_49] : memref<2x64x128xf32, #tpu.memory_space<vmem>>, vector<2x64x128xf32>
    tpu.vector_store %arg7[%c0_47, %c0_48, %c0_49], %28 {strides = array<i32>} : memref<2x64x128xf32, #tpu.memory_space<vmem>>, vector<2x64x128xf32>,
    %c0_50 = arith.constant 0 : index
    %c1_51 = arith.constant 1 : index
    %c0_52 = arith.constant 0 : index
    %c0_53 = arith.constant 0 : index
    %30 = vector.load %arg6[%c0_50, %c1_51, %c0_52, %c0_53] : memref<2x10x10x128xf32, #tpu.memory_space<vmem>>, vector<2x8x8x128xf32>
    %31 = vector.shape_cast %30 : vector<2x8x8x128xf32> to vector<128x128xf32>
    %c0_54 = arith.constant 0 : index
    %c0_55 = arith.constant 0 : index
    %c3 = arith.constant 3 : index
    %c0_56 = arith.constant 0 : index
    %c0_57 = arith.constant 0 : index
    %32 = vector.load %arg3[%c0_54, %c0_55, %c3, %c0_56, %c0_57] : memref<1x2x9x128x128xf32, #tpu.memory_space<vmem>>, vector<1x1x1x128x128xf32>
    %33 = vector.shape_cast %32 : vector<1x1x1x128x128xf32> to vector<128x128xf32>
    %cst_58 = arith.constant dense<0.000000e+00> : vector<128x128xf32>
    %34 = tpu.matmul %31, %33, %cst_58 {dimension_numbers = #tpu.dot_dimension_numbers<[1], [0], [0], [1], [0, 0, 1, 1], [], []>} : vector<128x128xf32>, vector<128x128xf32>, vector<128x128xf32> -> vector<128x128xf32>
    %35 = vector.shape_cast %34 : vector<128x128xf32> to vector<2x64x128xf32>
    %c0_59 = arith.constant 0 : index
    %c0_60 = arith.constant 0 : index
    %c0_61 = arith.constant 0 : index
    %36 = vector.load %arg7[%c0_59, %c0_60, %c0_61] : memref<2x64x128xf32, #tpu.memory_space<vmem>>, vector<2x64x128xf32>
    %37 = arith.addf %36, %35 : vector<2x64x128xf32>
    %c0_62 = arith.constant 0 : index
    %c0_63 = arith.constant 0 : index
    %c0_64 = arith.constant 0 : index
    %38 = vector.load %arg7[%c0_62, %c0_63, %c0_64] : memref<2x64x128xf32, #tpu.memory_space<vmem>>, vector<2x64x128xf32>
    tpu.vector_store %arg7[%c0_62, %c0_63, %c0_64], %37 {strides = array<i32>} : memref<2x64x128xf32, #tpu.memory_space<vmem>>, vector<2x64x128xf32>,
    %c0_65 = arith.constant 0 : index
    %c1_66 = arith.constant 1 : index
    %c1_67 = arith.constant 1 : index
    %c0_68 = arith.constant 0 : index
    %39 = vector.load %arg6[%c0_65, %c1_66, %c1_67, %c0_68] : memref<2x10x10x128xf32, #tpu.memory_space<vmem>>, vector<2x8x8x128xf32>
    %40 = vector.shape_cast %39 : vector<2x8x8x128xf32> to vector<128x128xf32>
    %c0_69 = arith.constant 0 : index
    %c0_70 = arith.constant 0 : index
    %c4 = arith.constant 4 : index
    %c0_71 = arith.constant 0 : index
    %c0_72 = arith.constant 0 : index
    %41 = vector.load %arg3[%c0_69, %c0_70, %c4, %c0_71, %c0_72] : memref<1x2x9x128x128xf32, #tpu.memory_space<vmem>>, vector<1x1x1x128x128xf32>
    %42 = vector.shape_cast %41 : vector<1x1x1x128x128xf32> to vector<128x128xf32>
    %cst_73 = arith.constant dense<0.000000e+00> : vector<128x128xf32>
    %43 = tpu.matmul %40, %42, %cst_73 {dimension_numbers = #tpu.dot_dimension_numbers<[1], [0], [0], [1], [0, 0, 1, 1], [], []>} : vector<128x128xf32>, vector<128x128xf32>, vector<128x128xf32> -> vector<128x128xf32>
    %44 = vector.shape_cast %43 : vector<128x128xf32> to vector<2x64x128xf32>
    %c0_74 = arith.constant 0 : index
    %c0_75 = arith.constant 0 : index
    %c0_76 = arith.constant 0 : index
    %45 = vector.load %arg7[%c0_74, %c0_75, %c0_76] : memref<2x64x128xf32, #tpu.memory_space<vmem>>, vector<2x64x128xf32>
    %46 = arith.addf %45, %44 : vector<2x64x128xf32>
    %c0_77 = arith.constant 0 : index
    %c0_78 = arith.constant 0 : index
    %c0_79 = arith.constant 0 : index
    %47 = vector.load %arg7[%c0_77, %c0_78, %c0_79] : memref<2x64x128xf32, #tpu.memory_space<vmem>>, vector<2x64x128xf32>
    tpu.vector_store %arg7[%c0_77, %c0_78, %c0_79], %46 {strides = array<i32>} : memref<2x64x128xf32, #tpu.memory_space<vmem>>, vector<2x64x128xf32>,
    %c0_80 = arith.constant 0 : index
    %c1_81 = arith.constant 1 : index
    %c2_82 = arith.constant 2 : index
    %c0_83 = arith.constant 0 : index
    %48 = vector.load %arg6[%c0_80, %c1_81, %c2_82, %c0_83] : memref<2x10x10x128xf32, #tpu.memory_space<vmem>>, vector<2x8x8x128xf32>
    %49 = vector.shape_cast %48 : vector<2x8x8x128xf32> to vector<128x128xf32>
    %c0_84 = arith.constant 0 : index
    %c0_85 = arith.constant 0 : index
    %c5 = arith.constant 5 : index
    %c0_86 = arith.constant 0 : index
    %c0_87 = arith.constant 0 : index
    %50 = vector.load %arg3[%c0_84, %c0_85, %c5, %c0_86, %c0_87] : memref<1x2x9x128x128xf32, #tpu.memory_space<vmem>>, vector<1x1x1x128x128xf32>
    %51 = vector.shape_cast %50 : vector<1x1x1x128x128xf32> to vector<128x128xf32>
    %cst_88 = arith.constant dense<0.000000e+00> : vector<128x128xf32>
    %52 = tpu.matmul %49, %51, %cst_88 {dimension_numbers = #tpu.dot_dimension_numbers<[1], [0], [0], [1], [0, 0, 1, 1], [], []>} : vector<128x128xf32>, vector<128x128xf32>, vector<128x128xf32> -> vector<128x128xf32>
    %53 = vector.shape_cast %52 : vector<128x128xf32> to vector<2x64x128xf32>
    %c0_89 = arith.constant 0 : index
    %c0_90 = arith.constant 0 : index
    %c0_91 = arith.constant 0 : index
    %54 = vector.load %arg7[%c0_89, %c0_90, %c0_91] : memref<2x64x128xf32, #tpu.memory_space<vmem>>, vector<2x64x128xf32>
    %55 = arith.addf %54, %53 : vector<2x64x128xf32>
    %c0_92 = arith.constant 0 : index
    %c0_93 = arith.constant 0 : index
    %c0_94 = arith.constant 0 : index
    %56 = vector.load %arg7[%c0_92, %c0_93, %c0_94] : memref<2x64x128xf32, #tpu.memory_space<vmem>>, vector<2x64x128xf32>
    tpu.vector_store %arg7[%c0_92, %c0_93, %c0_94], %55 {strides = array<i32>} : memref<2x64x128xf32, #tpu.memory_space<vmem>>, vector<2x64x128xf32>,
    %c0_95 = arith.constant 0 : index
    %c2_96 = arith.constant 2 : index
    %c0_97 = arith.constant 0 : index
    %c0_98 = arith.constant 0 : index
    %57 = vector.load %arg6[%c0_95, %c2_96, %c0_97, %c0_98] : memref<2x10x10x128xf32, #tpu.memory_space<vmem>>, vector<2x8x8x128xf32>
    %58 = vector.shape_cast %57 : vector<2x8x8x128xf32> to vector<128x128xf32>
    %c0_99 = arith.constant 0 : index
    %c0_100 = arith.constant 0 : index
    %c6 = arith.constant 6 : index
    %c0_101 = arith.constant 0 : index
    %c0_102 = arith.constant 0 : index
    %59 = vector.load %arg3[%c0_99, %c0_100, %c6, %c0_101, %c0_102] : memref<1x2x9x128x128xf32, #tpu.memory_space<vmem>>, vector<1x1x1x128x128xf32>
    %60 = vector.shape_cast %59 : vector<1x1x1x128x128xf32> to vector<128x128xf32>
    %cst_103 = arith.constant dense<0.000000e+00> : vector<128x128xf32>
    %61 = tpu.matmul %58, %60, %cst_103 {dimension_numbers = #tpu.dot_dimension_numbers<[1], [0], [0], [1], [0, 0, 1, 1], [], []>} : vector<128x128xf32>, vector<128x128xf32>, vector<128x128xf32> -> vector<128x128xf32>
    %62 = vector.shape_cast %61 : vector<128x128xf32> to vector<2x64x128xf32>
    %c0_104 = arith.constant 0 : index
    %c0_105 = arith.constant 0 : index
    %c0_106 = arith.constant 0 : index
    %63 = vector.load %arg7[%c0_104, %c0_105, %c0_106] : memref<2x64x128xf32, #tpu.memory_space<vmem>>, vector<2x64x128xf32>
    %64 = arith.addf %63, %62 : vector<2x64x128xf32>
    %c0_107 = arith.constant 0 : index
    %c0_108 = arith.constant 0 : index
    %c0_109 = arith.constant 0 : index
    %65 = vector.load %arg7[%c0_107, %c0_108, %c0_109] : memref<2x64x128xf32, #tpu.memory_space<vmem>>, vector<2x64x128xf32>
    tpu.vector_store %arg7[%c0_107, %c0_108, %c0_109], %64 {strides = array<i32>} : memref<2x64x128xf32, #tpu.memory_space<vmem>>, vector<2x64x128xf32>,
    %c0_110 = arith.constant 0 : index
    %c2_111 = arith.constant 2 : index
    %c1_112 = arith.constant 1 : index
    %c0_113 = arith.constant 0 : index
    %66 = vector.load %arg6[%c0_110, %c2_111, %c1_112, %c0_113] : memref<2x10x10x128xf32, #tpu.memory_space<vmem>>, vector<2x8x8x128xf32>
    %67 = vector.shape_cast %66 : vector<2x8x8x128xf32> to vector<128x128xf32>
    %c0_114 = arith.constant 0 : index
    %c0_115 = arith.constant 0 : index
    %c7 = arith.constant 7 : index
    %c0_116 = arith.constant 0 : index
    %c0_117 = arith.constant 0 : index
    %68 = vector.load %arg3[%c0_114, %c0_115, %c7, %c0_116, %c0_117] : memref<1x2x9x128x128xf32, #tpu.memory_space<vmem>>, vector<1x1x1x128x128xf32>
    %69 = vector.shape_cast %68 : vector<1x1x1x128x128xf32> to vector<128x128xf32>
    %cst_118 = arith.constant dense<0.000000e+00> : vector<128x128xf32>
    %70 = tpu.matmul %67, %69, %cst_118 {dimension_numbers = #tpu.dot_dimension_numbers<[1], [0], [0], [1], [0, 0, 1, 1], [], []>} : vector<128x128xf32>, vector<128x128xf32>, vector<128x128xf32> -> vector<128x128xf32>
    %71 = vector.shape_cast %70 : vector<128x128xf32> to vector<2x64x128xf32>
    %c0_119 = arith.constant 0 : index
    %c0_120 = arith.constant 0 : index
    %c0_121 = arith.constant 0 : index
    %72 = vector.load %arg7[%c0_119, %c0_120, %c0_121] : memref<2x64x128xf32, #tpu.memory_space<vmem>>, vector<2x64x128xf32>
    %73 = arith.addf %72, %71 : vector<2x64x128xf32>
    %c0_122 = arith.constant 0 : index
    %c0_123 = arith.constant 0 : index
    %c0_124 = arith.constant 0 : index
    %74 = vector.load %arg7[%c0_122, %c0_123, %c0_124] : memref<2x64x128xf32, #tpu.memory_space<vmem>>, vector<2x64x128xf32>
    tpu.vector_store %arg7[%c0_122, %c0_123, %c0_124], %73 {strides = array<i32>} : memref<2x64x128xf32, #tpu.memory_space<vmem>>, vector<2x64x128xf32>,
    %c0_125 = arith.constant 0 : index
    %c2_126 = arith.constant 2 : index
    %c2_127 = arith.constant 2 : index
    %c0_128 = arith.constant 0 : index
    %75 = vector.load %arg6[%c0_125, %c2_126, %c2_127, %c0_128] : memref<2x10x10x128xf32, #tpu.memory_space<vmem>>, vector<2x8x8x128xf32>
    %76 = vector.shape_cast %75 : vector<2x8x8x128xf32> to vector<128x128xf32>
    %c0_129 = arith.constant 0 : index
    %c0_130 = arith.constant 0 : index
    %c8 = arith.constant 8 : index
    %c0_131 = arith.constant 0 : index
    %c0_132 = arith.constant 0 : index
    %77 = vector.load %arg3[%c0_129, %c0_130, %c8, %c0_131, %c0_132] : memref<1x2x9x128x128xf32, #tpu.memory_space<vmem>>, vector<1x1x1x128x128xf32>
    %78 = vector.shape_cast %77 : vector<1x1x1x128x128xf32> to vector<128x128xf32>
    %cst_133 = arith.constant dense<0.000000e+00> : vector<128x128xf32>
    %79 = tpu.matmul %76, %78, %cst_133 {dimension_numbers = #tpu.dot_dimension_numbers<[1], [0], [0], [1], [0, 0, 1, 1], [], []>} : vector<128x128xf32>, vector<128x128xf32>, vector<128x128xf32> -> vector<128x128xf32>
    %80 = vector.shape_cast %79 : vector<128x128xf32> to vector<2x64x128xf32>
    %c0_134 = arith.constant 0 : index
    %c0_135 = arith.constant 0 : index
    %c0_136 = arith.constant 0 : index
    %81 = vector.load %arg7[%c0_134, %c0_135, %c0_136] : memref<2x64x128xf32, #tpu.memory_space<vmem>>, vector<2x64x128xf32>
    %82 = arith.addf %81, %80 : vector<2x64x128xf32>
    %c0_137 = arith.constant 0 : index
    %c0_138 = arith.constant 0 : index
    %c0_139 = arith.constant 0 : index
    %83 = vector.load %arg7[%c0_137, %c0_138, %c0_139] : memref<2x64x128xf32, #tpu.memory_space<vmem>>, vector<2x64x128xf32>
    tpu.vector_store %arg7[%c0_137, %c0_138, %c0_139], %82 {strides = array<i32>} : memref<2x64x128xf32, #tpu.memory_space<vmem>>, vector<2x64x128xf32>,
    %c0_140 = arith.constant 0 : index
    %c0_141 = arith.constant 0 : index
    %c0_142 = arith.constant 0 : index
    %84 = vector.load %arg7[%c0_140, %c0_141, %c0_142] : memref<2x64x128xf32, #tpu.memory_space<vmem>>, vector<2x64x128xf32>
    %cst_143 = arith.constant dense<0.000000e+00> : vector<2x128xf32>
    %85 = vector.multi_reduction <add>, %84, %cst_143 [1] : vector<2x64x128xf32> to vector<2x128xf32>
    %86 = vector.shape_cast %85 : vector<2x128xf32> to vector<2x1x128xf32>
    %cst_144 = arith.constant 1.562500e-02 : f32
    %87 = vector.broadcast %cst_144 : f32 to vector<2x1x128xf32>
    %88 = arith.mulf %86, %87 : vector<2x1x128xf32>
    %89 = vector.broadcast %88 : vector<2x1x128xf32> to vector<2x64x128xf32>
    %90 = arith.subf %84, %89 : vector<2x64x128xf32>
    %91 = arith.mulf %90, %90 : vector<2x64x128xf32>
    %cst_145 = arith.constant dense<0.000000e+00> : vector<2x128xf32>
    %92 = vector.multi_reduction <add>, %91, %cst_145 [1] : vector<2x64x128xf32> to vector<2x128xf32>
    %93 = vector.shape_cast %92 : vector<2x128xf32> to vector<2x1x128xf32>
    %cst_146 = arith.constant 1.562500e-02 : f32
    %94 = vector.broadcast %cst_146 : f32 to vector<2x1x128xf32>
    %95 = arith.mulf %93, %94 : vector<2x1x128xf32>
    %cst_147 = arith.constant 9.99999974E-6 : f32
    %96 = vector.broadcast %cst_147 : f32 to vector<2x1x128xf32>
    %97 = arith.addf %95, %96 : vector<2x1x128xf32>
    %98 = math.rsqrt %97 : vector<2x1x128xf32>
    %99 = vector.broadcast %98 : vector<2x1x128xf32> to vector<2x64x128xf32>
    %100 = arith.mulf %90, %99 : vector<2x64x128xf32>
    %cst_148 = arith.constant 0.000000e+00 : f32
    %101 = vector.broadcast %cst_148 : f32 to vector<2x64x128xf32>
    %102 = arith.maximumf %100, %101 : vector<2x64x128xf32>
    %103 = vector.shape_cast %102 : vector<2x64x128xf32> to vector<2x8x8x128xf32>
    %c0_149 = arith.constant 0 : index
    %c1_150 = arith.constant 1 : index
    %c1_151 = arith.constant 1 : index
    %c0_152 = arith.constant 0 : index
    %104 = vector.load %arg6[%c0_149, %c1_150, %c1_151, %c0_152] : memref<2x10x10x128xf32, #tpu.memory_space<vmem>>, vector<2x8x8x128xf32>
    tpu.vector_store %arg6[%c0_149, %c1_150, %c1_151, %c0_152], %103 {strides = array<i32>} : memref<2x10x10x128xf32, #tpu.memory_space<vmem>>, vector<2x8x8x128xf32>,
    %c0_153 = arith.constant 0 : index
    %c0_154 = arith.constant 0 : index
    %c0_155 = arith.constant 0 : index
    %c0_156 = arith.constant 0 : index
    %105 = vector.load %arg6[%c0_153, %c0_154, %c0_155, %c0_156] : memref<2x10x10x128xf32, #tpu.memory_space<vmem>>, vector<2x8x8x128xf32>
    %106 = vector.shape_cast %105 : vector<2x8x8x128xf32> to vector<128x128xf32>
    %c0_157 = arith.constant 0 : index
    %c1_158 = arith.constant 1 : index
    %c0_159 = arith.constant 0 : index
    %c0_160 = arith.constant 0 : index
    %c0_161 = arith.constant 0 : index
    %107 = vector.load %arg3[%c0_157, %c1_158, %c0_159, %c0_160, %c0_161] : memref<1x2x9x128x128xf32, #tpu.memory_space<vmem>>, vector<1x1x1x128x128xf32>
    %108 = vector.shape_cast %107 : vector<1x1x1x128x128xf32> to vector<128x128xf32>
    %cst_162 = arith.constant dense<0.000000e+00> : vector<128x128xf32>
    %109 = tpu.matmul %106, %108, %cst_162 {dimension_numbers = #tpu.dot_dimension_numbers<[1], [0], [0], [1], [0, 0, 1, 1], [], []>} : vector<128x128xf32>, vector<128x128xf32>, vector<128x128xf32> -> vector<128x128xf32>
    %110 = vector.shape_cast %109 : vector<128x128xf32> to vector<2x64x128xf32>
    %c0_163 = arith.constant 0 : index
    %c0_164 = arith.constant 0 : index
    %c0_165 = arith.constant 0 : index
    %111 = vector.load %arg7[%c0_163, %c0_164, %c0_165] : memref<2x64x128xf32, #tpu.memory_space<vmem>>, vector<2x64x128xf32>
    tpu.vector_store %arg7[%c0_163, %c0_164, %c0_165], %110 {strides = array<i32>} : memref<2x64x128xf32, #tpu.memory_space<vmem>>, vector<2x64x128xf32>,
    %c0_166 = arith.constant 0 : index
    %c0_167 = arith.constant 0 : index
    %c1_168 = arith.constant 1 : index
    %c0_169 = arith.constant 0 : index
    %112 = vector.load %arg6[%c0_166, %c0_167, %c1_168, %c0_169] : memref<2x10x10x128xf32, #tpu.memory_space<vmem>>, vector<2x8x8x128xf32>
    %113 = vector.shape_cast %112 : vector<2x8x8x128xf32> to vector<128x128xf32>
    %c0_170 = arith.constant 0 : index
    %c1_171 = arith.constant 1 : index
    %c1_172 = arith.constant 1 : index
    %c0_173 = arith.constant 0 : index
    %c0_174 = arith.constant 0 : index
    %114 = vector.load %arg3[%c0_170, %c1_171, %c1_172, %c0_173, %c0_174] : memref<1x2x9x128x128xf32, #tpu.memory_space<vmem>>, vector<1x1x1x128x128xf32>
    %115 = vector.shape_cast %114 : vector<1x1x1x128x128xf32> to vector<128x128xf32>
    %cst_175 = arith.constant dense<0.000000e+00> : vector<128x128xf32>
    %116 = tpu.matmul %113, %115, %cst_175 {dimension_numbers = #tpu.dot_dimension_numbers<[1], [0], [0], [1], [0, 0, 1, 1], [], []>} : vector<128x128xf32>, vector<128x128xf32>, vector<128x128xf32> -> vector<128x128xf32>
    %117 = vector.shape_cast %116 : vector<128x128xf32> to vector<2x64x128xf32>
    %c0_176 = arith.constant 0 : index
    %c0_177 = arith.constant 0 : index
    %c0_178 = arith.constant 0 : index
    %118 = vector.load %arg7[%c0_176, %c0_177, %c0_178] : memref<2x64x128xf32, #tpu.memory_space<vmem>>, vector<2x64x128xf32>
    %119 = arith.addf %118, %117 : vector<2x64x128xf32>
    %c0_179 = arith.constant 0 : index
    %c0_180 = arith.constant 0 : index
    %c0_181 = arith.constant 0 : index
    %120 = vector.load %arg7[%c0_179, %c0_180, %c0_181] : memref<2x64x128xf32, #tpu.memory_space<vmem>>, vector<2x64x128xf32>
    tpu.vector_store %arg7[%c0_179, %c0_180, %c0_181], %119 {strides = array<i32>} : memref<2x64x128xf32, #tpu.memory_space<vmem>>, vector<2x64x128xf32>,
    %c0_182 = arith.constant 0 : index
    %c0_183 = arith.constant 0 : index
    %c2_184 = arith.constant 2 : index
    %c0_185 = arith.constant 0 : index
    %121 = vector.load %arg6[%c0_182, %c0_183, %c2_184, %c0_185] : memref<2x10x10x128xf32, #tpu.memory_space<vmem>>, vector<2x8x8x128xf32>
    %122 = vector.shape_cast %121 : vector<2x8x8x128xf32> to vector<128x128xf32>
    %c0_186 = arith.constant 0 : index
    %c1_187 = arith.constant 1 : index
    %c2_188 = arith.constant 2 : index
    %c0_189 = arith.constant 0 : index
    %c0_190 = arith.constant 0 : index
    %123 = vector.load %arg3[%c0_186, %c1_187, %c2_188, %c0_189, %c0_190] : memref<1x2x9x128x128xf32, #tpu.memory_space<vmem>>, vector<1x1x1x128x128xf32>
    %124 = vector.shape_cast %123 : vector<1x1x1x128x128xf32> to vector<128x128xf32>
    %cst_191 = arith.constant dense<0.000000e+00> : vector<128x128xf32>
    %125 = tpu.matmul %122, %124, %cst_191 {dimension_numbers = #tpu.dot_dimension_numbers<[1], [0], [0], [1], [0, 0, 1, 1], [], []>} : vector<128x128xf32>, vector<128x128xf32>, vector<128x128xf32> -> vector<128x128xf32>
    %126 = vector.shape_cast %125 : vector<128x128xf32> to vector<2x64x128xf32>
    %c0_192 = arith.constant 0 : index
    %c0_193 = arith.constant 0 : index
    %c0_194 = arith.constant 0 : index
    %127 = vector.load %arg7[%c0_192, %c0_193, %c0_194] : memref<2x64x128xf32, #tpu.memory_space<vmem>>, vector<2x64x128xf32>
    %128 = arith.addf %127, %126 : vector<2x64x128xf32>
    %c0_195 = arith.constant 0 : index
    %c0_196 = arith.constant 0 : index
    %c0_197 = arith.constant 0 : index
    %129 = vector.load %arg7[%c0_195, %c0_196, %c0_197] : memref<2x64x128xf32, #tpu.memory_space<vmem>>, vector<2x64x128xf32>
    tpu.vector_store %arg7[%c0_195, %c0_196, %c0_197], %128 {strides = array<i32>} : memref<2x64x128xf32, #tpu.memory_space<vmem>>, vector<2x64x128xf32>,
    %c0_198 = arith.constant 0 : index
    %c1_199 = arith.constant 1 : index
    %c0_200 = arith.constant 0 : index
    %c0_201 = arith.constant 0 : index
    %130 = vector.load %arg6[%c0_198, %c1_199, %c0_200, %c0_201] : memref<2x10x10x128xf32, #tpu.memory_space<vmem>>, vector<2x8x8x128xf32>
    %131 = vector.shape_cast %130 : vector<2x8x8x128xf32> to vector<128x128xf32>
    %c0_202 = arith.constant 0 : index
    %c1_203 = arith.constant 1 : index
    %c3_204 = arith.constant 3 : index
    %c0_205 = arith.constant 0 : index
    %c0_206 = arith.constant 0 : index
    %132 = vector.load %arg3[%c0_202, %c1_203, %c3_204, %c0_205, %c0_206] : memref<1x2x9x128x128xf32, #tpu.memory_space<vmem>>, vector<1x1x1x128x128xf32>
    %133 = vector.shape_cast %132 : vector<1x1x1x128x128xf32> to vector<128x128xf32>
    %cst_207 = arith.constant dense<0.000000e+00> : vector<128x128xf32>
    %134 = tpu.matmul %131, %133, %cst_207 {dimension_numbers = #tpu.dot_dimension_numbers<[1], [0], [0], [1], [0, 0, 1, 1], [], []>} : vector<128x128xf32>, vector<128x128xf32>, vector<128x128xf32> -> vector<128x128xf32>
    %135 = vector.shape_cast %134 : vector<128x128xf32> to vector<2x64x128xf32>
    %c0_208 = arith.constant 0 : index
    %c0_209 = arith.constant 0 : index
    %c0_210 = arith.constant 0 : index
    %136 = vector.load %arg7[%c0_208, %c0_209, %c0_210] : memref<2x64x128xf32, #tpu.memory_space<vmem>>, vector<2x64x128xf32>
    %137 = arith.addf %136, %135 : vector<2x64x128xf32>
    %c0_211 = arith.constant 0 : index
    %c0_212 = arith.constant 0 : index
    %c0_213 = arith.constant 0 : index
    %138 = vector.load %arg7[%c0_211, %c0_212, %c0_213] : memref<2x64x128xf32, #tpu.memory_space<vmem>>, vector<2x64x128xf32>
    tpu.vector_store %arg7[%c0_211, %c0_212, %c0_213], %137 {strides = array<i32>} : memref<2x64x128xf32, #tpu.memory_space<vmem>>, vector<2x64x128xf32>,
    %c0_214 = arith.constant 0 : index
    %c1_215 = arith.constant 1 : index
    %c1_216 = arith.constant 1 : index
    %c0_217 = arith.constant 0 : index
    %139 = vector.load %arg6[%c0_214, %c1_215, %c1_216, %c0_217] : memref<2x10x10x128xf32, #tpu.memory_space<vmem>>, vector<2x8x8x128xf32>
    %140 = vector.shape_cast %139 : vector<2x8x8x128xf32> to vector<128x128xf32>
    %c0_218 = arith.constant 0 : index
    %c1_219 = arith.constant 1 : index
    %c4_220 = arith.constant 4 : index
    %c0_221 = arith.constant 0 : index
    %c0_222 = arith.constant 0 : index
    %141 = vector.load %arg3[%c0_218, %c1_219, %c4_220, %c0_221, %c0_222] : memref<1x2x9x128x128xf32, #tpu.memory_space<vmem>>, vector<1x1x1x128x128xf32>
    %142 = vector.shape_cast %141 : vector<1x1x1x128x128xf32> to vector<128x128xf32>
    %cst_223 = arith.constant dense<0.000000e+00> : vector<128x128xf32>
    %143 = tpu.matmul %140, %142, %cst_223 {dimension_numbers = #tpu.dot_dimension_numbers<[1], [0], [0], [1], [0, 0, 1, 1], [], []>} : vector<128x128xf32>, vector<128x128xf32>, vector<128x128xf32> -> vector<128x128xf32>
    %144 = vector.shape_cast %143 : vector<128x128xf32> to vector<2x64x128xf32>
    %c0_224 = arith.constant 0 : index
    %c0_225 = arith.constant 0 : index
    %c0_226 = arith.constant 0 : index
    %145 = vector.load %arg7[%c0_224, %c0_225, %c0_226] : memref<2x64x128xf32, #tpu.memory_space<vmem>>, vector<2x64x128xf32>
    %146 = arith.addf %145, %144 : vector<2x64x128xf32>
    %c0_227 = arith.constant 0 : index
    %c0_228 = arith.constant 0 : index
    %c0_229 = arith.constant 0 : index
    %147 = vector.load %arg7[%c0_227, %c0_228, %c0_229] : memref<2x64x128xf32, #tpu.memory_space<vmem>>, vector<2x64x128xf32>
    tpu.vector_store %arg7[%c0_227, %c0_228, %c0_229], %146 {strides = array<i32>} : memref<2x64x128xf32, #tpu.memory_space<vmem>>, vector<2x64x128xf32>,
    %c0_230 = arith.constant 0 : index
    %c1_231 = arith.constant 1 : index
    %c2_232 = arith.constant 2 : index
    %c0_233 = arith.constant 0 : index
    %148 = vector.load %arg6[%c0_230, %c1_231, %c2_232, %c0_233] : memref<2x10x10x128xf32, #tpu.memory_space<vmem>>, vector<2x8x8x128xf32>
    %149 = vector.shape_cast %148 : vector<2x8x8x128xf32> to vector<128x128xf32>
    %c0_234 = arith.constant 0 : index
    %c1_235 = arith.constant 1 : index
    %c5_236 = arith.constant 5 : index
    %c0_237 = arith.constant 0 : index
    %c0_238 = arith.constant 0 : index
    %150 = vector.load %arg3[%c0_234, %c1_235, %c5_236, %c0_237, %c0_238] : memref<1x2x9x128x128xf32, #tpu.memory_space<vmem>>, vector<1x1x1x128x128xf32>
    %151 = vector.shape_cast %150 : vector<1x1x1x128x128xf32> to vector<128x128xf32>
    %cst_239 = arith.constant dense<0.000000e+00> : vector<128x128xf32>
    %152 = tpu.matmul %149, %151, %cst_239 {dimension_numbers = #tpu.dot_dimension_numbers<[1], [0], [0], [1], [0, 0, 1, 1], [], []>} : vector<128x128xf32>, vector<128x128xf32>, vector<128x128xf32> -> vector<128x128xf32>
    %153 = vector.shape_cast %152 : vector<128x128xf32> to vector<2x64x128xf32>
    %c0_240 = arith.constant 0 : index
    %c0_241 = arith.constant 0 : index
    %c0_242 = arith.constant 0 : index
    %154 = vector.load %arg7[%c0_240, %c0_241, %c0_242] : memref<2x64x128xf32, #tpu.memory_space<vmem>>, vector<2x64x128xf32>
    %155 = arith.addf %154, %153 : vector<2x64x128xf32>
    %c0_243 = arith.constant 0 : index
    %c0_244 = arith.constant 0 : index
    %c0_245 = arith.constant 0 : index
    %156 = vector.load %arg7[%c0_243, %c0_244, %c0_245] : memref<2x64x128xf32, #tpu.memory_space<vmem>>, vector<2x64x128xf32>
    tpu.vector_store %arg7[%c0_243, %c0_244, %c0_245], %155 {strides = array<i32>} : memref<2x64x128xf32, #tpu.memory_space<vmem>>, vector<2x64x128xf32>,
    %c0_246 = arith.constant 0 : index
    %c2_247 = arith.constant 2 : index
    %c0_248 = arith.constant 0 : index
    %c0_249 = arith.constant 0 : index
    %157 = vector.load %arg6[%c0_246, %c2_247, %c0_248, %c0_249] : memref<2x10x10x128xf32, #tpu.memory_space<vmem>>, vector<2x8x8x128xf32>
    %158 = vector.shape_cast %157 : vector<2x8x8x128xf32> to vector<128x128xf32>
    %c0_250 = arith.constant 0 : index
    %c1_251 = arith.constant 1 : index
    %c6_252 = arith.constant 6 : index
    %c0_253 = arith.constant 0 : index
    %c0_254 = arith.constant 0 : index
    %159 = vector.load %arg3[%c0_250, %c1_251, %c6_252, %c0_253, %c0_254] : memref<1x2x9x128x128xf32, #tpu.memory_space<vmem>>, vector<1x1x1x128x128xf32>
    %160 = vector.shape_cast %159 : vector<1x1x1x128x128xf32> to vector<128x128xf32>
    %cst_255 = arith.constant dense<0.000000e+00> : vector<128x128xf32>
    %161 = tpu.matmul %158, %160, %cst_255 {dimension_numbers = #tpu.dot_dimension_numbers<[1], [0], [0], [1], [0, 0, 1, 1], [], []>} : vector<128x128xf32>, vector<128x128xf32>, vector<128x128xf32> -> vector<128x128xf32>
    %162 = vector.shape_cast %161 : vector<128x128xf32> to vector<2x64x128xf32>
    %c0_256 = arith.constant 0 : index
    %c0_257 = arith.constant 0 : index
    %c0_258 = arith.constant 0 : index
    %163 = vector.load %arg7[%c0_256, %c0_257, %c0_258] : memref<2x64x128xf32, #tpu.memory_space<vmem>>, vector<2x64x128xf32>
    %164 = arith.addf %163, %162 : vector<2x64x128xf32>
    %c0_259 = arith.constant 0 : index
    %c0_260 = arith.constant 0 : index
    %c0_261 = arith.constant 0 : index
    %165 = vector.load %arg7[%c0_259, %c0_260, %c0_261] : memref<2x64x128xf32, #tpu.memory_space<vmem>>, vector<2x64x128xf32>
    tpu.vector_store %arg7[%c0_259, %c0_260, %c0_261], %164 {strides = array<i32>} : memref<2x64x128xf32, #tpu.memory_space<vmem>>, vector<2x64x128xf32>,
    %c0_262 = arith.constant 0 : index
    %c2_263 = arith.constant 2 : index
    %c1_264 = arith.constant 1 : index
    %c0_265 = arith.constant 0 : index
    %166 = vector.load %arg6[%c0_262, %c2_263, %c1_264, %c0_265] : memref<2x10x10x128xf32, #tpu.memory_space<vmem>>, vector<2x8x8x128xf32>
    %167 = vector.shape_cast %166 : vector<2x8x8x128xf32> to vector<128x128xf32>
    %c0_266 = arith.constant 0 : index
    %c1_267 = arith.constant 1 : index
    %c7_268 = arith.constant 7 : index
    %c0_269 = arith.constant 0 : index
    %c0_270 = arith.constant 0 : index
    %168 = vector.load %arg3[%c0_266, %c1_267, %c7_268, %c0_269, %c0_270] : memref<1x2x9x128x128xf32, #tpu.memory_space<vmem>>, vector<1x1x1x128x128xf32>
    %169 = vector.shape_cast %168 : vector<1x1x1x128x128xf32> to vector<128x128xf32>
    %cst_271 = arith.constant dense<0.000000e+00> : vector<128x128xf32>
    %170 = tpu.matmul %167, %169, %cst_271 {dimension_numbers = #tpu.dot_dimension_numbers<[1], [0], [0], [1], [0, 0, 1, 1], [], []>} : vector<128x128xf32>, vector<128x128xf32>, vector<128x128xf32> -> vector<128x128xf32>
    %171 = vector.shape_cast %170 : vector<128x128xf32> to vector<2x64x128xf32>
    %c0_272 = arith.constant 0 : index
    %c0_273 = arith.constant 0 : index
    %c0_274 = arith.constant 0 : index
    %172 = vector.load %arg7[%c0_272, %c0_273, %c0_274] : memref<2x64x128xf32, #tpu.memory_space<vmem>>, vector<2x64x128xf32>
    %173 = arith.addf %172, %171 : vector<2x64x128xf32>
    %c0_275 = arith.constant 0 : index
    %c0_276 = arith.constant 0 : index
    %c0_277 = arith.constant 0 : index
    %174 = vector.load %arg7[%c0_275, %c0_276, %c0_277] : memref<2x64x128xf32, #tpu.memory_space<vmem>>, vector<2x64x128xf32>
    tpu.vector_store %arg7[%c0_275, %c0_276, %c0_277], %173 {strides = array<i32>} : memref<2x64x128xf32, #tpu.memory_space<vmem>>, vector<2x64x128xf32>,
    %c0_278 = arith.constant 0 : index
    %c2_279 = arith.constant 2 : index
    %c2_280 = arith.constant 2 : index
    %c0_281 = arith.constant 0 : index
    %175 = vector.load %arg6[%c0_278, %c2_279, %c2_280, %c0_281] : memref<2x10x10x128xf32, #tpu.memory_space<vmem>>, vector<2x8x8x128xf32>
    %176 = vector.shape_cast %175 : vector<2x8x8x128xf32> to vector<128x128xf32>
    %c0_282 = arith.constant 0 : index
    %c1_283 = arith.constant 1 : index
    %c8_284 = arith.constant 8 : index
    %c0_285 = arith.constant 0 : index
    %c0_286 = arith.constant 0 : index
    %177 = vector.load %arg3[%c0_282, %c1_283, %c8_284, %c0_285, %c0_286] : memref<1x2x9x128x128xf32, #tpu.memory_space<vmem>>, vector<1x1x1x128x128xf32>
    %178 = vector.shape_cast %177 : vector<1x1x1x128x128xf32> to vector<128x128xf32>
    %cst_287 = arith.constant dense<0.000000e+00> : vector<128x128xf32>
    %179 = tpu.matmul %176, %178, %cst_287 {dimension_numbers = #tpu.dot_dimension_numbers<[1], [0], [0], [1], [0, 0, 1, 1], [], []>} : vector<128x128xf32>, vector<128x128xf32>, vector<128x128xf32> -> vector<128x128xf32>
    %180 = vector.shape_cast %179 : vector<128x128xf32> to vector<2x64x128xf32>
    %c0_288 = arith.constant 0 : index
    %c0_289 = arith.constant 0 : index
    %c0_290 = arith.constant 0 : index
    %181 = vector.load %arg7[%c0_288, %c0_289, %c0_290] : memref<2x64x128xf32, #tpu.memory_space<vmem>>, vector<2x64x128xf32>
    %182 = arith.addf %181, %180 : vector<2x64x128xf32>
    %c0_291 = arith.constant 0 : index
    %c0_292 = arith.constant 0 : index
    %c0_293 = arith.constant 0 : index
    %183 = vector.load %arg7[%c0_291, %c0_292, %c0_293] : memref<2x64x128xf32, #tpu.memory_space<vmem>>, vector<2x64x128xf32>
    tpu.vector_store %arg7[%c0_291, %c0_292, %c0_293], %182 {strides = array<i32>} : memref<2x64x128xf32, #tpu.memory_space<vmem>>, vector<2x64x128xf32>,
    %c0_294 = arith.constant 0 : index
    %c0_295 = arith.constant 0 : index
    %c0_296 = arith.constant 0 : index
    %184 = vector.load %arg7[%c0_294, %c0_295, %c0_296] : memref<2x64x128xf32, #tpu.memory_space<vmem>>, vector<2x64x128xf32>
    %cst_297 = arith.constant dense<0.000000e+00> : vector<2x128xf32>
    %185 = vector.multi_reduction <add>, %184, %cst_297 [1] : vector<2x64x128xf32> to vector<2x128xf32>
    %186 = vector.shape_cast %185 : vector<2x128xf32> to vector<2x1x128xf32>
    %cst_298 = arith.constant 1.562500e-02 : f32
    %187 = vector.broadcast %cst_298 : f32 to vector<2x1x128xf32>
    %188 = arith.mulf %186, %187 : vector<2x1x128xf32>
    %189 = vector.broadcast %188 : vector<2x1x128xf32> to vector<2x64x128xf32>
    %190 = arith.subf %184, %189 : vector<2x64x128xf32>
    %191 = arith.mulf %190, %190 : vector<2x64x128xf32>
    %cst_299 = arith.constant dense<0.000000e+00> : vector<2x128xf32>
    %192 = vector.multi_reduction <add>, %191, %cst_299 [1] : vector<2x64x128xf32> to vector<2x128xf32>
    %193 = vector.shape_cast %192 : vector<2x128xf32> to vector<2x1x128xf32>
    %cst_300 = arith.constant 1.562500e-02 : f32
    %194 = vector.broadcast %cst_300 : f32 to vector<2x1x128xf32>
    %195 = arith.mulf %193, %194 : vector<2x1x128xf32>
    %cst_301 = arith.constant 9.99999974E-6 : f32
    %196 = vector.broadcast %cst_301 : f32 to vector<2x1x128xf32>
    %197 = arith.addf %195, %196 : vector<2x1x128xf32>
    %198 = math.rsqrt %197 : vector<2x1x128xf32>
    %199 = vector.broadcast %198 : vector<2x1x128xf32> to vector<2x64x128xf32>
    %200 = arith.mulf %190, %199 : vector<2x64x128xf32>
    %201 = vector.shape_cast %200 : vector<2x64x128xf32> to vector<2x8x8x128xf32>
    %c0_302 = arith.constant 0 : index
    %c0_303 = arith.constant 0 : index
    %c0_304 = arith.constant 0 : index
    %c0_305 = arith.constant 0 : index
    %202 = vector.load %arg5[%c0_302, %c0_303, %c0_304, %c0_305] : memref<2x8x8x128xf32, #tpu.memory_space<vmem>>, vector<2x8x8x128xf32>
    %203 = arith.addf %201, %202 : vector<2x8x8x128xf32>
    %c0_306 = arith.constant 0 : index
    %c0_307 = arith.constant 0 : index
    %c0_308 = arith.constant 0 : index
    %c0_309 = arith.constant 0 : index
    %204 = vector.load %arg5[%c0_306, %c0_307, %c0_308, %c0_309] : memref<2x8x8x128xf32, #tpu.memory_space<vmem>>, vector<2x8x8x128xf32>
    tpu.vector_store %arg5[%c0_306, %c0_307, %c0_308, %c0_309], %203 {strides = array<i32>} : memref<2x8x8x128xf32, #tpu.memory_space<vmem>>, vector<2x8x8x128xf32>,
    %c1_i32 = arith.constant 1 : i32
    %205 = arith.cmpi eq, %arg1, %c1_i32 : i32
    %206 = arith.extui %205 : i1 to i32
    %c0_i32_310 = arith.constant 0 : i32
    %207 = arith.cmpi ne, %206, %c0_i32_310 : i32
    scf.if %207 {
      %c0_311 = arith.constant 0 : index
      %c0_312 = arith.constant 0 : index
      %c0_313 = arith.constant 0 : index
      %c0_314 = arith.constant 0 : index
      %208 = vector.load %arg5[%c0_311, %c0_312, %c0_313, %c0_314] : memref<2x8x8x128xf32, #tpu.memory_space<vmem>>, vector<2x8x8x128xf32>
      %c0_315 = arith.constant 0 : index
      %c0_316 = arith.constant 0 : index
      %c0_317 = arith.constant 0 : index
      %c0_318 = arith.constant 0 : index
      %209 = vector.load %arg4[%c0_315, %c0_316, %c0_317, %c0_318] : memref<2x8x8x128xf32, #tpu.memory_space<vmem>>, vector<2x8x8x128xf32>
      tpu.vector_store %arg4[%c0_315, %c0_316, %c0_317, %c0_318], %208 {strides = array<i32>} : memref<2x8x8x128xf32, #tpu.memory_space<vmem>>, vector<2x8x8x128xf32>,
    } else {
    }
    return
  }
  func.func @transform_0(%arg0: i32, %arg1: i32) -> (i32, i32, i32, i32) {
    %c0_i32 = arith.constant 0 : i32
    %c0_i32_0 = arith.constant 0 : i32
    %c0_i32_1 = arith.constant 0 : i32
    %c0_i32_2 = arith.constant 0 : i32
    return %arg0, %c0_i32, %c0_i32_0, %c0_i32_1 : i32, i32, i32, i32
  }
  func.func @transform_1(%arg0: i32, %arg1: i32) -> (i32, i32, i32, i32, i32) {
    %c0_i32 = arith.constant 0 : i32
    %c0_i32_0 = arith.constant 0 : i32
    %c0_i32_1 = arith.constant 0 : i32
    %c0_i32_2 = arith.constant 0 : i32
    %c0_i32_3 = arith.constant 0 : i32
    return %arg1, %c0_i32, %c0_i32_0, %c0_i32_1, %c0_i32_2 : i32, i32, i32, i32, i32
  }
  func.func @transform_2(%arg0: i32, %arg1: i32) -> (i32, i32, i32, i32) {
    %c0_i32 = arith.constant 0 : i32
    %c0_i32_0 = arith.constant 0 : i32
    %c0_i32_1 = arith.constant 0 : i32
    %c0_i32_2 = arith.constant 0 : i32
    return %arg0, %c0_i32, %c0_i32_0, %c0_i32_1 : i32, i32, i32, i32
  }
}

</mosaic_0001>

<llo_original>
// kernel: res_blocks.1
$region0: #{res_blocks.1}
  #allocation0 [shape = 'u32[]', space=smem, size = 0x4, offset = 0x4, fixed_abs, tag = 'smem constant byte address 0x4 - core index']
  #allocation1 [shape = 'u32[144,128]{1,0:T(1,128)}', space=vmem, size = 0x12000, scoped, tag = 'internal scratch']
  #allocation2 [shape = 'f32[2,8,8,128]{3,2,1,0:T(8,128)}', space=vmem, size = 0x10000, scoped, tag = 'scratch operand']
  #allocation3 [shape = 'f32[2,10,10,128]{3,2,1,0:T(8,128)}', space=vmem, size = 0x28000, scoped, tag = 'scratch operand']
  #allocation4 [shape = 'f32[2,64,128]{2,1,0:T(8,128)}', space=vmem, size = 0x10000, scoped, tag = 'scratch operand']
  %s0 = inlined_call_operand.vmem [shape: f32[2,8,8,128], index: 0, kind: input, shape index: {}]
  %s1 = inlined_call_operand.vmem [shape: f32[2,2,9,128,128], index: 1, kind: input, shape index: {}]
  %s2 = inlined_call_operand.vmem [shape: f32[2,8,8,128], index: 2, kind: output, shape index: {}]
  %s3 = sld [smem:[#allocation0]]
  $region49: #{res_blocks.1} parent=0
    _
  %s5 = ssub.s32 1, %s3
  %s6 = scalar_select 0, %s5, %s3
  loop: start=0, step=1, limit=4
  $region2: #{res_blocks.1} parent=0 // loop_pre_header
    _
  $region3: #{res_blocks.1} parent=0 // loop_header
    %s8 = sphi 0, %s12
    %p9 = scmp.ge.s32.totalorder %s8, 4
    %s15 = sphi 0, %s27
    %s16 = sphi 0, %s23
    %s17 = sphi 0, %s15
    %s18 = sphi 0, %s16
    %s19 = sphi 0, %s17
    %s20 = sphi 0, %s18
    %s30 = sphi 0, %s32
    %s33 = sphi 0, %s30
    %s34 = sphi 0, %s33
    %s50 = sphi 0, %s34
    %s56 = sphi 0, %s58
    %s59 = sphi 0, %s56
    %s60 = sphi 0, %s59
    %s76 = sphi 0, %s60
    %s82 = sphi 0, %s84
    %s85 = sphi 0, %s82
    %s86 = sphi 0, %s85
    %s102 = sphi 0, %s86
  $region4: #{res_blocks.1} parent=0 // loop_header_branch
    %11 = sbr.rel (%p9) target = $region8
  $region5: #{res_blocks.1} parent=0 // loop_body
    %s13 = ssub.s32 %s8, 1
    %s14 = ssub.s32 %s8, 2
    %s21 = sadd.s32 1, %s16
    %p22 = scmp.ge.s32.totalorder %s21, 2
    %s23 = scalar_select %p22, 0, %s21
    %s24 = sadd.s32 1, %s15
    %s25 = scalar_select %p22, %s24, %s15
    %p26 = scmp.ge.s32.totalorder %s25, 1
    %s27 = scalar_select %p26, 0, %s25
    %s28 = ssub.s32 %s15, %s27
    %p29 = scmp.eq.s32.totalorder %s28, 0
    %s31 = sadd.s32 %s30, 1
    %s32 = scalar_select %p29, %s30, %s31
    %p35 = pneg %p29
    %p36 = scmp.eq.s32.totalorder %s8, 1
    %p37 = por %p35, %p36
    %p38 = scmp.ne.s32.totalorder %s30, %s33
    %p39 = scmp.eq.s32.totalorder %s8, 0
    %p40 = por %p38, %p39
    %p41 = scmp.ne.s32.totalorder %s30, %s33
    %p42 = scmp.eq.s32.totalorder %s13, 1
    %p43 = por %p41, %p42
    %p44 = scmp.ne.s32.totalorder %s33, %s34
    %p45 = scmp.eq.s32.totalorder %s13, 0
    %p46 = por %p44, %p45
    %p47 = scmp.ne.s32.totalorder %s33, %s34
    %p48 = scmp.eq.s32.totalorder %s14, 1
    %p49 = por %p47, %p48
    %p51 = scmp.ne.s32.totalorder %s34, %s50
    %p52 = scmp.eq.s32.totalorder %s14, 0
    %p53 = por %p51, %p52
    %s54 = ssub.s32 %s16, %s23
    %p55 = scmp.eq.s32.totalorder %s54, 0
    %s57 = sadd.s32 %s56, 1
    %s58 = scalar_select %p55, %s56, %s57
    %p61 = pneg %p55
    %p62 = scmp.eq.s32.totalorder %s8, 1
    %p63 = por %p61, %p62
    %p64 = scmp.ne.s32.totalorder %s56, %s59
    %p65 = scmp.eq.s32.totalorder %s8, 0
    %p66 = por %p64, %p65
    %p67 = scmp.ne.s32.totalorder %s56, %s59
    %p68 = scmp.eq.s32.totalorder %s13, 1
    %p69 = por %p67, %p68
    %p70 = scmp.ne.s32.totalorder %s59, %s60
    %p71 = scmp.eq.s32.totalorder %s13, 0
    %p72 = por %p70, %p71
    %p73 = scmp.ne.s32.totalorder %s59, %s60
    %p74 = scmp.eq.s32.totalorder %s14, 1
    %p75 = por %p73, %p74
    %p77 = scmp.ne.s32.totalorder %s60, %s76
    %p78 = scmp.eq.s32.totalorder %s14, 0
    %p79 = por %p77, %p78
    %s80 = ssub.s32 %s15, %s27
    %p81 = scmp.eq.s32.totalorder %s80, 0
    %s83 = sadd.s32 %s82, 1
    %s84 = scalar_select %p81, %s82, %s83
    %p87 = pneg %p81
    %p88 = scmp.eq.s32.totalorder %s8, 1
    %p89 = por %p87, %p88
    %p90 = scmp.ne.s32.totalorder %s82, %s85
    %p91 = scmp.eq.s32.totalorder %s8, 0
    %p92 = por %p90, %p91
    %p93 = scmp.ne.s32.totalorder %s82, %s85
    %p94 = scmp.eq.s32.totalorder %s13, 1
    %p95 = por %p93, %p94
    %p96 = scmp.ne.s32.totalorder %s85, %s86
    %p97 = scmp.eq.s32.totalorder %s13, 0
    %p98 = por %p96, %p97
    %p99 = scmp.ne.s32.totalorder %s85, %s86
    %p100 = scmp.eq.s32.totalorder %s14, 1
    %p101 = por %p99, %p100
    %p103 = scmp.ne.s32.totalorder %s86, %s102
    %p104 = scmp.eq.s32.totalorder %s14, 0
    %p105 = por %p103, %p104
    %p106 = scmp.le.s32.totalorder 1, %s8
    %p107 = scmp.lt.s32.totalorder %s8, 3
    %p108 = pnand %p106, %p107
    %p109 = pneg %p108
    // Predicated region
    $region9: #{res_blocks.1} parent=5 // pred_check
      _
    $region10: #{res_blocks.1} parent=5 // pred_check_branch
      %111 = sbr.rel (%p108) target = $region12
    $region11: #{res_blocks.1} parent=5 // pred_region
      %s112 = ssub.s32 %s8, 1
      // Predicated region
      $region13: #{res_blocks.1} parent=11 // pred_check
        %p113 = pneg %p46
      $region14: #{res_blocks.1} parent=11 // pred_check_branch
        %115 = sbr.rel (%p113) target = $region16
      $region15: #{res_blocks.1} parent=11 // pred_region
        %s116 = smul.u32 2, %s17
        %p117 = scmp.lt.s32.totalorder %s116, 1
        %s118 = scalar_select %p117, %s116, 1
        %s119 = smul.addr %s118, 8
        %s120 = smul.addr %s119, 8
        %s121 = scalar_lea.vmem %s0, %s120
        %s122 = smul.u32 2, %s17
      $region16: #{res_blocks.1} parent=11 // pred_fallthru
        _
    $region12: #{res_blocks.1} parent=5 // pred_fallthru
      _
    %p123 = scmp.lt.s32.totalorder %s8, 2
    // Predicated region
    $region17: #{res_blocks.1} parent=5 // pred_check
      %p124 = pneg %p123
    $region18: #{res_blocks.1} parent=5 // pred_check_branch
      %126 = sbr.rel (%p124) target = $region20
    $region19: #{res_blocks.1} parent=5 // pred_region
      // Predicated region
      $region21: #{res_blocks.1} parent=19 // pred_check
        %p127 = pneg %p66
      $region22: #{res_blocks.1} parent=19 // pred_check_branch
        %129 = sbr.rel (%p127) target = $region24
      $region23: #{res_blocks.1} parent=19 // pred_region
        %p130 = scmp.lt.s32.totalorder %s16, 1
        %s131 = scalar_select %p130, %s16, 1
        %s132 = smul.addr %s131, 288
        %s133 = smul.addr %s132, 8
        %s134 = scalar_lea.vmem %s1, %s133
      $region24: #{res_blocks.1} parent=19 // pred_fallthru
        _
    $region20: #{res_blocks.1} parent=5 // pred_fallthru
      _
    %p135 = scmp.le.s32.totalorder 1, %s8
    %p136 = scmp.lt.s32.totalorder %s8, 3
    %p137 = pnand %p135, %p136
    %p138 = pneg %p137
    // Predicated region
    $region25: #{res_blocks.1} parent=5 // pred_check
      _
    $region26: #{res_blocks.1} parent=5 // pred_check_branch
      %140 = sbr.rel (%p137) target = $region28
    $region27: #{res_blocks.1} parent=5 // pred_region
      %s141 = ssub.s32 %s8, 1
      %s142 = smul.u32 2, %s17
      %p143 = scmp.lt.s32.totalorder %s142, 1
      %s144 = scalar_select %p143, %s142, 1
      %s145 = smul.addr %s144, 8
      %s146 = smul.addr %s145, 8
      %s147 = scalar_lea.vmem %s0, %s146
      %p148 = pneg %p46
      %p149 = pneg %p43
      %p150 = scmp.lt.s32.totalorder %s18, 1
      %s151 = scalar_select %p150, %s18, 1
      %s152 = smul.addr %s151, 288
      %s153 = smul.addr %s152, 8
      %s154 = scalar_lea.vmem %s1, %s153
      %p155 = pneg %p72
      %p156 = pneg %p69
      %p157 = pneg %p98
      %p158 = pneg %p95
      %s159 = smul.u32 2, %s17
      %p160 = scmp.lt.s32.totalorder %s159, 1
      %s161 = scalar_select %p160, %s159, 1
      %s162 = smul.addr %s161, 8
      %s163 = smul.addr %s162, 8
      %s164 = scalar_lea.vmem %s2, %s163
      %s165 = smul.u32 2, %s17
      %p166 = scmp.lt.s32.totalorder %s165, 1
      %s167 = scalar_select %p166, %s165, 1
      %s168 = smul.addr %s167, 8
      %s169 = smul.addr %s168, 8
      %s170 = scalar_lea.vmem %s0, %s169
      %s171 = smul.u32 2, %s17
      %p172 = scmp.lt.s32.totalorder %s18, 1
      %s173 = scalar_select %p172, %s18, 1
      %s174 = smul.addr %s173, 288
      %s175 = smul.addr %s174, 8
      %s176 = scalar_lea.vmem %s1, %s175
      %s177 = smul.u32 2, %s17
      %p178 = scmp.lt.s32.totalorder %s177, 1
      %s179 = scalar_select %p178, %s177, 1
      %s180 = smul.addr %s179, 8
      %s181 = smul.addr %s180, 8
      %s182 = scalar_lea.vmem %s2, %s181
      %s183 = smul.u32 2, %s17
      %p184 = scmp.eq.s32.totalorder %s18, 0
      // Predicated region
      $region29: #{res_blocks.1} parent=27 // pred_check
        %p185 = pneg %p184
      $region30: #{res_blocks.1} parent=27 // pred_check_branch
        %187 = sbr.rel (%p185) target = $region32
      $region31: #{res_blocks.1} parent=27 // pred_region
        %188 = vst [vmem:[#allocation3] sm:$0xff] 0.0
        %189 = vst [vmem:[#allocation3 + $0x8] sm:$0x3] 0.0
        %190 = vst [vmem:[#allocation3 + $0xa0] sm:$0xff] 0.0
        %191 = vst [vmem:[#allocation3 + $0xa8] sm:$0x3] 0.0
        %s192 = scalar_lea.vmem [#allocation3], 144
        %193 = vst [vmem:[%s192] sm:$0xff] 0.0
        %194 = vst [vmem:[%s192 + $0x8] sm:$0x3] 0.0
        %195 = vst [vmem:[%s192 + $0xa0] sm:$0xff] 0.0
        %196 = vst [vmem:[%s192 + $0xa8] sm:$0x3] 0.0
        %197 = vst [vmem:[#allocation3] sm:$0x1] 0.0
        %198 = vst [vmem:[#allocation3 + $0x10] sm:$0x1] 0.0
        %199 = vst [vmem:[#allocation3 + $0x20] sm:$0x1] 0.0
        %200 = vst [vmem:[#allocation3 + $0x30] sm:$0x1] 0.0
        %201 = vst [vmem:[#allocation3 + $0x40] sm:$0x1] 0.0
        %202 = vst [vmem:[#allocation3 + $0x50] sm:$0x1] 0.0
        %203 = vst [vmem:[#allocation3 + $0x60] sm:$0x1] 0.0
        %204 = vst [vmem:[#allocation3 + $0x70] sm:$0x1] 0.0
        %205 = vst [vmem:[#allocation3 + $0x80] sm:$0x1] 0.0
        %206 = vst [vmem:[#allocation3 + $0x90] sm:$0x1] 0.0
        %207 = vst [vmem:[#allocation3 + $0xa0] sm:$0x1] 0.0
        %208 = vst [vmem:[#allocation3 + $0xb0] sm:$0x1] 0.0
        %209 = vst [vmem:[#allocation3 + $0xc0] sm:$0x1] 0.0
        %210 = vst [vmem:[#allocation3 + $0xd0] sm:$0x1] 0.0
        %211 = vst [vmem:[#allocation3 + $0xe0] sm:$0x1] 0.0
        %212 = vst [vmem:[#allocation3 + $0xf0] sm:$0x1] 0.0
        %213 = vst [vmem:[#allocation3 + $0x100] sm:$0x1] 0.0
        %214 = vst [vmem:[#allocation3 + $0x110] sm:$0x1] 0.0
        %215 = vst [vmem:[#allocation3 + $0x120] sm:$0x1] 0.0
        %216 = vst [vmem:[#allocation3 + $0x130] sm:$0x1] 0.0
        %217 = vst [vmem:[#allocation3 + $0x9] sm:$0x1] 0.0
        %218 = vst [vmem:[#allocation3 + $0x19] sm:$0x1] 0.0
        %219 = vst [vmem:[#allocation3 + $0x29] sm:$0x1] 0.0
        %220 = vst [vmem:[#allocation3 + $0x39] sm:$0x1] 0.0
        %221 = vst [vmem:[#allocation3 + $0x49] sm:$0x1] 0.0
        %222 = vst [vmem:[#allocation3 + $0x59] sm:$0x1] 0.0
        %223 = vst [vmem:[#allocation3 + $0x69] sm:$0x1] 0.0
        %224 = vst [vmem:[#allocation3 + $0x79] sm:$0x1] 0.0
        %225 = vst [vmem:[#allocation3 + $0x89] sm:$0x1] 0.0
        %226 = vst [vmem:[#allocation3 + $0x99] sm:$0x1] 0.0
        %227 = vst [vmem:[#allocation3 + $0xa9] sm:$0x1] 0.0
        %228 = vst [vmem:[#allocation3 + $0xb9] sm:$0x1] 0.0
        %229 = vst [vmem:[#allocation3 + $0xc9] sm:$0x1] 0.0
        %230 = vst [vmem:[#allocation3 + $0xd9] sm:$0x1] 0.0
        %231 = vst [vmem:[#allocation3 + $0xe9] sm:$0x1] 0.0
        %232 = vst [vmem:[#allocation3 + $0xf9] sm:$0x1] 0.0
        %233 = vst [vmem:[#allocation3 + $0x109] sm:$0x1] 0.0
        %234 = vst [vmem:[#allocation3 + $0x119] sm:$0x1] 0.0
        %235 = vst [vmem:[#allocation3 + $0x129] sm:$0x1] 0.0
        %236 = vst [vmem:[#allocation3 + $0x139] sm:$0x1] 0.0
        %v237 = vld [vmem:[%s170] sm:$0xff]
        %v238 = vld [vmem:[%s170 + $0x8] sm:$0xff]
        %v239 = vld [vmem:[%s170 + $0x10] sm:$0xff]
        %v240 = vld [vmem:[%s170 + $0x18] sm:$0xff]
        %v241 = vld [vmem:[%s170 + $0x20] sm:$0xff]
        %v242 = vld [vmem:[%s170 + $0x28] sm:$0xff]
        %v243 = vld [vmem:[%s170 + $0x30] sm:$0xff]
        %v244 = vld [vmem:[%s170 + $0x38] sm:$0xff]
        %v245 = vld [vmem:[%s170 + $0x40] sm:$0xff]
        %v246 = vld [vmem:[%s170 + $0x48] sm:$0xff]
        %v247 = vld [vmem:[%s170 + $0x50] sm:$0xff]
        %v248 = vld [vmem:[%s170 + $0x58] sm:$0xff]
        %v249 = vld [vmem:[%s170 + $0x60] sm:$0xff]
        %v250 = vld [vmem:[%s170 + $0x68] sm:$0xff]
        %v251 = vld [vmem:[%s170 + $0x70] sm:$0xff]
        %v252 = vld [vmem:[%s170 + $0x78] sm:$0xff]
        %253 = vst [vmem:[#allocation2] sm:$0xff] %v237
        %254 = vst [vmem:[#allocation2 + $0x8] sm:$0xff] %v238
        %255 = vst [vmem:[#allocation2 + $0x10] sm:$0xff] %v239
        %256 = vst [vmem:[#allocation2 + $0x18] sm:$0xff] %v240
        %257 = vst [vmem:[#allocation2 + $0x20] sm:$0xff] %v241
        %258 = vst [vmem:[#allocation2 + $0x28] sm:$0xff] %v242
        %259 = vst [vmem:[#allocation2 + $0x30] sm:$0xff] %v243
        %260 = vst [vmem:[#allocation2 + $0x38] sm:$0xff] %v244
        %261 = vst [vmem:[#allocation2 + $0x40] sm:$0xff] %v245
        %262 = vst [vmem:[#allocation2 + $0x48] sm:$0xff] %v246
        %263 = vst [vmem:[#allocation2 + $0x50] sm:$0xff] %v247
        %264 = vst [vmem:[#allocation2 + $0x58] sm:$0xff] %v248
        %265 = vst [vmem:[#allocation2 + $0x60] sm:$0xff] %v249
        %266 = vst [vmem:[#allocation2 + $0x68] sm:$0xff] %v250
        %267 = vst [vmem:[#allocation2 + $0x70] sm:$0xff] %v251
        %268 = vst [vmem:[#allocation2 + $0x78] sm:$0xff] %v252
      $region32: #{res_blocks.1} parent=27 // pred_fallthru
        _
      %v269 = vld [vmem:[#allocation2] sm:$0xff]
      %v270 = vld [vmem:[#allocation2 + $0x8] sm:$0xff]
      %v271 = vld [vmem:[#allocation2 + $0x10] sm:$0xff]
      %v272 = vld [vmem:[#allocation2 + $0x18] sm:$0xff]
      %v273 = vld [vmem:[#allocation2 + $0x20] sm:$0xff]
      %v274 = vld [vmem:[#allocation2 + $0x28] sm:$0xff]
      %v275 = vld [vmem:[#allocation2 + $0x30] sm:$0xff]
      %v276 = vld [vmem:[#allocation2 + $0x38] sm:$0xff]
      %v277 = vld [vmem:[#allocation2 + $0x40] sm:$0xff]
      %v278 = vld [vmem:[#allocation2 + $0x48] sm:$0xff]
      %v279 = vld [vmem:[#allocation2 + $0x50] sm:$0xff]
      %v280 = vld [vmem:[#allocation2 + $0x58] sm:$0xff]
      %v281 = vld [vmem:[#allocation2 + $0x60] sm:$0xff]
      %v282 = vld [vmem:[#allocation2 + $0x68] sm:$0xff]
      %v283 = vld [vmem:[#allocation2 + $0x70] sm:$0xff]
      %v284 = vld [vmem:[#allocation2 + $0x78] sm:$0xff]
      %s285 = scalar_lea.vmem [#allocation3], 16
      %286 = vst [vmem:[%s285 + $0x1] sm:$0xff] %v269
      %287 = vst [vmem:[%s285 + $0x11] sm:$0xff] %v270
      %288 = vst [vmem:[%s285 + $0x21] sm:$0xff] %v271
      %289 = vst [vmem:[%s285 + $0x31] sm:$0xff] %v272
      %290 = vst [vmem:[%s285 + $0x41] sm:$0xff] %v273
      %291 = vst [vmem:[%s285 + $0x51] sm:$0xff] %v274
      %292 = vst [vmem:[%s285 + $0x61] sm:$0xff] %v275
      %293 = vst [vmem:[%s285 + $0x71] sm:$0xff] %v276
      %294 = vst [vmem:[%s285 + $0xa1] sm:$0xff] %v277
      %295 = vst [vmem:[%s285 + $0xb1] sm:$0xff] %v278
      %296 = vst [vmem:[%s285 + $0xc1] sm:$0xff] %v279
      %297 = vst [vmem:[%s285 + $0xd1] sm:$0xff] %v280
      %298 = vst [vmem:[%s285 + $0xe1] sm:$0xff] %v281
      %299 = vst [vmem:[%s285 + $0xf1] sm:$0xff] %v282
      %300 = vst [vmem:[%s285 + $0x101] sm:$0xff] %v283
      %301 = vst [vmem:[%s285 + $0x111] sm:$0xff] %v284
      %v302 = vld [vmem:[#allocation3] sm:$0xff]
      %v303 = vld [vmem:[#allocation3 + $0x10] sm:$0xff]
      %v304 = vld [vmem:[#allocation3 + $0x20] sm:$0xff]
      %v305 = vld [vmem:[#allocation3 + $0x30] sm:$0xff]
      %v306 = vld [vmem:[#allocation3 + $0x40] sm:$0xff]
      %v307 = vld [vmem:[#allocation3 + $0x50] sm:$0xff]
      %v308 = vld [vmem:[#allocation3 + $0x60] sm:$0xff]
      %v309 = vld [vmem:[#allocation3 + $0x70] sm:$0xff]
      %v310 = vld [vmem:[#allocation3 + $0xa0] sm:$0xff]
      %v311 = vld [vmem:[#allocation3 + $0xb0] sm:$0xff]
      %v312 = vld [vmem:[#allocation3 + $0xc0] sm:$0xff]
      %v313 = vld [vmem:[#allocation3 + $0xd0] sm:$0xff]
      %v314 = vld [vmem:[#allocation3 + $0xe0] sm:$0xff]
      %v315 = vld [vmem:[#allocation3 + $0xf0] sm:$0xff]
      %v316 = vld [vmem:[#allocation3 + $0x100] sm:$0xff]
      %v317 = vld [vmem:[#allocation3 + $0x110] sm:$0xff]
      %v318 = vld [vmem:[%s176] sm:$0xff]
      %v319 = vld [vmem:[%s176 + $0x8] sm:$0xff]
      %v320 = vld [vmem:[%s176 + $0x10] sm:$0xff]
      %v321 = vld [vmem:[%s176 + $0x18] sm:$0xff]
      %v322 = vld [vmem:[%s176 + $0x20] sm:$0xff]
      %v323 = vld [vmem:[%s176 + $0x28] sm:$0xff]
      %v324 = vld [vmem:[%s176 + $0x30] sm:$0xff]
      %v325 = vld [vmem:[%s176 + $0x38] sm:$0xff]
      %v326 = vld [vmem:[%s176 + $0x40] sm:$0xff]
      %v327 = vld [vmem:[%s176 + $0x48] sm:$0xff]
      %v328 = vld [vmem:[%s176 + $0x50] sm:$0xff]
      %v329 = vld [vmem:[%s176 + $0x58] sm:$0xff]
      %v330 = vld [vmem:[%s176 + $0x60] sm:$0xff]
      %v331 = vld [vmem:[%s176 + $0x68] sm:$0xff]
      %v332 = vld [vmem:[%s176 + $0x70] sm:$0xff]
      %v333 = vld [vmem:[%s176 + $0x78] sm:$0xff]
      %334 = vmatprep.subr.mxu0 0.0
      %335 = vmatpush1.msra.mxu0 %v318
      %336 = vmatprep.subr.mxu0 0.0
      %337 = vmatpush1.msra.mxu0 %v319
      %338 = vmatprep.subr.mxu0 0.0
      %339 = vmatpush1.msra.mxu0 %v320
      %340 = vmatprep.subr.mxu0 0.0
      %341 = vmatpush1.msra.mxu0 %v321
      %342 = vmatprep.subr.mxu0 0.0
      %343 = vmatpush1.msra.mxu0 %v322
      %344 = vmatprep.subr.mxu0 0.0
      %345 = vmatpush1.msra.mxu0 %v323
      %346 = vmatprep.subr.mxu0 0.0
      %347 = vmatpush1.msra.mxu0 %v324
      %348 = vmatprep.subr.mxu0 0.0
      %349 = vmatpush1.msra.mxu0 %v325
      %350 = vmatprep.subr.mxu0 0.0
      %351 = vmatpush1.msra.mxu0 %v326
      %352 = vmatprep.subr.mxu0 0.0
      %353 = vmatpush1.msra.mxu0 %v327
      %354 = vmatprep.subr.mxu0 0.0
      %355 = vmatpush1.msra.mxu0 %v328
      %356 = vmatprep.subr.mxu0 0.0
      %357 = vmatpush1.msra.mxu0 %v329
      %358 = vmatprep.subr.mxu0 0.0
      %359 = vmatpush1.msra.mxu0 %v330
      %360 = vmatprep.subr.mxu0 0.0
      %361 = vmatpush1.msra.mxu0 %v331
      %362 = vmatprep.subr.mxu0 0.0
      %363 = vmatpush1.msra.mxu0 %v332
      %364 = vmatprep.subr.mxu0 0.0
      %365 = vmatpush1.msra.mxu0 %v333
      %366 = vmatprep.subr.mxu0 0.0
      %367 = vmatpush1.msra.mxu0 0.0
      %368 = vmatprep.subr.mxu0 0.0
      %369 = vmatpush1.msra.mxu0 0.0
      %370 = vmatprep.subr.mxu0 0.0
      %371 = vmatpush1.msra.mxu0 0.0
      %372 = vmatprep.subr.mxu0 0.0
      %373 = vmatpush1.msra.mxu0 0.0
      %374 = vmatprep.subr.mxu0 0.0
      %375 = vmatpush1.msra.mxu0 0.0
      %376 = vmatprep.subr.mxu0 0.0
      %377 = vmatpush1.msra.mxu0 0.0
      %378 = vmatprep.subr.mxu0 0.0
      %379 = vmatpush1.msra.mxu0 0.0
      %380 = vmatprep.subr.mxu0 0.0
      %381 = vmatpush1.msra.mxu0 0.0
      %382 = vmatprep.subr.mxu0 0.0
      %383 = vmatpush1.msra.mxu0 0.0
      %384 = vmatprep.subr.mxu0 0.0
      %385 = vmatpush1.msra.mxu0 0.0
      %386 = vmatprep.subr.mxu0 0.0
      %387 = vmatpush1.msra.mxu0 0.0
      %388 = vmatprep.subr.mxu0 0.0
      %389 = vmatpush1.msra.mxu0 0.0
      %390 = vmatprep.subr.mxu0 0.0
      %391 = vmatpush1.msra.mxu0 0.0
      %392 = vmatprep.subr.mxu0 0.0
      %393 = vmatpush1.msra.mxu0 0.0
      %394 = vmatprep.subr.mxu0 0.0
      %395 = vmatpush1.msra.mxu0 0.0
      %396 = vmatprep.subr.mxu0 0.0
      %397 = vmatpush1.msra.mxu0 0.0
      %398 = vmatprep.mubr.f32.mxu0 0.0
      %399 = vmatmul.mubr.f32.gmra.mrb[0].mxu0 %v302
      %v400 = vpop.f32.mrb[0].mxu0
      %v401 = vadd.f32 0.0, %v400
      %v402 = vpop.f32.mrb[0].mxu0
      %403 = vmatprep.mubr.f32.mxu0 0.0
      %404 = vmatmul.mubr.f32.gmra.mrb[0].mxu0 %v303
      %v405 = vpop.f32.mrb[0].mxu0
      %v406 = vadd.f32 0.0, %v405
      %v407 = vpop.f32.mrb[0].mxu0
      %408 = vmatprep.mubr.f32.mxu0 0.0
      %409 = vmatmul.mubr.f32.gmra.mrb[0].mxu0 %v304
      %v410 = vpop.f32.mrb[0].mxu0
      %v411 = vadd.f32 0.0, %v410
      %v412 = vpop.f32.mrb[0].mxu0
      %413 = vmatprep.mubr.f32.mxu0 0.0
      %414 = vmatmul.mubr.f32.gmra.mrb[0].mxu0 %v305
      %v415 = vpop.f32.mrb[0].mxu0
      %v416 = vadd.f32 0.0, %v415
      %v417 = vpop.f32.mrb[0].mxu0
      %418 = vmatprep.mubr.f32.mxu0 0.0
      %419 = vmatmul.mubr.f32.gmra.mrb[0].mxu0 %v306
      %v420 = vpop.f32.mrb[0].mxu0
      %v421 = vadd.f32 0.0, %v420
      %v422 = vpop.f32.mrb[0].mxu0
      %423 = vmatprep.mubr.f32.mxu0 0.0
      %424 = vmatmul.mubr.f32.gmra.mrb[0].mxu0 %v307
      %v425 = vpop.f32.mrb[0].mxu0
      %v426 = vadd.f32 0.0, %v425
      %v427 = vpop.f32.mrb[0].mxu0
      %428 = vmatprep.mubr.f32.mxu0 0.0
      %429 = vmatmul.mubr.f32.gmra.mrb[0].mxu0 %v308
      %v430 = vpop.f32.mrb[0].mxu0
      %v431 = vadd.f32 0.0, %v430
      %v432 = vpop.f32.mrb[0].mxu0
      %433 = vmatprep.mubr.f32.mxu0 0.0
      %434 = vmatmul.mubr.f32.gmra.mrb[0].mxu0 %v309
      %v435 = vpop.f32.mrb[0].mxu0
      %v436 = vadd.f32 0.0, %v435
      %v437 = vpop.f32.mrb[0].mxu0
      %438 = vmatprep.mubr.f32.mxu0 0.0
      %439 = vmatmul.mubr.f32.gmra.mrb[0].mxu0 %v310
      %v440 = vpop.f32.mrb[0].mxu0
      %v441 = vadd.f32 0.0, %v440
      %v442 = vpop.f32.mrb[0].mxu0
      %443 = vmatprep.mubr.f32.mxu0 0.0
      %444 = vmatmul.mubr.f32.gmra.mrb[0].mxu0 %v311
      %v445 = vpop.f32.mrb[0].mxu0
      %v446 = vadd.f32 0.0, %v445
      %v447 = vpop.f32.mrb[0].mxu0
      %448 = vmatprep.mubr.f32.mxu0 0.0
      %449 = vmatmul.mubr.f32.gmra.mrb[0].mxu0 %v312
      %v450 = vpop.f32.mrb[0].mxu0
      %v451 = vadd.f32 0.0, %v450
      %v452 = vpop.f32.mrb[0].mxu0
      %453 = vmatprep.mubr.f32.mxu0 0.0
      %454 = vmatmul.mubr.f32.gmra.mrb[0].mxu0 %v313
      %v455 = vpop.f32.mrb[0].mxu0
      %v456 = vadd.f32 0.0, %v455
      %v457 = vpop.f32.mrb[0].mxu0
      %458 = vmatprep.mubr.f32.mxu0 0.0
      %459 = vmatmul.mubr.f32.gmra.mrb[0].mxu0 %v314
      %v460 = vpop.f32.mrb[0].mxu0
      %v461 = vadd.f32 0.0, %v460
      %v462 = vpop.f32.mrb[0].mxu0
      %463 = vmatprep.mubr.f32.mxu0 0.0
      %464 = vmatmul.mubr.f32.gmra.mrb[0].mxu0 %v315
      %v465 = vpop.f32.mrb[0].mxu0
      %v466 = vadd.f32 0.0, %v465
      %v467 = vpop.f32.mrb[0].mxu0
      %468 = vmatprep.mubr.f32.mxu0 0.0
      %469 = vmatmul.mubr.f32.gmra.mrb[0].mxu0 %v316
      %v470 = vpop.f32.mrb[0].mxu0
      %v471 = vadd.f32 0.0, %v470
      %v472 = vpop.f32.mrb[0].mxu0
      %473 = vmatprep.mubr.f32.mxu0 0.0
      %474 = vmatmul.mubr.f32.gmra.mrb[0].mxu0 %v317
      %v475 = vpop.f32.mrb[0].mxu0
      %v476 = vadd.f32 0.0, %v475
      %v477 = vpop.f32.mrb[0].mxu0
      %478 = vdwg.mxu0
      %479 = vst [vmem:[#allocation4] sm:$0xff] %v401
      %480 = vst [vmem:[#allocation4 + $0x8] sm:$0xff] %v406
      %481 = vst [vmem:[#allocation4 + $0x10] sm:$0xff] %v411
      %482 = vst [vmem:[#allocation4 + $0x18] sm:$0xff] %v416
      %483 = vst [vmem:[#allocation4 + $0x20] sm:$0xff] %v421
      %484 = vst [vmem:[#allocation4 + $0x28] sm:$0xff] %v426
      %485 = vst [vmem:[#allocation4 + $0x30] sm:$0xff] %v431
      %486 = vst [vmem:[#allocation4 + $0x38] sm:$0xff] %v436
      %487 = vst [vmem:[#allocation4 + $0x40] sm:$0xff] %v441
      %488 = vst [vmem:[#allocation4 + $0x48] sm:$0xff] %v446
      %489 = vst [vmem:[#allocation4 + $0x50] sm:$0xff] %v451
      %490 = vst [vmem:[#allocation4 + $0x58] sm:$0xff] %v456
      %491 = vst [vmem:[#allocation4 + $0x60] sm:$0xff] %v461
      %492 = vst [vmem:[#allocation4 + $0x68] sm:$0xff] %v466
      %493 = vst [vmem:[#allocation4 + $0x70] sm:$0xff] %v471
      %494 = vst [vmem:[#allocation4 + $0x78] sm:$0xff] %v476
      %v495 = vld [vmem:[#allocation3 + $0x1] sm:$0xff]
      %v496 = vld [vmem:[#allocation3 + $0x11] sm:$0xff]
      %v497 = vld [vmem:[#allocation3 + $0x21] sm:$0xff]
      %v498 = vld [vmem:[#allocation3 + $0x31] sm:$0xff]
      %v499 = vld [vmem:[#allocation3 + $0x41] sm:$0xff]
      %v500 = vld [vmem:[#allocation3 + $0x51] sm:$0xff]
      %v501 = vld [vmem:[#allocation3 + $0x61] sm:$0xff]
      %v502 = vld [vmem:[#allocation3 + $0x71] sm:$0xff]
      %v503 = vld [vmem:[#allocation3 + $0xa1] sm:$0xff]
      %v504 = vld [vmem:[#allocation3 + $0xb1] sm:$0xff]
      %v505 = vld [vmem:[#allocation3 + $0xc1] sm:$0xff]
      %v506 = vld [vmem:[#allocation3 + $0xd1] sm:$0xff]
      %v507 = vld [vmem:[#allocation3 + $0xe1] sm:$0xff]
      %v508 = vld [vmem:[#allocation3 + $0xf1] sm:$0xff]
      %v509 = vld [vmem:[#allocation3 + $0x101] sm:$0xff]
      %v510 = vld [vmem:[#allocation3 + $0x111] sm:$0xff]
      %s511 = scalar_lea.vmem %s176, 128
      %v512 = vld [vmem:[%s511] sm:$0xff]
      %v513 = vld [vmem:[%s511 + $0x8] sm:$0xff]
      %v514 = vld [vmem:[%s511 + $0x10] sm:$0xff]
      %v515 = vld [vmem:[%s511 + $0x18] sm:$0xff]
      %v516 = vld [vmem:[%s511 + $0x20] sm:$0xff]
      %v517 = vld [vmem:[%s511 + $0x28] sm:$0xff]
      %v518 = vld [vmem:[%s511 + $0x30] sm:$0xff]
      %v519 = vld [vmem:[%s511 + $0x38] sm:$0xff]
      %v520 = vld [vmem:[%s511 + $0x40] sm:$0xff]
      %v521 = vld [vmem:[%s511 + $0x48] sm:$0xff]
      %v522 = vld [vmem:[%s511 + $0x50] sm:$0xff]
      %v523 = vld [vmem:[%s511 + $0x58] sm:$0xff]
      %v524 = vld [vmem:[%s511 + $0x60] sm:$0xff]
      %v525 = vld [vmem:[%s511 + $0x68] sm:$0xff]
      %v526 = vld [vmem:[%s511 + $0x70] sm:$0xff]
      %v527 = vld [vmem:[%s511 + $0x78] sm:$0xff]
      %528 = vmatprep.subr.mxu0 0.0
      %529 = vmatpush1.msra.mxu0 %v512
      %530 = vmatprep.subr.mxu0 0.0
      %531 = vmatpush1.msra.mxu0 %v513
      %532 = vmatprep.subr.mxu0 0.0
      %533 = vmatpush1.msra.mxu0 %v514
      %534 = vmatprep.subr.mxu0 0.0
      %535 = vmatpush1.msra.mxu0 %v515
      %536 = vmatprep.subr.mxu0 0.0
      %537 = vmatpush1.msra.mxu0 %v516
      %538 = vmatprep.subr.mxu0 0.0
      %539 = vmatpush1.msra.mxu0 %v517
      %540 = vmatprep.subr.mxu0 0.0
      %541 = vmatpush1.msra.mxu0 %v518
      %542 = vmatprep.subr.mxu0 0.0
      %543 = vmatpush1.msra.mxu0 %v519
      %544 = vmatprep.subr.mxu0 0.0
      %545 = vmatpush1.msra.mxu0 %v520
      %546 = vmatprep.subr.mxu0 0.0
      %547 = vmatpush1.msra.mxu0 %v521
      %548 = vmatprep.subr.mxu0 0.0
      %549 = vmatpush1.msra.mxu0 %v522
      %550 = vmatprep.subr.mxu0 0.0
      %551 = vmatpush1.msra.mxu0 %v523
      %552 = vmatprep.subr.mxu0 0.0
      %553 = vmatpush1.msra.mxu0 %v524
      %554 = vmatprep.subr.mxu0 0.0
      %555 = vmatpush1.msra.mxu0 %v525
      %556 = vmatprep.subr.mxu0 0.0
      %557 = vmatpush1.msra.mxu0 %v526
      %558 = vmatprep.subr.mxu0 0.0
      %559 = vmatpush1.msra.mxu0 %v527
      %560 = vmatprep.subr.mxu0 0.0
      %561 = vmatpush1.msra.mxu0 0.0
      %562 = vmatprep.subr.mxu0 0.0
      %563 = vmatpush1.msra.mxu0 0.0
      %564 = vmatprep.subr.mxu0 0.0
      %565 = vmatpush1.msra.mxu0 0.0
      %566 = vmatprep.subr.mxu0 0.0
      %567 = vmatpush1.msra.mxu0 0.0
      %568 = vmatprep.subr.mxu0 0.0
      %569 = vmatpush1.msra.mxu0 0.0
      %570 = vmatprep.subr.mxu0 0.0
      %571 = vmatpush1.msra.mxu0 0.0
      %572 = vmatprep.subr.mxu0 0.0
      %573 = vmatpush1.msra.mxu0 0.0
      %574 = vmatprep.subr.mxu0 0.0
      %575 = vmatpush1.msra.mxu0 0.0
      %576 = vmatprep.subr.mxu0 0.0
      %577 = vmatpush1.msra.mxu0 0.0
      %578 = vmatprep.subr.mxu0 0.0
      %579 = vmatpush1.msra.mxu0 0.0
      %580 = vmatprep.subr.mxu0 0.0
      %581 = vmatpush1.msra.mxu0 0.0
      %582 = vmatprep.subr.mxu0 0.0
      %583 = vmatpush1.msra.mxu0 0.0
      %584 = vmatprep.subr.mxu0 0.0
      %585 = vmatpush1.msra.mxu0 0.0
      %586 = vmatprep.subr.mxu0 0.0
      %587 = vmatpush1.msra.mxu0 0.0
      %588 = vmatprep.subr.mxu0 0.0
      %589 = vmatpush1.msra.mxu0 0.0
      %590 = vmatprep.subr.mxu0 0.0
      %591 = vmatpush1.msra.mxu0 0.0
      %592 = vmatprep.mubr.f32.mxu0 0.0
      %593 = vmatmul.mubr.f32.gmra.mrb[0].mxu0 %v495
      %v594 = vpop.f32.mrb[0].mxu0
      %v595 = vadd.f32 0.0, %v594
      %v596 = vpop.f32.mrb[0].mxu0
      %597 = vmatprep.mubr.f32.mxu0 0.0
      %598 = vmatmul.mubr.f32.gmra.mrb[0].mxu0 %v496
      %v599 = vpop.f32.mrb[0].mxu0
      %v600 = vadd.f32 0.0, %v599
      %v601 = vpop.f32.mrb[0].mxu0
      %602 = vmatprep.mubr.f32.mxu0 0.0
      %603 = vmatmul.mubr.f32.gmra.mrb[0].mxu0 %v497
      %v604 = vpop.f32.mrb[0].mxu0
      %v605 = vadd.f32 0.0, %v604
      %v606 = vpop.f32.mrb[0].mxu0
      %607 = vmatprep.mubr.f32.mxu0 0.0
      %608 = vmatmul.mubr.f32.gmra.mrb[0].mxu0 %v498
      %v609 = vpop.f32.mrb[0].mxu0
      %v610 = vadd.f32 0.0, %v609
      %v611 = vpop.f32.mrb[0].mxu0
      %612 = vmatprep.mubr.f32.mxu0 0.0
      %613 = vmatmul.mubr.f32.gmra.mrb[0].mxu0 %v499
      %v614 = vpop.f32.mrb[0].mxu0
      %v615 = vadd.f32 0.0, %v614
      %v616 = vpop.f32.mrb[0].mxu0
      %617 = vmatprep.mubr.f32.mxu0 0.0
      %618 = vmatmul.mubr.f32.gmra.mrb[0].mxu0 %v500
      %v619 = vpop.f32.mrb[0].mxu0
      %v620 = vadd.f32 0.0, %v619
      %v621 = vpop.f32.mrb[0].mxu0
      %622 = vmatprep.mubr.f32.mxu0 0.0
      %623 = vmatmul.mubr.f32.gmra.mrb[0].mxu0 %v501
      %v624 = vpop.f32.mrb[0].mxu0
      %v625 = vadd.f32 0.0, %v624
      %v626 = vpop.f32.mrb[0].mxu0
      %627 = vmatprep.mubr.f32.mxu0 0.0
      %628 = vmatmul.mubr.f32.gmra.mrb[0].mxu0 %v502
      %v629 = vpop.f32.mrb[0].mxu0
      %v630 = vadd.f32 0.0, %v629
      %v631 = vpop.f32.mrb[0].mxu0
      %632 = vmatprep.mubr.f32.mxu0 0.0
      %633 = vmatmul.mubr.f32.gmra.mrb[0].mxu0 %v503
      %v634 = vpop.f32.mrb[0].mxu0
      %v635 = vadd.f32 0.0, %v634
      %v636 = vpop.f32.mrb[0].mxu0
      %637 = vmatprep.mubr.f32.mxu0 0.0
      %638 = vmatmul.mubr.f32.gmra.mrb[0].mxu0 %v504
      %v639 = vpop.f32.mrb[0].mxu0
      %v640 = vadd.f32 0.0, %v639
      %v641 = vpop.f32.mrb[0].mxu0
      %642 = vmatprep.mubr.f32.mxu0 0.0
      %643 = vmatmul.mubr.f32.gmra.mrb[0].mxu0 %v505
      %v644 = vpop.f32.mrb[0].mxu0
      %v645 = vadd.f32 0.0, %v644
      %v646 = vpop.f32.mrb[0].mxu0
      %647 = vmatprep.mubr.f32.mxu0 0.0
      %648 = vmatmul.mubr.f32.gmra.mrb[0].mxu0 %v506
      %v649 = vpop.f32.mrb[0].mxu0
      %v650 = vadd.f32 0.0, %v649
      %v651 = vpop.f32.mrb[0].mxu0
      %652 = vmatprep.mubr.f32.mxu0 0.0
      %653 = vmatmul.mubr.f32.gmra.mrb[0].mxu0 %v507
      %v654 = vpop.f32.mrb[0].mxu0
      %v655 = vadd.f32 0.0, %v654
      %v656 = vpop.f32.mrb[0].mxu0
      %657 = vmatprep.mubr.f32.mxu0 0.0
      %658 = vmatmul.mubr.f32.gmra.mrb[0].mxu0 %v508
      %v659 = vpop.f32.mrb[0].mxu0
      %v660 = vadd.f32 0.0, %v659
      %v661 = vpop.f32.mrb[0].mxu0
      %662 = vmatprep.mubr.f32.mxu0 0.0
      %663 = vmatmul.mubr.f32.gmra.mrb[0].mxu0 %v509
      %v664 = vpop.f32.mrb[0].mxu0
      %v665 = vadd.f32 0.0, %v664
      %v666 = vpop.f32.mrb[0].mxu0
      %667 = vmatprep.mubr.f32.mxu0 0.0
      %668 = vmatmul.mubr.f32.gmra.mrb[0].mxu0 %v510
      %v669 = vpop.f32.mrb[0].mxu0
      %v670 = vadd.f32 0.0, %v669
      %v671 = vpop.f32.mrb[0].mxu0
      %672 = vdwg.mxu0
      %v673 = vld [vmem:[#allocation4] sm:$0xff]
      %v674 = vld [vmem:[#allocation4 + $0x8] sm:$0xff]
      %v675 = vld [vmem:[#allocation4 + $0x10] sm:$0xff]
      %v676 = vld [vmem:[#allocation4 + $0x18] sm:$0xff]
      %v677 = vld [vmem:[#allocation4 + $0x20] sm:$0xff]
      %v678 = vld [vmem:[#allocation4 + $0x28] sm:$0xff]
      %v679 = vld [vmem:[#allocation4 + $0x30] sm:$0xff]
      %v680 = vld [vmem:[#allocation4 + $0x38] sm:$0xff]
      %v681 = vld [vmem:[#allocation4 + $0x40] sm:$0xff]
      %v682 = vld [vmem:[#allocation4 + $0x48] sm:$0xff]
      %v683 = vld [vmem:[#allocation4 + $0x50] sm:$0xff]
      %v684 = vld [vmem:[#allocation4 + $0x58] sm:$0xff]
      %v685 = vld [vmem:[#allocation4 + $0x60] sm:$0xff]
      %v686 = vld [vmem:[#allocation4 + $0x68] sm:$0xff]
      %v687 = vld [vmem:[#allocation4 + $0x70] sm:$0xff]
      %v688 = vld [vmem:[#allocation4 + $0x78] sm:$0xff]
      %v689 = vadd.f32 %v673, %v595
      %v690 = vadd.f32 %v674, %v600
      %v691 = vadd.f32 %v675, %v605
      %v692 = vadd.f32 %v676, %v610
      %v693 = vadd.f32 %v677, %v615
      %v694 = vadd.f32 %v678, %v620
      %v695 = vadd.f32 %v679, %v625
      %v696 = vadd.f32 %v680, %v630
      %v697 = vadd.f32 %v681, %v635
      %v698 = vadd.f32 %v682, %v640
      %v699 = vadd.f32 %v683, %v645
      %v700 = vadd.f32 %v684, %v650
      %v701 = vadd.f32 %v685, %v655
      %v702 = vadd.f32 %v686, %v660
      %v703 = vadd.f32 %v687, %v665
      %v704 = vadd.f32 %v688, %v670
      %705 = vst [vmem:[#allocation4] sm:$0xff] %v689
      %706 = vst [vmem:[#allocation4 + $0x8] sm:$0xff] %v690
      %707 = vst [vmem:[#allocation4 + $0x10] sm:$0xff] %v691
      %708 = vst [vmem:[#allocation4 + $0x18] sm:$0xff] %v692
      %709 = vst [vmem:[#allocation4 + $0x20] sm:$0xff] %v693
      %710 = vst [vmem:[#allocation4 + $0x28] sm:$0xff] %v694
      %711 = vst [vmem:[#allocation4 + $0x30] sm:$0xff] %v695
      %712 = vst [vmem:[#allocation4 + $0x38] sm:$0xff] %v696
      %713 = vst [vmem:[#allocation4 + $0x40] sm:$0xff] %v697
      %714 = vst [vmem:[#allocation4 + $0x48] sm:$0xff] %v698
      %715 = vst [vmem:[#allocation4 + $0x50] sm:$0xff] %v699
      %716 = vst [vmem:[#allocation4 + $0x58] sm:$0xff] %v700
      %717 = vst [vmem:[#allocation4 + $0x60] sm:$0xff] %v701
      %718 = vst [vmem:[#allocation4 + $0x68] sm:$0xff] %v702
      %719 = vst [vmem:[#allocation4 + $0x70] sm:$0xff] %v703
      %720 = vst [vmem:[#allocation4 + $0x78] sm:$0xff] %v704
      %v721 = vld [vmem:[#allocation3 + $0x2] sm:$0xff]
      %v722 = vld [vmem:[#allocation3 + $0x12] sm:$0xff]
      %v723 = vld [vmem:[#allocation3 + $0x22] sm:$0xff]
      %v724 = vld [vmem:[#allocation3 + $0x32] sm:$0xff]
      %v725 = vld [vmem:[#allocation3 + $0x42] sm:$0xff]
      %v726 = vld [vmem:[#allocation3 + $0x52] sm:$0xff]
      %v727 = vld [vmem:[#allocation3 + $0x62] sm:$0xff]
      %v728 = vld [vmem:[#allocation3 + $0x72] sm:$0xff]
      %v729 = vld [vmem:[#allocation3 + $0xa2] sm:$0xff]
      %v730 = vld [vmem:[#allocation3 + $0xb2] sm:$0xff]
      %v731 = vld [vmem:[#allocation3 + $0xc2] sm:$0xff]
      %v732 = vld [vmem:[#allocation3 + $0xd2] sm:$0xff]
      %v733 = vld [vmem:[#allocation3 + $0xe2] sm:$0xff]
      %v734 = vld [vmem:[#allocation3 + $0xf2] sm:$0xff]
      %v735 = vld [vmem:[#allocation3 + $0x102] sm:$0xff]
      %v736 = vld [vmem:[#allocation3 + $0x112] sm:$0xff]
      %s737 = scalar_lea.vmem %s176, 256
      %v738 = vld [vmem:[%s737] sm:$0xff]
      %v739 = vld [vmem:[%s737 + $0x8] sm:$0xff]
      %v740 = vld [vmem:[%s737 + $0x10] sm:$0xff]
      %v741 = vld [vmem:[%s737 + $0x18] sm:$0xff]
      %v742 = vld [vmem:[%s737 + $0x20] sm:$0xff]
      %v743 = vld [vmem:[%s737 + $0x28] sm:$0xff]
      %v744 = vld [vmem:[%s737 + $0x30] sm:$0xff]
      %v745 = vld [vmem:[%s737 + $0x38] sm:$0xff]
      %v746 = vld [vmem:[%s737 + $0x40] sm:$0xff]
      %v747 = vld [vmem:[%s737 + $0x48] sm:$0xff]
      %v748 = vld [vmem:[%s737 + $0x50] sm:$0xff]
      %v749 = vld [vmem:[%s737 + $0x58] sm:$0xff]
      %v750 = vld [vmem:[%s737 + $0x60] sm:$0xff]
      %v751 = vld [vmem:[%s737 + $0x68] sm:$0xff]
      %v752 = vld [vmem:[%s737 + $0x70] sm:$0xff]
      %v753 = vld [vmem:[%s737 + $0x78] sm:$0xff]
      %754 = vmatprep.subr.mxu0 0.0
      %755 = vmatpush1.msra.mxu0 %v738
      %756 = vmatprep.subr.mxu0 0.0
      %757 = vmatpush1.msra.mxu0 %v739
      %758 = vmatprep.subr.mxu0 0.0
      %759 = vmatpush1.msra.mxu0 %v740
      %760 = vmatprep.subr.mxu0 0.0
      %761 = vmatpush1.msra.mxu0 %v741
      %762 = vmatprep.subr.mxu0 0.0
      %763 = vmatpush1.msra.mxu0 %v742
      %764 = vmatprep.subr.mxu0 0.0
      %765 = vmatpush1.msra.mxu0 %v743
      %766 = vmatprep.subr.mxu0 0.0
      %767 = vmatpush1.msra.mxu0 %v744
      %768 = vmatprep.subr.mxu0 0.0
      %769 = vmatpush1.msra.mxu0 %v745
      %770 = vmatprep.subr.mxu0 0.0
      %771 = vmatpush1.msra.mxu0 %v746
      %772 = vmatprep.subr.mxu0 0.0
      %773 = vmatpush1.msra.mxu0 %v747
      %774 = vmatprep.subr.mxu0 0.0
      %775 = vmatpush1.msra.mxu0 %v748
      %776 = vmatprep.subr.mxu0 0.0
      %777 = vmatpush1.msra.mxu0 %v749
      %778 = vmatprep.subr.mxu0 0.0
      %779 = vmatpush1.msra.mxu0 %v750
      %780 = vmatprep.subr.mxu0 0.0
      %781 = vmatpush1.msra.mxu0 %v751
      %782 = vmatprep.subr.mxu0 0.0
      %783 = vmatpush1.msra.mxu0 %v752
      %784 = vmatprep.subr.mxu0 0.0
      %785 = vmatpush1.msra.mxu0 %v753
      %786 = vmatprep.subr.mxu0 0.0
      %787 = vmatpush1.msra.mxu0 0.0
      %788 = vmatprep.subr.mxu0 0.0
      %789 = vmatpush1.msra.mxu0 0.0
      %790 = vmatprep.subr.mxu0 0.0
      %791 = vmatpush1.msra.mxu0 0.0
      %792 = vmatprep.subr.mxu0 0.0
      %793 = vmatpush1.msra.mxu0 0.0
      %794 = vmatprep.subr.mxu0 0.0
      %795 = vmatpush1.msra.mxu0 0.0
      %796 = vmatprep.subr.mxu0 0.0
      %797 = vmatpush1.msra.mxu0 0.0
      %798 = vmatprep.subr.mxu0 0.0
      %799 = vmatpush1.msra.mxu0 0.0
      %800 = vmatprep.subr.mxu0 0.0
      %801 = vmatpush1.msra.mxu0 0.0
      %802 = vmatprep.subr.mxu0 0.0
      %803 = vmatpush1.msra.mxu0 0.0
      %804 = vmatprep.subr.mxu0 0.0
      %805 = vmatpush1.msra.mxu0 0.0
      %806 = vmatprep.subr.mxu0 0.0
      %807 = vmatpush1.msra.mxu0 0.0
      %808 = vmatprep.subr.mxu0 0.0
      %809 = vmatpush1.msra.mxu0 0.0
      %810 = vmatprep.subr.mxu0 0.0
      %811 = vmatpush1.msra.mxu0 0.0
      %812 = vmatprep.subr.mxu0 0.0
      %813 = vmatpush1.msra.mxu0 0.0
      %814 = vmatprep.subr.mxu0 0.0
      %815 = vmatpush1.msra.mxu0 0.0
      %816 = vmatprep.subr.mxu0 0.0
      %817 = vmatpush1.msra.mxu0 0.0
      %818 = vmatprep.mubr.f32.mxu0 0.0
      %819 = vmatmul.mubr.f32.gmra.mrb[0].mxu0 %v721
      %v820 = vpop.f32.mrb[0].mxu0
      %v821 = vadd.f32 0.0, %v820
      %v822 = vpop.f32.mrb[0].mxu0
      %823 = vmatprep.mubr.f32.mxu0 0.0
      %824 = vmatmul.mubr.f32.gmra.mrb[0].mxu0 %v722
      %v825 = vpop.f32.mrb[0].mxu0
      %v826 = vadd.f32 0.0, %v825
      %v827 = vpop.f32.mrb[0].mxu0
      %828 = vmatprep.mubr.f32.mxu0 0.0
      %829 = vmatmul.mubr.f32.gmra.mrb[0].mxu0 %v723
      %v830 = vpop.f32.mrb[0].mxu0
      %v831 = vadd.f32 0.0, %v830
      %v832 = vpop.f32.mrb[0].mxu0
      %833 = vmatprep.mubr.f32.mxu0 0.0
      %834 = vmatmul.mubr.f32.gmra.mrb[0].mxu0 %v724
      %v835 = vpop.f32.mrb[0].mxu0
      %v836 = vadd.f32 0.0, %v835
      %v837 = vpop.f32.mrb[0].mxu0
      %838 = vmatprep.mubr.f32.mxu0 0.0
      %839 = vmatmul.mubr.f32.gmra.mrb[0].mxu0 %v725
      %v840 = vpop.f32.mrb[0].mxu0
      %v841 = vadd.f32 0.0, %v840
      %v842 = vpop.f32.mrb[0].mxu0
      %843 = vmatprep.mubr.f32.mxu0 0.0
      %844 = vmatmul.mubr.f32.gmra.mrb[0].mxu0 %v726
      %v845 = vpop.f32.mrb[0].mxu0
      %v846 = vadd.f32 0.0, %v845
      %v847 = vpop.f32.mrb[0].mxu0
      %848 = vmatprep.mubr.f32.mxu0 0.0
      %849 = vmatmul.mubr.f32.gmra.mrb[0].mxu0 %v727
      %v850 = vpop.f32.mrb[0].mxu0
      %v851 = vadd.f32 0.0, %v850
      %v852 = vpop.f32.mrb[0].mxu0
      %853 = vmatprep.mubr.f32.mxu0 0.0
      %854 = vmatmul.mubr.f32.gmra.mrb[0].mxu0 %v728
      %v855 = vpop.f32.mrb[0].mxu0
      %v856 = vadd.f32 0.0, %v855
      %v857 = vpop.f32.mrb[0].mxu0
      %858 = vmatprep.mubr.f32.mxu0 0.0
      %859 = vmatmul.mubr.f32.gmra.mrb[0].mxu0 %v729
      %v860 = vpop.f32.mrb[0].mxu0
      %v861 = vadd.f32 0.0, %v860
      %v862 = vpop.f32.mrb[0].mxu0
      %863 = vmatprep.mubr.f32.mxu0 0.0
      %864 = vmatmul.mubr.f32.gmra.mrb[0].mxu0 %v730
      %v865 = vpop.f32.mrb[0].mxu0
      %v866 = vadd.f32 0.0, %v865
      %v867 = vpop.f32.mrb[0].mxu0
      %868 = vmatprep.mubr.f32.mxu0 0.0
      %869 = vmatmul.mubr.f32.gmra.mrb[0].mxu0 %v731
      %v870 = vpop.f32.mrb[0].mxu0
      %v871 = vadd.f32 0.0, %v870
      %v872 = vpop.f32.mrb[0].mxu0
      %873 = vmatprep.mubr.f32.mxu0 0.0
      %874 = vmatmul.mubr.f32.gmra.mrb[0].mxu0 %v732
      %v875 = vpop.f32.mrb[0].mxu0
      %v876 = vadd.f32 0.0, %v875
      %v877 = vpop.f32.mrb[0].mxu0
      %878 = vmatprep.mubr.f32.mxu0 0.0
      %879 = vmatmul.mubr.f32.gmra.mrb[0].mxu0 %v733
      %v880 = vpop.f32.mrb[0].mxu0
      %v881 = vadd.f32 0.0, %v880
      %v882 = vpop.f32.mrb[0].mxu0
      %883 = vmatprep.mubr.f32.mxu0 0.0
      %884 = vmatmul.mubr.f32.gmra.mrb[0].mxu0 %v734
      %v885 = vpop.f32.mrb[0].mxu0
      %v886 = vadd.f32 0.0, %v885
      %v887 = vpop.f32.mrb[0].mxu0
      %888 = vmatprep.mubr.f32.mxu0 0.0
      %889 = vmatmul.mubr.f32.gmra.mrb[0].mxu0 %v735
      %v890 = vpop.f32.mrb[0].mxu0
      %v891 = vadd.f32 0.0, %v890
      %v892 = vpop.f32.mrb[0].mxu0
      %893 = vmatprep.mubr.f32.mxu0 0.0
      %894 = vmatmul.mubr.f32.gmra.mrb[0].mxu0 %v736
      %v895 = vpop.f32.mrb[0].mxu0
      %v896 = vadd.f32 0.0, %v895
      %v897 = vpop.f32.mrb[0].mxu0
      %898 = vdwg.mxu0
      %v899 = vld [vmem:[#allocation4] sm:$0xff]
      %v900 = vld [vmem:[#allocation4 + $0x8] sm:$0xff]
      %v901 = vld [vmem:[#allocation4 + $0x10] sm:$0xff]
      %v902 = vld [vmem:[#allocation4 + $0x18] sm:$0xff]
      %v903 = vld [vmem:[#allocation4 + $0x20] sm:$0xff]
      %v904 = vld [vmem:[#allocation4 + $0x28] sm:$0xff]
      %v905 = vld [vmem:[#allocation4 + $0x30] sm:$0xff]
      %v906 = vld [vmem:[#allocation4 + $0x38] sm:$0xff]
      %v907 = vld [vmem:[#allocation4 + $0x40] sm:$0xff]
      %v908 = vld [vmem:[#allocation4 + $0x48] sm:$0xff]
      %v909 = vld [vmem:[#allocation4 + $0x50] sm:$0xff]
      %v910 = vld [vmem:[#allocation4 + $0x58] sm:$0xff]
      %v911 = vld [vmem:[#allocation4 + $0x60] sm:$0xff]
      %v912 = vld [vmem:[#allocation4 + $0x68] sm:$0xff]
      %v913 = vld [vmem:[#allocation4 + $0x70] sm:$0xff]
      %v914 = vld [vmem:[#allocation4 + $0x78] sm:$0xff]
      %v915 = vadd.f32 %v899, %v821
      %v916 = vadd.f32 %v900, %v826
      %v917 = vadd.f32 %v901, %v831
      %v918 = vadd.f32 %v902, %v836
      %v919 = vadd.f32 %v903, %v841
      %v920 = vadd.f32 %v904, %v846
      %v921 = vadd.f32 %v905, %v851
      %v922 = vadd.f32 %v906, %v856
      %v923 = vadd.f32 %v907, %v861
      %v924 = vadd.f32 %v908, %v866
      %v925 = vadd.f32 %v909, %v871
      %v926 = vadd.f32 %v910, %v876
      %v927 = vadd.f32 %v911, %v881
      %v928 = vadd.f32 %v912, %v886
      %v929 = vadd.f32 %v913, %v891
      %v930 = vadd.f32 %v914, %v896
      %931 = vst [vmem:[#allocation4] sm:$0xff] %v915
      %932 = vst [vmem:[#allocation4 + $0x8] sm:$0xff] %v916
      %933 = vst [vmem:[#allocation4 + $0x10] sm:$0xff] %v917
      %934 = vst [vmem:[#allocation4 + $0x18] sm:$0xff] %v918
      %935 = vst [vmem:[#allocation4 + $0x20] sm:$0xff] %v919
      %936 = vst [vmem:[#allocation4 + $0x28] sm:$0xff] %v920
      %937 = vst [vmem:[#allocation4 + $0x30] sm:$0xff] %v921
      %938 = vst [vmem:[#allocation4 + $0x38] sm:$0xff] %v922
      %939 = vst [vmem:[#allocation4 + $0x40] sm:$0xff] %v923
      %940 = vst [vmem:[#allocation4 + $0x48] sm:$0xff] %v924
      %941 = vst [vmem:[#allocation4 + $0x50] sm:$0xff] %v925
      %942 = vst [vmem:[#allocation4 + $0x58] sm:$0xff] %v926
      %943 = vst [vmem:[#allocation4 + $0x60] sm:$0xff] %v927
      %944 = vst [vmem:[#allocation4 + $0x68] sm:$0xff] %v928
      %945 = vst [vmem:[#allocation4 + $0x70] sm:$0xff] %v929
      %946 = vst [vmem:[#allocation4 + $0x78] sm:$0xff] %v930
      %v947 = vld [vmem:[%s285] sm:$0xff]
      %v948 = vld [vmem:[%s285 + $0x10] sm:$0xff]
      %v949 = vld [vmem:[%s285 + $0x20] sm:$0xff]
      %v950 = vld [vmem:[%s285 + $0x30] sm:$0xff]
      %v951 = vld [vmem:[%s285 + $0x40] sm:$0xff]
      %v952 = vld [vmem:[%s285 + $0x50] sm:$0xff]
      %v953 = vld [vmem:[%s285 + $0x60] sm:$0xff]
      %v954 = vld [vmem:[%s285 + $0x70] sm:$0xff]
      %v955 = vld [vmem:[%s285 + $0xa0] sm:$0xff]
      %v956 = vld [vmem:[%s285 + $0xb0] sm:$0xff]
      %v957 = vld [vmem:[%s285 + $0xc0] sm:$0xff]
      %v958 = vld [vmem:[%s285 + $0xd0] sm:$0xff]
      %v959 = vld [vmem:[%s285 + $0xe0] sm:$0xff]
      %v960 = vld [vmem:[%s285 + $0xf0] sm:$0xff]
      %v961 = vld [vmem:[%s285 + $0x100] sm:$0xff]
      %v962 = vld [vmem:[%s285 + $0x110] sm:$0xff]
      %s963 = scalar_lea.vmem %s176, 384
      %v964 = vld [vmem:[%s963] sm:$0xff]
      %v965 = vld [vmem:[%s963 + $0x8] sm:$0xff]
      %v966 = vld [vmem:[%s963 + $0x10] sm:$0xff]
      %v967 = vld [vmem:[%s963 + $0x18] sm:$0xff]
      %v968 = vld [vmem:[%s963 + $0x20] sm:$0xff]
      %v969 = vld [vmem:[%s963 + $0x28] sm:$0xff]
      %v970 = vld [vmem:[%s963 + $0x30] sm:$0xff]
      %v971 = vld [vmem:[%s963 + $0x38] sm:$0xff]
      %v972 = vld [vmem:[%s963 + $0x40] sm:$0xff]
      %v973 = vld [vmem:[%s963 + $0x48] sm:$0xff]
      %v974 = vld [vmem:[%s963 + $0x50] sm:$0xff]
      %v975 = vld [vmem:[%s963 + $0x58] sm:$0xff]
      %v976 = vld [vmem:[%s963 + $0x60] sm:$0xff]
      %v977 = vld [vmem:[%s963 + $0x68] sm:$0xff]
      %v978 = vld [vmem:[%s963 + $0x70] sm:$0xff]
      %v979 = vld [vmem:[%s963 + $0x78] sm:$0xff]
      %980 = vmatprep.subr.mxu0 0.0
      %981 = vmatpush1.msra.mxu0 %v964
      %982 = vmatprep.subr.mxu0 0.0
      %983 = vmatpush1.msra.mxu0 %v965
      %984 = vmatprep.subr.mxu0 0.0
      %985 = vmatpush1.msra.mxu0 %v966
      %986 = vmatprep.subr.mxu0 0.0
      %987 = vmatpush1.msra.mxu0 %v967
      %988 = vmatprep.subr.mxu0 0.0
      %989 = vmatpush1.msra.mxu0 %v968
      %990 = vmatprep.subr.mxu0 0.0
      %991 = vmatpush1.msra.mxu0 %v969
      %992 = vmatprep.subr.mxu0 0.0
      %993 = vmatpush1.msra.mxu0 %v970
      %994 = vmatprep.subr.mxu0 0.0
      %995 = vmatpush1.msra.mxu0 %v971
      %996 = vmatprep.subr.mxu0 0.0
      %997 = vmatpush1.msra.mxu0 %v972
      %998 = vmatprep.subr.mxu0 0.0
      %999 = vmatpush1.msra.mxu0 %v973
      %1000 = vmatprep.subr.mxu0 0.0
      %1001 = vmatpush1.msra.mxu0 %v974
      %1002 = vmatprep.subr.mxu0 0.0
      %1003 = vmatpush1.msra.mxu0 %v975
      %1004 = vmatprep.subr.mxu0 0.0
      %1005 = vmatpush1.msra.mxu0 %v976
      %1006 = vmatprep.subr.mxu0 0.0
      %1007 = vmatpush1.msra.mxu0 %v977
      %1008 = vmatprep.subr.mxu0 0.0
      %1009 = vmatpush1.msra.mxu0 %v978
      %1010 = vmatprep.subr.mxu0 0.0
      %1011 = vmatpush1.msra.mxu0 %v979
      %1012 = vmatprep.subr.mxu0 0.0
      %1013 = vmatpush1.msra.mxu0 0.0
      %1014 = vmatprep.subr.mxu0 0.0
      %1015 = vmatpush1.msra.mxu0 0.0
      %1016 = vmatprep.subr.mxu0 0.0
      %1017 = vmatpush1.msra.mxu0 0.0
      %1018 = vmatprep.subr.mxu0 0.0
      %1019 = vmatpush1.msra.mxu0 0.0
      %1020 = vmatprep.subr.mxu0 0.0
      %1021 = vmatpush1.msra.mxu0 0.0
      %1022 = vmatprep.subr.mxu0 0.0
      %1023 = vmatpush1.msra.mxu0 0.0
      %1024 = vmatprep.subr.mxu0 0.0
      %1025 = vmatpush1.msra.mxu0 0.0
      %1026 = vmatprep.subr.mxu0 0.0
      %1027 = vmatpush1.msra.mxu0 0.0
      %1028 = vmatprep.subr.mxu0 0.0
      %1029 = vmatpush1.msra.mxu0 0.0
      %1030 = vmatprep.subr.mxu0 0.0
      %1031 = vmatpush1.msra.mxu0 0.0
      %1032 = vmatprep.subr.mxu0 0.0
      %1033 = vmatpush1.msra.mxu0 0.0
      %1034 = vmatprep.subr.mxu0 0.0
      %1035 = vmatpush1.msra.mxu0 0.0
      %1036 = vmatprep.subr.mxu0 0.0
      %1037 = vmatpush1.msra.mxu0 0.0
      %1038 = vmatprep.subr.mxu0 0.0
      %1039 = vmatpush1.msra.mxu0 0.0
      %1040 = vmatprep.subr.mxu0 0.0
      %1041 = vmatpush1.msra.mxu0 0.0
      %1042 = vmatprep.subr.mxu0 0.0
      %1043 = vmatpush1.msra.mxu0 0.0
      %1044 = vmatprep.mubr.f32.mxu0 0.0
      %1045 = vmatmul.mubr.f32.gmra.mrb[0].mxu0 %v947
      %v1046 = vpop.f32.mrb[0].mxu0
      %v1047 = vadd.f32 0.0, %v1046
      %v1048 = vpop.f32.mrb[0].mxu0
      %1049 = vmatprep.mubr.f32.mxu0 0.0
      %1050 = vmatmul.mubr.f32.gmra.mrb[0].mxu0 %v948
      %v1051 = vpop.f32.mrb[0].mxu0
      %v1052 = vadd.f32 0.0, %v1051
      %v1053 = vpop.f32.mrb[0].mxu0
      %1054 = vmatprep.mubr.f32.mxu0 0.0
      %1055 = vmatmul.mubr.f32.gmra.mrb[0].mxu0 %v949
      %v1056 = vpop.f32.mrb[0].mxu0
      %v1057 = vadd.f32 0.0, %v1056
      %v1058 = vpop.f32.mrb[0].mxu0
      %1059 = vmatprep.mubr.f32.mxu0 0.0
      %1060 = vmatmul.mubr.f32.gmra.mrb[0].mxu0 %v950
      %v1061 = vpop.f32.mrb[0].mxu0
      %v1062 = vadd.f32 0.0, %v1061
      %v1063 = vpop.f32.mrb[0].mxu0
      %1064 = vmatprep.mubr.f32.mxu0 0.0
      %1065 = vmatmul.mubr.f32.gmra.mrb[0].mxu0 %v951
      %v1066 = vpop.f32.mrb[0].mxu0
      %v1067 = vadd.f32 0.0, %v1066
      %v1068 = vpop.f32.mrb[0].mxu0
      %1069 = vmatprep.mubr.f32.mxu0 0.0
      %1070 = vmatmul.mubr.f32.gmra.mrb[0].mxu0 %v952
      %v1071 = vpop.f32.mrb[0].mxu0
      %v1072 = vadd.f32 0.0, %v1071
      %v1073 = vpop.f32.mrb[0].mxu0
      %1074 = vmatprep.mubr.f32.mxu0 0.0
      %1075 = vmatmul.mubr.f32.gmra.mrb[0].mxu0 %v953
      %v1076 = vpop.f32.mrb[0].mxu0
      %v1077 = vadd.f32 0.0, %v1076
      %v1078 = vpop.f32.mrb[0].mxu0
      %1079 = vmatprep.mubr.f32.mxu0 0.0
      %1080 = vmatmul.mubr.f32.gmra.mrb[0].mxu0 %v954
      %v1081 = vpop.f32.mrb[0].mxu0
      %v1082 = vadd.f32 0.0, %v1081
      %v1083 = vpop.f32.mrb[0].mxu0
      %1084 = vmatprep.mubr.f32.mxu0 0.0
      %1085 = vmatmul.mubr.f32.gmra.mrb[0].mxu0 %v955
      %v1086 = vpop.f32.mrb[0].mxu0
      %v1087 = vadd.f32 0.0, %v1086
      %v1088 = vpop.f32.mrb[0].mxu0
      %1089 = vmatprep.mubr.f32.mxu0 0.0
      %1090 = vmatmul.mubr.f32.gmra.mrb[0].mxu0 %v956
      %v1091 = vpop.f32.mrb[0].mxu0
      %v1092 = vadd.f32 0.0, %v1091
      %v1093 = vpop.f32.mrb[0].mxu0
      %1094 = vmatprep.mubr.f32.mxu0 0.0
      %1095 = vmatmul.mubr.f32.gmra.mrb[0].mxu0 %v957
      %v1096 = vpop.f32.mrb[0].mxu0
      %v1097 = vadd.f32 0.0, %v1096
      %v1098 = vpop.f32.mrb[0].mxu0
      %1099 = vmatprep.mubr.f32.mxu0 0.0
      %1100 = vmatmul.mubr.f32.gmra.mrb[0].mxu0 %v958
      %v1101 = vpop.f32.mrb[0].mxu0
      %v1102 = vadd.f32 0.0, %v1101
      %v1103 = vpop.f32.mrb[0].mxu0
      %1104 = vmatprep.mubr.f32.mxu0 0.0
      %1105 = vmatmul.mubr.f32.gmra.mrb[0].mxu0 %v959
      %v1106 = vpop.f32.mrb[0].mxu0
      %v1107 = vadd.f32 0.0, %v1106
      %v1108 = vpop.f32.mrb[0].mxu0
      %1109 = vmatprep.mubr.f32.mxu0 0.0
      %1110 = vmatmul.mubr.f32.gmra.mrb[0].mxu0 %v960
      %v1111 = vpop.f32.mrb[0].mxu0
      %v1112 = vadd.f32 0.0, %v1111
      %v1113 = vpop.f32.mrb[0].mxu0
      %1114 = vmatprep.mubr.f32.mxu0 0.0
      %1115 = vmatmul.mubr.f32.gmra.mrb[0].mxu0 %v961
      %v1116 = vpop.f32.mrb[0].mxu0
      %v1117 = vadd.f32 0.0, %v1116
      %v1118 = vpop.f32.mrb[0].mxu0
      %1119 = vmatprep.mubr.f32.mxu0 0.0
      %1120 = vmatmul.mubr.f32.gmra.mrb[0].mxu0 %v962
      %v1121 = vpop.f32.mrb[0].mxu0
      %v1122 = vadd.f32 0.0, %v1121
      %v1123 = vpop.f32.mrb[0].mxu0
      %1124 = vdwg.mxu0
      %v1125 = vld [vmem:[#allocation4] sm:$0xff]
      %v1126 = vld [vmem:[#allocation4 + $0x8] sm:$0xff]
      %v1127 = vld [vmem:[#allocation4 + $0x10] sm:$0xff]
      %v1128 = vld [vmem:[#allocation4 + $0x18] sm:$0xff]
      %v1129 = vld [vmem:[#allocation4 + $0x20] sm:$0xff]
      %v1130 = vld [vmem:[#allocation4 + $0x28] sm:$0xff]
      %v1131 = vld [vmem:[#allocation4 + $0x30] sm:$0xff]
      %v1132 = vld [vmem:[#allocation4 + $0x38] sm:$0xff]
      %v1133 = vld [vmem:[#allocation4 + $0x40] sm:$0xff]
      %v1134 = vld [vmem:[#allocation4 + $0x48] sm:$0xff]
      %v1135 = vld [vmem:[#allocation4 + $0x50] sm:$0xff]
      %v1136 = vld [vmem:[#allocation4 + $0x58] sm:$0xff]
      %v1137 = vld [vmem:[#allocation4 + $0x60] sm:$0xff]
      %v1138 = vld [vmem:[#allocation4 + $0x68] sm:$0xff]
      %v1139 = vld [vmem:[#allocation4 + $0x70] sm:$0xff]
      %v1140 = vld [vmem:[#allocation4 + $0x78] sm:$0xff]
      %v1141 = vadd.f32 %v1125, %v1047
      %v1142 = vadd.f32 %v1126, %v1052
      %v1143 = vadd.f32 %v1127, %v1057
      %v1144 = vadd.f32 %v1128, %v1062
      %v1145 = vadd.f32 %v1129, %v1067
      %v1146 = vadd.f32 %v1130, %v1072
      %v1147 = vadd.f32 %v1131, %v1077
      %v1148 = vadd.f32 %v1132, %v1082
      %v1149 = vadd.f32 %v1133, %v1087
      %v1150 = vadd.f32 %v1134, %v1092
      %v1151 = vadd.f32 %v1135, %v1097
      %v1152 = vadd.f32 %v1136, %v1102
      %v1153 = vadd.f32 %v1137, %v1107
      %v1154 = vadd.f32 %v1138, %v1112
      %v1155 = vadd.f32 %v1139, %v1117
      %v1156 = vadd.f32 %v1140, %v1122
      %1157 = vst [vmem:[#allocation4] sm:$0xff] %v1141
      %1158 = vst [vmem:[#allocation4 + $0x8] sm:$0xff] %v1142
      %1159 = vst [vmem:[#allocation4 + $0x10] sm:$0xff] %v1143
      %1160 = vst [vmem:[#allocation4 + $0x18] sm:$0xff] %v1144
      %1161 = vst [vmem:[#allocation4 + $0x20] sm:$0xff] %v1145
      %1162 = vst [vmem:[#allocation4 + $0x28] sm:$0xff] %v1146
      %1163 = vst [vmem:[#allocation4 + $0x30] sm:$0xff] %v1147
      %1164 = vst [vmem:[#allocation4 + $0x38] sm:$0xff] %v1148
      %1165 = vst [vmem:[#allocation4 + $0x40] sm:$0xff] %v1149
      %1166 = vst [vmem:[#allocation4 + $0x48] sm:$0xff] %v1150
      %1167 = vst [vmem:[#allocation4 + $0x50] sm:$0xff] %v1151
      %1168 = vst [vmem:[#allocation4 + $0x58] sm:$0xff] %v1152
      %1169 = vst [vmem:[#allocation4 + $0x60] sm:$0xff] %v1153
      %1170 = vst [vmem:[#allocation4 + $0x68] sm:$0xff] %v1154
      %1171 = vst [vmem:[#allocation4 + $0x70] sm:$0xff] %v1155
      %1172 = vst [vmem:[#allocation4 + $0x78] sm:$0xff] %v1156
      %v1173 = vld [vmem:[%s285 + $0x1] sm:$0xff]
      %v1174 = vld [vmem:[%s285 + $0x11] sm:$0xff]
      %v1175 = vld [vmem:[%s285 + $0x21] sm:$0xff]
      %v1176 = vld [vmem:[%s285 + $0x31] sm:$0xff]
      %v1177 = vld [vmem:[%s285 + $0x41] sm:$0xff]
      %v1178 = vld [vmem:[%s285 + $0x51] sm:$0xff]
      %v1179 = vld [vmem:[%s285 + $0x61] sm:$0xff]
      %v1180 = vld [vmem:[%s285 + $0x71] sm:$0xff]
      %v1181 = vld [vmem:[%s285 + $0xa1] sm:$0xff]
      %v1182 = vld [vmem:[%s285 + $0xb1] sm:$0xff]
      %v1183 = vld [vmem:[%s285 + $0xc1] sm:$0xff]
      %v1184 = vld [vmem:[%s285 + $0xd1] sm:$0xff]
      %v1185 = vld [vmem:[%s285 + $0xe1] sm:$0xff]
      %v1186 = vld [vmem:[%s285 + $0xf1] sm:$0xff]
      %v1187 = vld [vmem:[%s285 + $0x101] sm:$0xff]
      %v1188 = vld [vmem:[%s285 + $0x111] sm:$0xff]
      %s1189 = scalar_lea.vmem %s176, 512
      %v1190 = vld [vmem:[%s1189] sm:$0xff]
      %v1191 = vld [vmem:[%s1189 + $0x8] sm:$0xff]
      %v1192 = vld [vmem:[%s1189 + $0x10] sm:$0xff]
      %v1193 = vld [vmem:[%s1189 + $0x18] sm:$0xff]
      %v1194 = vld [vmem:[%s1189 + $0x20] sm:$0xff]
      %v1195 = vld [vmem:[%s1189 + $0x28] sm:$0xff]
      %v1196 = vld [vmem:[%s1189 + $0x30] sm:$0xff]
      %v1197 = vld [vmem:[%s1189 + $0x38] sm:$0xff]
      %v1198 = vld [vmem:[%s1189 + $0x40] sm:$0xff]
      %v1199 = vld [vmem:[%s1189 + $0x48] sm:$0xff]
      %v1200 = vld [vmem:[%s1189 + $0x50] sm:$0xff]
      %v1201 = vld [vmem:[%s1189 + $0x58] sm:$0xff]
      %v1202 = vld [vmem:[%s1189 + $0x60] sm:$0xff]
      %v1203 = vld [vmem:[%s1189 + $0x68] sm:$0xff]
      %v1204 = vld [vmem:[%s1189 + $0x70] sm:$0xff]
      %v1205 = vld [vmem:[%s1189 + $0x78] sm:$0xff]
      %1206 = vmatprep.subr.mxu0 0.0
      %1207 = vmatpush1.msra.mxu0 %v1190
      %1208 = vmatprep.subr.mxu0 0.0
      %1209 = vmatpush1.msra.mxu0 %v1191
      %1210 = vmatprep.subr.mxu0 0.0
      %1211 = vmatpush1.msra.mxu0 %v1192
      %1212 = vmatprep.subr.mxu0 0.0
      %1213 = vmatpush1.msra.mxu0 %v1193
      %1214 = vmatprep.subr.mxu0 0.0
      %1215 = vmatpush1.msra.mxu0 %v1194
      %1216 = vmatprep.subr.mxu0 0.0
      %1217 = vmatpush1.msra.mxu0 %v1195
      %1218 = vmatprep.subr.mxu0 0.0
      %1219 = vmatpush1.msra.mxu0 %v1196
      %1220 = vmatprep.subr.mxu0 0.0
      %1221 = vmatpush1.msra.mxu0 %v1197
      %1222 = vmatprep.subr.mxu0 0.0
      %1223 = vmatpush1.msra.mxu0 %v1198
      %1224 = vmatprep.subr.mxu0 0.0
      %1225 = vmatpush1.msra.mxu0 %v1199
      %1226 = vmatprep.subr.mxu0 0.0
      %1227 = vmatpush1.msra.mxu0 %v1200
      %1228 = vmatprep.subr.mxu0 0.0
      %1229 = vmatpush1.msra.mxu0 %v1201
      %1230 = vmatprep.subr.mxu0 0.0
      %1231 = vmatpush1.msra.mxu0 %v1202
      %1232 = vmatprep.subr.mxu0 0.0
      %1233 = vmatpush1.msra.mxu0 %v1203
      %1234 = vmatprep.subr.mxu0 0.0
      %1235 = vmatpush1.msra.mxu0 %v1204
      %1236 = vmatprep.subr.mxu0 0.0
      %1237 = vmatpush1.msra.mxu0 %v1205
      %1238 = vmatprep.subr.mxu0 0.0
      %1239 = vmatpush1.msra.mxu0 0.0
      %1240 = vmatprep.subr.mxu0 0.0
      %1241 = vmatpush1.msra.mxu0 0.0
      %1242 = vmatprep.subr.mxu0 0.0
      %1243 = vmatpush1.msra.mxu0 0.0
      %1244 = vmatprep.subr.mxu0 0.0
      %1245 = vmatpush1.msra.mxu0 0.0
      %1246 = vmatprep.subr.mxu0 0.0
      %1247 = vmatpush1.msra.mxu0 0.0
      %1248 = vmatprep.subr.mxu0 0.0
      %1249 = vmatpush1.msra.mxu0 0.0
      %1250 = vmatprep.subr.mxu0 0.0
      %1251 = vmatpush1.msra.mxu0 0.0
      %1252 = vmatprep.subr.mxu0 0.0
      %1253 = vmatpush1.msra.mxu0 0.0
      %1254 = vmatprep.subr.mxu0 0.0
      %1255 = vmatpush1.msra.mxu0 0.0
      %1256 = vmatprep.subr.mxu0 0.0
      %1257 = vmatpush1.msra.mxu0 0.0
      %1258 = vmatprep.subr.mxu0 0.0
      %1259 = vmatpush1.msra.mxu0 0.0
      %1260 = vmatprep.subr.mxu0 0.0
      %1261 = vmatpush1.msra.mxu0 0.0
      %1262 = vmatprep.subr.mxu0 0.0
      %1263 = vmatpush1.msra.mxu0 0.0
      %1264 = vmatprep.subr.mxu0 0.0
      %1265 = vmatpush1.msra.mxu0 0.0
      %1266 = vmatprep.subr.mxu0 0.0
      %1267 = vmatpush1.msra.mxu0 0.0
      %1268 = vmatprep.subr.mxu0 0.0
      %1269 = vmatpush1.msra.mxu0 0.0
      %1270 = vmatprep.mubr.f32.mxu0 0.0
      %1271 = vmatmul.mubr.f32.gmra.mrb[0].mxu0 %v1173
      %v1272 = vpop.f32.mrb[0].mxu0
      %v1273 = vadd.f32 0.0, %v1272
      %v1274 = vpop.f32.mrb[0].mxu0
      %1275 = vmatprep.mubr.f32.mxu0 0.0
      %1276 = vmatmul.mubr.f32.gmra.mrb[0].mxu0 %v1174
      %v1277 = vpop.f32.mrb[0].mxu0
      %v1278 = vadd.f32 0.0, %v1277
      %v1279 = vpop.f32.mrb[0].mxu0
      %1280 = vmatprep.mubr.f32.mxu0 0.0
      %1281 = vmatmul.mubr.f32.gmra.mrb[0].mxu0 %v1175
      %v1282 = vpop.f32.mrb[0].mxu0
      %v1283 = vadd.f32 0.0, %v1282
      %v1284 = vpop.f32.mrb[0].mxu0
      %1285 = vmatprep.mubr.f32.mxu0 0.0
      %1286 = vmatmul.mubr.f32.gmra.mrb[0].mxu0 %v1176
      %v1287 = vpop.f32.mrb[0].mxu0
      %v1288 = vadd.f32 0.0, %v1287
      %v1289 = vpop.f32.mrb[0].mxu0
      %1290 = vmatprep.mubr.f32.mxu0 0.0
      %1291 = vmatmul.mubr.f32.gmra.mrb[0].mxu0 %v1177
      %v1292 = vpop.f32.mrb[0].mxu0
      %v1293 = vadd.f32 0.0, %v1292
      %v1294 = vpop.f32.mrb[0].mxu0
      %1295 = vmatprep.mubr.f32.mxu0 0.0
      %1296 = vmatmul.mubr.f32.gmra.mrb[0].mxu0 %v1178
      %v1297 = vpop.f32.mrb[0].mxu0
      %v1298 = vadd.f32 0.0, %v1297
      %v1299 = vpop.f32.mrb[0].mxu0
      %1300 = vmatprep.mubr.f32.mxu0 0.0
      %1301 = vmatmul.mubr.f32.gmra.mrb[0].mxu0 %v1179
      %v1302 = vpop.f32.mrb[0].mxu0
      %v1303 = vadd.f32 0.0, %v1302
      %v1304 = vpop.f32.mrb[0].mxu0
      %1305 = vmatprep.mubr.f32.mxu0 0.0
      %1306 = vmatmul.mubr.f32.gmra.mrb[0].mxu0 %v1180
      %v1307 = vpop.f32.mrb[0].mxu0
      %v1308 = vadd.f32 0.0, %v1307
      %v1309 = vpop.f32.mrb[0].mxu0
      %1310 = vmatprep.mubr.f32.mxu0 0.0
      %1311 = vmatmul.mubr.f32.gmra.mrb[0].mxu0 %v1181
      %v1312 = vpop.f32.mrb[0].mxu0
      %v1313 = vadd.f32 0.0, %v1312
      %v1314 = vpop.f32.mrb[0].mxu0
      %1315 = vmatprep.mubr.f32.mxu0 0.0
      %1316 = vmatmul.mubr.f32.gmra.mrb[0].mxu0 %v1182
      %v1317 = vpop.f32.mrb[0].mxu0
      %v1318 = vadd.f32 0.0, %v1317
      %v1319 = vpop.f32.mrb[0].mxu0
      %1320 = vmatprep.mubr.f32.mxu0 0.0
      %1321 = vmatmul.mubr.f32.gmra.mrb[0].mxu0 %v1183
      %v1322 = vpop.f32.mrb[0].mxu0
      %v1323 = vadd.f32 0.0, %v1322
      %v1324 = vpop.f32.mrb[0].mxu0
      %1325 = vmatprep.mubr.f32.mxu0 0.0
      %1326 = vmatmul.mubr.f32.gmra.mrb[0].mxu0 %v1184
      %v1327 = vpop.f32.mrb[0].mxu0
      %v1328 = vadd.f32 0.0, %v1327
      %v1329 = vpop.f32.mrb[0].mxu0
      %1330 = vmatprep.mubr.f32.mxu0 0.0
      %1331 = vmatmul.mubr.f32.gmra.mrb[0].mxu0 %v1185
      %v1332 = vpop.f32.mrb[0].mxu0
      %v1333 = vadd.f32 0.0, %v1332
      %v1334 = vpop.f32.mrb[0].mxu0
      %1335 = vmatprep.mubr.f32.mxu0 0.0
      %1336 = vmatmul.mubr.f32.gmra.mrb[0].mxu0 %v1186
      %v1337 = vpop.f32.mrb[0].mxu0
      %v1338 = vadd.f32 0.0, %v1337
      %v1339 = vpop.f32.mrb[0].mxu0
      %1340 = vmatprep.mubr.f32.mxu0 0.0
      %1341 = vmatmul.mubr.f32.gmra.mrb[0].mxu0 %v1187
      %v1342 = vpop.f32.mrb[0].mxu0
      %v1343 = vadd.f32 0.0, %v1342
      %v1344 = vpop.f32.mrb[0].mxu0
      %1345 = vmatprep.mubr.f32.mxu0 0.0
      %1346 = vmatmul.mubr.f32.gmra.mrb[0].mxu0 %v1188
      %v1347 = vpop.f32.mrb[0].mxu0
      %v1348 = vadd.f32 0.0, %v1347
      %v1349 = vpop.f32.mrb[0].mxu0
      %1350 = vdwg.mxu0
      %v1351 = vld [vmem:[#allocation4] sm:$0xff]
      %v1352 = vld [vmem:[#allocation4 + $0x8] sm:$0xff]
      %v1353 = vld [vmem:[#allocation4 + $0x10] sm:$0xff]
      %v1354 = vld [vmem:[#allocation4 + $0x18] sm:$0xff]
      %v1355 = vld [vmem:[#allocation4 + $0x20] sm:$0xff]
      %v1356 = vld [vmem:[#allocation4 + $0x28] sm:$0xff]
      %v1357 = vld [vmem:[#allocation4 + $0x30] sm:$0xff]
      %v1358 = vld [vmem:[#allocation4 + $0x38] sm:$0xff]
      %v1359 = vld [vmem:[#allocation4 + $0x40] sm:$0xff]
      %v1360 = vld [vmem:[#allocation4 + $0x48] sm:$0xff]
      %v1361 = vld [vmem:[#allocation4 + $0x50] sm:$0xff]
      %v1362 = vld [vmem:[#allocation4 + $0x58] sm:$0xff]
      %v1363 = vld [vmem:[#allocation4 + $0x60] sm:$0xff]
      %v1364 = vld [vmem:[#allocation4 + $0x68] sm:$0xff]
      %v1365 = vld [vmem:[#allocation4 + $0x70] sm:$0xff]
      %v1366 = vld [vmem:[#allocation4 + $0x78] sm:$0xff]
      %v1367 = vadd.f32 %v1351, %v1273
      %v1368 = vadd.f32 %v1352, %v1278
      %v1369 = vadd.f32 %v1353, %v1283
      %v1370 = vadd.f32 %v1354, %v1288
      %v1371 = vadd.f32 %v1355, %v1293
      %v1372 = vadd.f32 %v1356, %v1298
      %v1373 = vadd.f32 %v1357, %v1303
      %v1374 = vadd.f32 %v1358, %v1308
      %v1375 = vadd.f32 %v1359, %v1313
      %v1376 = vadd.f32 %v1360, %v1318
      %v1377 = vadd.f32 %v1361, %v1323
      %v1378 = vadd.f32 %v1362, %v1328
      %v1379 = vadd.f32 %v1363, %v1333
      %v1380 = vadd.f32 %v1364, %v1338
      %v1381 = vadd.f32 %v1365, %v1343
      %v1382 = vadd.f32 %v1366, %v1348
      %1383 = vst [vmem:[#allocation4] sm:$0xff] %v1367
      %1384 = vst [vmem:[#allocation4 + $0x8] sm:$0xff] %v1368
      %1385 = vst [vmem:[#allocation4 + $0x10] sm:$0xff] %v1369
      %1386 = vst [vmem:[#allocation4 + $0x18] sm:$0xff] %v1370
      %1387 = vst [vmem:[#allocation4 + $0x20] sm:$0xff] %v1371
      %1388 = vst [vmem:[#allocation4 + $0x28] sm:$0xff] %v1372
      %1389 = vst [vmem:[#allocation4 + $0x30] sm:$0xff] %v1373
      %1390 = vst [vmem:[#allocation4 + $0x38] sm:$0xff] %v1374
      %1391 = vst [vmem:[#allocation4 + $0x40] sm:$0xff] %v1375
      %1392 = vst [vmem:[#allocation4 + $0x48] sm:$0xff] %v1376
      %1393 = vst [vmem:[#allocation4 + $0x50] sm:$0xff] %v1377
      %1394 = vst [vmem:[#allocation4 + $0x58] sm:$0xff] %v1378
      %1395 = vst [vmem:[#allocation4 + $0x60] sm:$0xff] %v1379
      %1396 = vst [vmem:[#allocation4 + $0x68] sm:$0xff] %v1380
      %1397 = vst [vmem:[#allocation4 + $0x70] sm:$0xff] %v1381
      %1398 = vst [vmem:[#allocation4 + $0x78] sm:$0xff] %v1382
      %v1399 = vld [vmem:[%s285 + $0x2] sm:$0xff]
      %v1400 = vld [vmem:[%s285 + $0x12] sm:$0xff]
      %v1401 = vld [vmem:[%s285 + $0x22] sm:$0xff]
      %v1402 = vld [vmem:[%s285 + $0x32] sm:$0xff]
      %v1403 = vld [vmem:[%s285 + $0x42] sm:$0xff]
      %v1404 = vld [vmem:[%s285 + $0x52] sm:$0xff]
      %v1405 = vld [vmem:[%s285 + $0x62] sm:$0xff]
      %v1406 = vld [vmem:[%s285 + $0x72] sm:$0xff]
      %v1407 = vld [vmem:[%s285 + $0xa2] sm:$0xff]
      %v1408 = vld [vmem:[%s285 + $0xb2] sm:$0xff]
      %v1409 = vld [vmem:[%s285 + $0xc2] sm:$0xff]
      %v1410 = vld [vmem:[%s285 + $0xd2] sm:$0xff]
      %v1411 = vld [vmem:[%s285 + $0xe2] sm:$0xff]
      %v1412 = vld [vmem:[%s285 + $0xf2] sm:$0xff]
      %v1413 = vld [vmem:[%s285 + $0x102] sm:$0xff]
      %v1414 = vld [vmem:[%s285 + $0x112] sm:$0xff]
      %s1415 = scalar_lea.vmem %s176, 640
      %v1416 = vld [vmem:[%s1415] sm:$0xff]
      %v1417 = vld [vmem:[%s1415 + $0x8] sm:$0xff]
      %v1418 = vld [vmem:[%s1415 + $0x10] sm:$0xff]
      %v1419 = vld [vmem:[%s1415 + $0x18] sm:$0xff]
      %v1420 = vld [vmem:[%s1415 + $0x20] sm:$0xff]
      %v1421 = vld [vmem:[%s1415 + $0x28] sm:$0xff]
      %v1422 = vld [vmem:[%s1415 + $0x30] sm:$0xff]
      %v1423 = vld [vmem:[%s1415 + $0x38] sm:$0xff]
      %v1424 = vld [vmem:[%s1415 + $0x40] sm:$0xff]
      %v1425 = vld [vmem:[%s1415 + $0x48] sm:$0xff]
      %v1426 = vld [vmem:[%s1415 + $0x50] sm:$0xff]
      %v1427 = vld [vmem:[%s1415 + $0x58] sm:$0xff]
      %v1428 = vld [vmem:[%s1415 + $0x60] sm:$0xff]
      %v1429 = vld [vmem:[%s1415 + $0x68] sm:$0xff]
      %v1430 = vld [vmem:[%s1415 + $0x70] sm:$0xff]
      %v1431 = vld [vmem:[%s1415 + $0x78] sm:$0xff]
      %1432 = vmatprep.subr.mxu0 0.0
      %1433 = vmatpush1.msra.mxu0 %v1416
      %1434 = vmatprep.subr.mxu0 0.0
      %1435 = vmatpush1.msra.mxu0 %v1417
      %1436 = vmatprep.subr.mxu0 0.0
      %1437 = vmatpush1.msra.mxu0 %v1418
      %1438 = vmatprep.subr.mxu0 0.0
      %1439 = vmatpush1.msra.mxu0 %v1419
      %1440 = vmatprep.subr.mxu0 0.0
      %1441 = vmatpush1.msra.mxu0 %v1420
      %1442 = vmatprep.subr.mxu0 0.0
      %1443 = vmatpush1.msra.mxu0 %v1421
      %1444 = vmatprep.subr.mxu0 0.0
      %1445 = vmatpush1.msra.mxu0 %v1422
      %1446 = vmatprep.subr.mxu0 0.0
      %1447 = vmatpush1.msra.mxu0 %v1423
      %1448 = vmatprep.subr.mxu0 0.0
      %1449 = vmatpush1.msra.mxu0 %v1424
      %1450 = vmatprep.subr.mxu0 0.0
      %1451 = vmatpush1.msra.mxu0 %v1425
      %1452 = vmatprep.subr.mxu0 0.0
      %1453 = vmatpush1.msra.mxu0 %v1426
      %1454 = vmatprep.subr.mxu0 0.0
      %1455 = vmatpush1.msra.mxu0 %v1427
      %1456 = vmatprep.subr.mxu0 0.0
      %1457 = vmatpush1.msra.mxu0 %v1428
      %1458 = vmatprep.subr.mxu0 0.0
      %1459 = vmatpush1.msra.mxu0 %v1429
      %1460 = vmatprep.subr.mxu0 0.0
      %1461 = vmatpush1.msra.mxu0 %v1430
      %1462 = vmatprep.subr.mxu0 0.0
      %1463 = vmatpush1.msra.mxu0 %v1431
      %1464 = vmatprep.subr.mxu0 0.0
      %1465 = vmatpush1.msra.mxu0 0.0
      %1466 = vmatprep.subr.mxu0 0.0
      %1467 = vmatpush1.msra.mxu0 0.0
      %1468 = vmatprep.subr.mxu0 0.0
      %1469 = vmatpush1.msra.mxu0 0.0
      %1470 = vmatprep.subr.mxu0 0.0
      %1471 = vmatpush1.msra.mxu0 0.0
      %1472 = vmatprep.subr.mxu0 0.0
      %1473 = vmatpush1.msra.mxu0 0.0
      %1474 = vmatprep.subr.mxu0 0.0
      %1475 = vmatpush1.msra.mxu0 0.0
      %1476 = vmatprep.subr.mxu0 0.0
      %1477 = vmatpush1.msra.mxu0 0.0
      %1478 = vmatprep.subr.mxu0 0.0
      %1479 = vmatpush1.msra.mxu0 0.0
      %1480 = vmatprep.subr.mxu0 0.0
      %1481 = vmatpush1.msra.mxu0 0.0
      %1482 = vmatprep.subr.mxu0 0.0
      %1483 = vmatpush1.msra.mxu0 0.0
      %1484 = vmatprep.subr.mxu0 0.0
      %1485 = vmatpush1.msra.mxu0 0.0
      %1486 = vmatprep.subr.mxu0 0.0
      %1487 = vmatpush1.msra.mxu0 0.0
      %1488 = vmatprep.subr.mxu0 0.0
      %1489 = vmatpush1.msra.mxu0 0.0
      %1490 = vmatprep.subr.mxu0 0.0
      %1491 = vmatpush1.msra.mxu0 0.0
      %1492 = vmatprep.subr.mxu0 0.0
      %1493 = vmatpush1.msra.mxu0 0.0
      %1494 = vmatprep.subr.mxu0 0.0
      %1495 = vmatpush1.msra.mxu0 0.0
      %1496 = vmatprep.mubr.f32.mxu0 0.0
      %1497 = vmatmul.mubr.f32.gmra.mrb[0].mxu0 %v1399
      %v1498 = vpop.f32.mrb[0].mxu0
      %v1499 = vadd.f32 0.0, %v1498
      %v1500 = vpop.f32.mrb[0].mxu0
      %1501 = vmatprep.mubr.f32.mxu0 0.0
      %1502 = vmatmul.mubr.f32.gmra.mrb[0].mxu0 %v1400
      %v1503 = vpop.f32.mrb[0].mxu0
      %v1504 = vadd.f32 0.0, %v1503
      %v1505 = vpop.f32.mrb[0].mxu0
      %1506 = vmatprep.mubr.f32.mxu0 0.0
      %1507 = vmatmul.mubr.f32.gmra.mrb[0].mxu0 %v1401
      %v1508 = vpop.f32.mrb[0].mxu0
      %v1509 = vadd.f32 0.0, %v1508
      %v1510 = vpop.f32.mrb[0].mxu0
      %1511 = vmatprep.mubr.f32.mxu0 0.0
      %1512 = vmatmul.mubr.f32.gmra.mrb[0].mxu0 %v1402
      %v1513 = vpop.f32.mrb[0].mxu0
      %v1514 = vadd.f32 0.0, %v1513
      %v1515 = vpop.f32.mrb[0].mxu0
      %1516 = vmatprep.mubr.f32.mxu0 0.0
      %1517 = vmatmul.mubr.f32.gmra.mrb[0].mxu0 %v1403
      %v1518 = vpop.f32.mrb[0].mxu0
      %v1519 = vadd.f32 0.0, %v1518
      %v1520 = vpop.f32.mrb[0].mxu0
      %1521 = vmatprep.mubr.f32.mxu0 0.0
      %1522 = vmatmul.mubr.f32.gmra.mrb[0].mxu0 %v1404
      %v1523 = vpop.f32.mrb[0].mxu0
      %v1524 = vadd.f32 0.0, %v1523
      %v1525 = vpop.f32.mrb[0].mxu0
      %1526 = vmatprep.mubr.f32.mxu0 0.0
      %1527 = vmatmul.mubr.f32.gmra.mrb[0].mxu0 %v1405
      %v1528 = vpop.f32.mrb[0].mxu0
      %v1529 = vadd.f32 0.0, %v1528
      %v1530 = vpop.f32.mrb[0].mxu0
      %1531 = vmatprep.mubr.f32.mxu0 0.0
      %1532 = vmatmul.mubr.f32.gmra.mrb[0].mxu0 %v1406
      %v1533 = vpop.f32.mrb[0].mxu0
      %v1534 = vadd.f32 0.0, %v1533
      %v1535 = vpop.f32.mrb[0].mxu0
      %1536 = vmatprep.mubr.f32.mxu0 0.0
      %1537 = vmatmul.mubr.f32.gmra.mrb[0].mxu0 %v1407
      %v1538 = vpop.f32.mrb[0].mxu0
      %v1539 = vadd.f32 0.0, %v1538
      %v1540 = vpop.f32.mrb[0].mxu0
      %1541 = vmatprep.mubr.f32.mxu0 0.0
      %1542 = vmatmul.mubr.f32.gmra.mrb[0].mxu0 %v1408
      %v1543 = vpop.f32.mrb[0].mxu0
      %v1544 = vadd.f32 0.0, %v1543
      %v1545 = vpop.f32.mrb[0].mxu0
      %1546 = vmatprep.mubr.f32.mxu0 0.0
      %1547 = vmatmul.mubr.f32.gmra.mrb[0].mxu0 %v1409
      %v1548 = vpop.f32.mrb[0].mxu0
      %v1549 = vadd.f32 0.0, %v1548
      %v1550 = vpop.f32.mrb[0].mxu0
      %1551 = vmatprep.mubr.f32.mxu0 0.0
      %1552 = vmatmul.mubr.f32.gmra.mrb[0].mxu0 %v1410
      %v1553 = vpop.f32.mrb[0].mxu0
      %v1554 = vadd.f32 0.0, %v1553
      %v1555 = vpop.f32.mrb[0].mxu0
      %1556 = vmatprep.mubr.f32.mxu0 0.0
      %1557 = vmatmul.mubr.f32.gmra.mrb[0].mxu0 %v1411
      %v1558 = vpop.f32.mrb[0].mxu0
      %v1559 = vadd.f32 0.0, %v1558
      %v1560 = vpop.f32.mrb[0].mxu0
      %1561 = vmatprep.mubr.f32.mxu0 0.0
      %1562 = vmatmul.mubr.f32.gmra.mrb[0].mxu0 %v1412
      %v1563 = vpop.f32.mrb[0].mxu0
      %v1564 = vadd.f32 0.0, %v1563
      %v1565 = vpop.f32.mrb[0].mxu0
      %1566 = vmatprep.mubr.f32.mxu0 0.0
      %1567 = vmatmul.mubr.f32.gmra.mrb[0].mxu0 %v1413
      %v1568 = vpop.f32.mrb[0].mxu0
      %v1569 = vadd.f32 0.0, %v1568
      %v1570 = vpop.f32.mrb[0].mxu0
      %1571 = vmatprep.mubr.f32.mxu0 0.0
      %1572 = vmatmul.mubr.f32.gmra.mrb[0].mxu0 %v1414
      %v1573 = vpop.f32.mrb[0].mxu0
      %v1574 = vadd.f32 0.0, %v1573
      %v1575 = vpop.f32.mrb[0].mxu0
      %1576 = vdwg.mxu0
      %v1577 = vld [vmem:[#allocation4] sm:$0xff]
      %v1578 = vld [vmem:[#allocation4 + $0x8] sm:$0xff]
      %v1579 = vld [vmem:[#allocation4 + $0x10] sm:$0xff]
      %v1580 = vld [vmem:[#allocation4 + $0x18] sm:$0xff]
      %v1581 = vld [vmem:[#allocation4 + $0x20] sm:$0xff]
      %v1582 = vld [vmem:[#allocation4 + $0x28] sm:$0xff]
      %v1583 = vld [vmem:[#allocation4 + $0x30] sm:$0xff]
      %v1584 = vld [vmem:[#allocation4 + $0x38] sm:$0xff]
      %v1585 = vld [vmem:[#allocation4 + $0x40] sm:$0xff]
      %v1586 = vld [vmem:[#allocation4 + $0x48] sm:$0xff]
      %v1587 = vld [vmem:[#allocation4 + $0x50] sm:$0xff]
      %v1588 = vld [vmem:[#allocation4 + $0x58] sm:$0xff]
      %v1589 = vld [vmem:[#allocation4 + $0x60] sm:$0xff]
      %v1590 = vld [vmem:[#allocation4 + $0x68] sm:$0xff]
      %v1591 = vld [vmem:[#allocation4 + $0x70] sm:$0xff]
      %v1592 = vld [vmem:[#allocation4 + $0x78] sm:$0xff]
      %v1593 = vadd.f32 %v1577, %v1499
      %v1594 = vadd.f32 %v1578, %v1504
      %v1595 = vadd.f32 %v1579, %v1509
      %v1596 = vadd.f32 %v1580, %v1514
      %v1597 = vadd.f32 %v1581, %v1519
      %v1598 = vadd.f32 %v1582, %v1524
      %v1599 = vadd.f32 %v1583, %v1529
      %v1600 = vadd.f32 %v1584, %v1534
      %v1601 = vadd.f32 %v1585, %v1539
      %v1602 = vadd.f32 %v1586, %v1544
      %v1603 = vadd.f32 %v1587, %v1549
      %v1604 = vadd.f32 %v1588, %v1554
      %v1605 = vadd.f32 %v1589, %v1559
      %v1606 = vadd.f32 %v1590, %v1564
      %v1607 = vadd.f32 %v1591, %v1569
      %v1608 = vadd.f32 %v1592, %v1574
      %1609 = vst [vmem:[#allocation4] sm:$0xff] %v1593
      %1610 = vst [vmem:[#allocation4 + $0x8] sm:$0xff] %v1594
      %1611 = vst [vmem:[#allocation4 + $0x10] sm:$0xff] %v1595
      %1612 = vst [vmem:[#allocation4 + $0x18] sm:$0xff] %v1596
      %1613 = vst [vmem:[#allocation4 + $0x20] sm:$0xff] %v1597
      %1614 = vst [vmem:[#allocation4 + $0x28] sm:$0xff] %v1598
      %1615 = vst [vmem:[#allocation4 + $0x30] sm:$0xff] %v1599
      %1616 = vst [vmem:[#allocation4 + $0x38] sm:$0xff] %v1600
      %1617 = vst [vmem:[#allocation4 + $0x40] sm:$0xff] %v1601
      %1618 = vst [vmem:[#allocation4 + $0x48] sm:$0xff] %v1602
      %1619 = vst [vmem:[#allocation4 + $0x50] sm:$0xff] %v1603
      %1620 = vst [vmem:[#allocation4 + $0x58] sm:$0xff] %v1604
      %1621 = vst [vmem:[#allocation4 + $0x60] sm:$0xff] %v1605
      %1622 = vst [vmem:[#allocation4 + $0x68] sm:$0xff] %v1606
      %1623 = vst [vmem:[#allocation4 + $0x70] sm:$0xff] %v1607
      %1624 = vst [vmem:[#allocation4 + $0x78] sm:$0xff] %v1608
      %s1625 = scalar_lea.vmem [#allocation3], 32
      %v1626 = vld [vmem:[%s1625] sm:$0xff]
      %v1627 = vld [vmem:[%s1625 + $0x10] sm:$0xff]
      %v1628 = vld [vmem:[%s1625 + $0x20] sm:$0xff]
      %v1629 = vld [vmem:[%s1625 + $0x30] sm:$0xff]
      %v1630 = vld [vmem:[%s1625 + $0x40] sm:$0xff]
      %v1631 = vld [vmem:[%s1625 + $0x50] sm:$0xff]
      %v1632 = vld [vmem:[%s1625 + $0x60] sm:$0xff]
      %v1633 = vld [vmem:[%s1625 + $0x70] sm:$0xff]
      %v1634 = vld [vmem:[%s1625 + $0xa0] sm:$0xff]
      %v1635 = vld [vmem:[%s1625 + $0xb0] sm:$0xff]
      %v1636 = vld [vmem:[%s1625 + $0xc0] sm:$0xff]
      %v1637 = vld [vmem:[%s1625 + $0xd0] sm:$0xff]
      %v1638 = vld [vmem:[%s1625 + $0xe0] sm:$0xff]
      %v1639 = vld [vmem:[%s1625 + $0xf0] sm:$0xff]
      %v1640 = vld [vmem:[%s1625 + $0x100] sm:$0xff]
      %v1641 = vld [vmem:[%s1625 + $0x110] sm:$0xff]
      %s1642 = scalar_lea.vmem %s176, 768
      %v1643 = vld [vmem:[%s1642] sm:$0xff]
      %v1644 = vld [vmem:[%s1642 + $0x8] sm:$0xff]
      %v1645 = vld [vmem:[%s1642 + $0x10] sm:$0xff]
      %v1646 = vld [vmem:[%s1642 + $0x18] sm:$0xff]
      %v1647 = vld [vmem:[%s1642 + $0x20] sm:$0xff]
      %v1648 = vld [vmem:[%s1642 + $0x28] sm:$0xff]
      %v1649 = vld [vmem:[%s1642 + $0x30] sm:$0xff]
      %v1650 = vld [vmem:[%s1642 + $0x38] sm:$0xff]
      %v1651 = vld [vmem:[%s1642 + $0x40] sm:$0xff]
      %v1652 = vld [vmem:[%s1642 + $0x48] sm:$0xff]
      %v1653 = vld [vmem:[%s1642 + $0x50] sm:$0xff]
      %v1654 = vld [vmem:[%s1642 + $0x58] sm:$0xff]
      %v1655 = vld [vmem:[%s1642 + $0x60] sm:$0xff]
      %v1656 = vld [vmem:[%s1642 + $0x68] sm:$0xff]
      %v1657 = vld [vmem:[%s1642 + $0x70] sm:$0xff]
      %v1658 = vld [vmem:[%s1642 + $0x78] sm:$0xff]
      %1659 = vmatprep.subr.mxu0 0.0
      %1660 = vmatpush1.msra.mxu0 %v1643
      %1661 = vmatprep.subr.mxu0 0.0
      %1662 = vmatpush1.msra.mxu0 %v1644
      %1663 = vmatprep.subr.mxu0 0.0
      %1664 = vmatpush1.msra.mxu0 %v1645
      %1665 = vmatprep.subr.mxu0 0.0
      %1666 = vmatpush1.msra.mxu0 %v1646
      %1667 = vmatprep.subr.mxu0 0.0
      %1668 = vmatpush1.msra.mxu0 %v1647
      %1669 = vmatprep.subr.mxu0 0.0
      %1670 = vmatpush1.msra.mxu0 %v1648
      %1671 = vmatprep.subr.mxu0 0.0
      %1672 = vmatpush1.msra.mxu0 %v1649
      %1673 = vmatprep.subr.mxu0 0.0
      %1674 = vmatpush1.msra.mxu0 %v1650
      %1675 = vmatprep.subr.mxu0 0.0
      %1676 = vmatpush1.msra.mxu0 %v1651
      %1677 = vmatprep.subr.mxu0 0.0
      %1678 = vmatpush1.msra.mxu0 %v1652
      %1679 = vmatprep.subr.mxu0 0.0
      %1680 = vmatpush1.msra.mxu0 %v1653
      %1681 = vmatprep.subr.mxu0 0.0
      %1682 = vmatpush1.msra.mxu0 %v1654
      %1683 = vmatprep.subr.mxu0 0.0
      %1684 = vmatpush1.msra.mxu0 %v1655
      %1685 = vmatprep.subr.mxu0 0.0
      %1686 = vmatpush1.msra.mxu0 %v1656
      %1687 = vmatprep.subr.mxu0 0.0
      %1688 = vmatpush1.msra.mxu0 %v1657
      %1689 = vmatprep.subr.mxu0 0.0
      %1690 = vmatpush1.msra.mxu0 %v1658
      %1691 = vmatprep.subr.mxu0 0.0
      %1692 = vmatpush1.msra.mxu0 0.0
      %1693 = vmatprep.subr.mxu0 0.0
      %1694 = vmatpush1.msra.mxu0 0.0
      %1695 = vmatprep.subr.mxu0 0.0
      %1696 = vmatpush1.msra.mxu0 0.0
      %1697 = vmatprep.subr.mxu0 0.0
      %1698 = vmatpush1.msra.mxu0 0.0
      %1699 = vmatprep.subr.mxu0 0.0
      %1700 = vmatpush1.msra.mxu0 0.0
      %1701 = vmatprep.subr.mxu0 0.0
      %1702 = vmatpush1.msra.mxu0 0.0
      %1703 = vmatprep.subr.mxu0 0.0
      %1704 = vmatpush1.msra.mxu0 0.0
      %1705 = vmatprep.subr.mxu0 0.0
      %1706 = vmatpush1.msra.mxu0 0.0
      %1707 = vmatprep.subr.mxu0 0.0
      %1708 = vmatpush1.msra.mxu0 0.0
      %1709 = vmatprep.subr.mxu0 0.0
      %1710 = vmatpush1.msra.mxu0 0.0
      %1711 = vmatprep.subr.mxu0 0.0
      %1712 = vmatpush1.msra.mxu0 0.0
      %1713 = vmatprep.subr.mxu0 0.0
      %1714 = vmatpush1.msra.mxu0 0.0
      %1715 = vmatprep.subr.mxu0 0.0
      %1716 = vmatpush1.msra.mxu0 0.0
      %1717 = vmatprep.subr.mxu0 0.0
      %1718 = vmatpush1.msra.mxu0 0.0
      %1719 = vmatprep.subr.mxu0 0.0
      %1720 = vmatpush1.msra.mxu0 0.0
      %1721 = vmatprep.subr.mxu0 0.0
      %1722 = vmatpush1.msra.mxu0 0.0
      %1723 = vmatprep.mubr.f32.mxu0 0.0
      %1724 = vmatmul.mubr.f32.gmra.mrb[0].mxu0 %v1626
      %v1725 = vpop.f32.mrb[0].mxu0
      %v1726 = vadd.f32 0.0, %v1725
      %v1727 = vpop.f32.mrb[0].mxu0
      %1728 = vmatprep.mubr.f32.mxu0 0.0
      %1729 = vmatmul.mubr.f32.gmra.mrb[0].mxu0 %v1627
      %v1730 = vpop.f32.mrb[0].mxu0
      %v1731 = vadd.f32 0.0, %v1730
      %v1732 = vpop.f32.mrb[0].mxu0
      %1733 = vmatprep.mubr.f32.mxu0 0.0
      %1734 = vmatmul.mubr.f32.gmra.mrb[0].mxu0 %v1628
      %v1735 = vpop.f32.mrb[0].mxu0
      %v1736 = vadd.f32 0.0, %v1735
      %v1737 = vpop.f32.mrb[0].mxu0
      %1738 = vmatprep.mubr.f32.mxu0 0.0
      %1739 = vmatmul.mubr.f32.gmra.mrb[0].mxu0 %v1629
      %v1740 = vpop.f32.mrb[0].mxu0
      %v1741 = vadd.f32 0.0, %v1740
      %v1742 = vpop.f32.mrb[0].mxu0
      %1743 = vmatprep.mubr.f32.mxu0 0.0
      %1744 = vmatmul.mubr.f32.gmra.mrb[0].mxu0 %v1630
      %v1745 = vpop.f32.mrb[0].mxu0
      %v1746 = vadd.f32 0.0, %v1745
      %v1747 = vpop.f32.mrb[0].mxu0
      %1748 = vmatprep.mubr.f32.mxu0 0.0
      %1749 = vmatmul.mubr.f32.gmra.mrb[0].mxu0 %v1631
      %v1750 = vpop.f32.mrb[0].mxu0
      %v1751 = vadd.f32 0.0, %v1750
      %v1752 = vpop.f32.mrb[0].mxu0
      %1753 = vmatprep.mubr.f32.mxu0 0.0
      %1754 = vmatmul.mubr.f32.gmra.mrb[0].mxu0 %v1632
      %v1755 = vpop.f32.mrb[0].mxu0
      %v1756 = vadd.f32 0.0, %v1755
      %v1757 = vpop.f32.mrb[0].mxu0
      %1758 = vmatprep.mubr.f32.mxu0 0.0
      %1759 = vmatmul.mubr.f32.gmra.mrb[0].mxu0 %v1633
      %v1760 = vpop.f32.mrb[0].mxu0
      %v1761 = vadd.f32 0.0, %v1760
      %v1762 = vpop.f32.mrb[0].mxu0
      %1763 = vmatprep.mubr.f32.mxu0 0.0
      %1764 = vmatmul.mubr.f32.gmra.mrb[0].mxu0 %v1634
      %v1765 = vpop.f32.mrb[0].mxu0
      %v1766 = vadd.f32 0.0, %v1765
      %v1767 = vpop.f32.mrb[0].mxu0
      %1768 = vmatprep.mubr.f32.mxu0 0.0
      %1769 = vmatmul.mubr.f32.gmra.mrb[0].mxu0 %v1635
      %v1770 = vpop.f32.mrb[0].mxu0
      %v1771 = vadd.f32 0.0, %v1770
      %v1772 = vpop.f32.mrb[0].mxu0
      %1773 = vmatprep.mubr.f32.mxu0 0.0
      %1774 = vmatmul.mubr.f32.gmra.mrb[0].mxu0 %v1636
      %v1775 = vpop.f32.mrb[0].mxu0
      %v1776 = vadd.f32 0.0, %v1775
      %v1777 = vpop.f32.mrb[0].mxu0
      %1778 = vmatprep.mubr.f32.mxu0 0.0
      %1779 = vmatmul.mubr.f32.gmra.mrb[0].mxu0 %v1637
      %v1780 = vpop.f32.mrb[0].mxu0
      %v1781 = vadd.f32 0.0, %v1780
      %v1782 = vpop.f32.mrb[0].mxu0
      %1783 = vmatprep.mubr.f32.mxu0 0.0
      %1784 = vmatmul.mubr.f32.gmra.mrb[0].mxu0 %v1638
      %v1785 = vpop.f32.mrb[0].mxu0
      %v1786 = vadd.f32 0.0, %v1785
      %v1787 = vpop.f32.mrb[0].mxu0
      %1788 = vmatprep.mubr.f32.mxu0 0.0
      %1789 = vmatmul.mubr.f32.gmra.mrb[0].mxu0 %v1639
      %v1790 = vpop.f32.mrb[0].mxu0
      %v1791 = vadd.f32 0.0, %v1790
      %v1792 = vpop.f32.mrb[0].mxu0
      %1793 = vmatprep.mubr.f32.mxu0 0.0
      %1794 = vmatmul.mubr.f32.gmra.mrb[0].mxu0 %v1640
      %v1795 = vpop.f32.mrb[0].mxu0
      %v1796 = vadd.f32 0.0, %v1795
      %v1797 = vpop.f32.mrb[0].mxu0
      %1798 = vmatprep.mubr.f32.mxu0 0.0
      %1799 = vmatmul.mubr.f32.gmra.mrb[0].mxu0 %v1641
      %v1800 = vpop.f32.mrb[0].mxu0
      %v1801 = vadd.f32 0.0, %v1800
      %v1802 = vpop.f32.mrb[0].mxu0
      %1803 = vdwg.mxu0
      %v1804 = vld [vmem:[#allocation4] sm:$0xff]
      %v1805 = vld [vmem:[#allocation4 + $0x8] sm:$0xff]
      %v1806 = vld [vmem:[#allocation4 + $0x10] sm:$0xff]
      %v1807 = vld [vmem:[#allocation4 + $0x18] sm:$0xff]
      %v1808 = vld [vmem:[#allocation4 + $0x20] sm:$0xff]
      %v1809 = vld [vmem:[#allocation4 + $0x28] sm:$0xff]
      %v1810 = vld [vmem:[#allocation4 + $0x30] sm:$0xff]
      %v1811 = vld [vmem:[#allocation4 + $0x38] sm:$0xff]
      %v1812 = vld [vmem:[#allocation4 + $0x40] sm:$0xff]
      %v1813 = vld [vmem:[#allocation4 + $0x48] sm:$0xff]
      %v1814 = vld [vmem:[#allocation4 + $0x50] sm:$0xff]
      %v1815 = vld [vmem:[#allocation4 + $0x58] sm:$0xff]
      %v1816 = vld [vmem:[#allocation4 + $0x60] sm:$0xff]
      %v1817 = vld [vmem:[#allocation4 + $0x68] sm:$0xff]
      %v1818 = vld [vmem:[#allocation4 + $0x70] sm:$0xff]
      %v1819 = vld [vmem:[#allocation4 + $0x78] sm:$0xff]
      %v1820 = vadd.f32 %v1804, %v1726
      %v1821 = vadd.f32 %v1805, %v1731
      %v1822 = vadd.f32 %v1806, %v1736
      %v1823 = vadd.f32 %v1807, %v1741
      %v1824 = vadd.f32 %v1808, %v1746
      %v1825 = vadd.f32 %v1809, %v1751
      %v1826 = vadd.f32 %v1810, %v1756
      %v1827 = vadd.f32 %v1811, %v1761
      %v1828 = vadd.f32 %v1812, %v1766
      %v1829 = vadd.f32 %v1813, %v1771
      %v1830 = vadd.f32 %v1814, %v1776
      %v1831 = vadd.f32 %v1815, %v1781
      %v1832 = vadd.f32 %v1816, %v1786
      %v1833 = vadd.f32 %v1817, %v1791
      %v1834 = vadd.f32 %v1818, %v1796
      %v1835 = vadd.f32 %v1819, %v1801
      %1836 = vst [vmem:[#allocation4] sm:$0xff] %v1820
      %1837 = vst [vmem:[#allocation4 + $0x8] sm:$0xff] %v1821
      %1838 = vst [vmem:[#allocation4 + $0x10] sm:$0xff] %v1822
      %1839 = vst [vmem:[#allocation4 + $0x18] sm:$0xff] %v1823
      %1840 = vst [vmem:[#allocation4 + $0x20] sm:$0xff] %v1824
      %1841 = vst [vmem:[#allocation4 + $0x28] sm:$0xff] %v1825
      %1842 = vst [vmem:[#allocation4 + $0x30] sm:$0xff] %v1826
      %1843 = vst [vmem:[#allocation4 + $0x38] sm:$0xff] %v1827
      %1844 = vst [vmem:[#allocation4 + $0x40] sm:$0xff] %v1828
      %1845 = vst [vmem:[#allocation4 + $0x48] sm:$0xff] %v1829
      %1846 = vst [vmem:[#allocation4 + $0x50] sm:$0xff] %v1830
      %1847 = vst [vmem:[#allocation4 + $0x58] sm:$0xff] %v1831
      %1848 = vst [vmem:[#allocation4 + $0x60] sm:$0xff] %v1832
      %1849 = vst [vmem:[#allocation4 + $0x68] sm:$0xff] %v1833
      %1850 = vst [vmem:[#allocation4 + $0x70] sm:$0xff] %v1834
      %1851 = vst [vmem:[#allocation4 + $0x78] sm:$0xff] %v1835
      %v1852 = vld [vmem:[%s1625 + $0x1] sm:$0xff]
      %v1853 = vld [vmem:[%s1625 + $0x11] sm:$0xff]
      %v1854 = vld [vmem:[%s1625 + $0x21] sm:$0xff]
      %v1855 = vld [vmem:[%s1625 + $0x31] sm:$0xff]
      %v1856 = vld [vmem:[%s1625 + $0x41] sm:$0xff]
      %v1857 = vld [vmem:[%s1625 + $0x51] sm:$0xff]
      %v1858 = vld [vmem:[%s1625 + $0x61] sm:$0xff]
      %v1859 = vld [vmem:[%s1625 + $0x71] sm:$0xff]
      %v1860 = vld [vmem:[%s1625 + $0xa1] sm:$0xff]
      %v1861 = vld [vmem:[%s1625 + $0xb1] sm:$0xff]
      %v1862 = vld [vmem:[%s1625 + $0xc1] sm:$0xff]
      %v1863 = vld [vmem:[%s1625 + $0xd1] sm:$0xff]
      %v1864 = vld [vmem:[%s1625 + $0xe1] sm:$0xff]
      %v1865 = vld [vmem:[%s1625 + $0xf1] sm:$0xff]
      %v1866 = vld [vmem:[%s1625 + $0x101] sm:$0xff]
      %v1867 = vld [vmem:[%s1625 + $0x111] sm:$0xff]
      %s1868 = scalar_lea.vmem %s176, 896
      %v1869 = vld [vmem:[%s1868] sm:$0xff]
      %v1870 = vld [vmem:[%s1868 + $0x8] sm:$0xff]
      %v1871 = vld [vmem:[%s1868 + $0x10] sm:$0xff]
      %v1872 = vld [vmem:[%s1868 + $0x18] sm:$0xff]
      %v1873 = vld [vmem:[%s1868 + $0x20] sm:$0xff]
      %v1874 = vld [vmem:[%s1868 + $0x28] sm:$0xff]
      %v1875 = vld [vmem:[%s1868 + $0x30] sm:$0xff]
      %v1876 = vld [vmem:[%s1868 + $0x38] sm:$0xff]
      %v1877 = vld [vmem:[%s1868 + $0x40] sm:$0xff]
      %v1878 = vld [vmem:[%s1868 + $0x48] sm:$0xff]
      %v1879 = vld [vmem:[%s1868 + $0x50] sm:$0xff]
      %v1880 = vld [vmem:[%s1868 + $0x58] sm:$0xff]
      %v1881 = vld [vmem:[%s1868 + $0x60] sm:$0xff]
      %v1882 = vld [vmem:[%s1868 + $0x68] sm:$0xff]
      %v1883 = vld [vmem:[%s1868 + $0x70] sm:$0xff]
      %v1884 = vld [vmem:[%s1868 + $0x78] sm:$0xff]
      %1885 = vmatprep.subr.mxu0 0.0
      %1886 = vmatpush1.msra.mxu0 %v1869
      %1887 = vmatprep.subr.mxu0 0.0
      %1888 = vmatpush1.msra.mxu0 %v1870
      %1889 = vmatprep.subr.mxu0 0.0
      %1890 = vmatpush1.msra.mxu0 %v1871
      %1891 = vmatprep.subr.mxu0 0.0
      %1892 = vmatpush1.msra.mxu0 %v1872
      %1893 = vmatprep.subr.mxu0 0.0
      %1894 = vmatpush1.msra.mxu0 %v1873
      %1895 = vmatprep.subr.mxu0 0.0
      %1896 = vmatpush1.msra.mxu0 %v1874
      %1897 = vmatprep.subr.mxu0 0.0
      %1898 = vmatpush1.msra.mxu0 %v1875
      %1899 = vmatprep.subr.mxu0 0.0
      %1900 = vmatpush1.msra.mxu0 %v1876
      %1901 = vmatprep.subr.mxu0 0.0
      %1902 = vmatpush1.msra.mxu0 %v1877
      %1903 = vmatprep.subr.mxu0 0.0
      %1904 = vmatpush1.msra.mxu0 %v1878
      %1905 = vmatprep.subr.mxu0 0.0
      %1906 = vmatpush1.msra.mxu0 %v1879
      %1907 = vmatprep.subr.mxu0 0.0
      %1908 = vmatpush1.msra.mxu0 %v1880
      %1909 = vmatprep.subr.mxu0 0.0
      %1910 = vmatpush1.msra.mxu0 %v1881
      %1911 = vmatprep.subr.mxu0 0.0
      %1912 = vmatpush1.msra.mxu0 %v1882
      %1913 = vmatprep.subr.mxu0 0.0
      %1914 = vmatpush1.msra.mxu0 %v1883
      %1915 = vmatprep.subr.mxu0 0.0
      %1916 = vmatpush1.msra.mxu0 %v1884
      %1917 = vmatprep.subr.mxu0 0.0
      %1918 = vmatpush1.msra.mxu0 0.0
      %1919 = vmatprep.subr.mxu0 0.0
      %1920 = vmatpush1.msra.mxu0 0.0
      %1921 = vmatprep.subr.mxu0 0.0
      %1922 = vmatpush1.msra.mxu0 0.0
      %1923 = vmatprep.subr.mxu0 0.0
      %1924 = vmatpush1.msra.mxu0 0.0
      %1925 = vmatprep.subr.mxu0 0.0
      %1926 = vmatpush1.msra.mxu0 0.0
      %1927 = vmatprep.subr.mxu0 0.0
      %1928 = vmatpush1.msra.mxu0 0.0
      %1929 = vmatprep.subr.mxu0 0.0
      %1930 = vmatpush1.msra.mxu0 0.0
      %1931 = vmatprep.subr.mxu0 0.0
      %1932 = vmatpush1.msra.mxu0 0.0
      %1933 = vmatprep.subr.mxu0 0.0
      %1934 = vmatpush1.msra.mxu0 0.0
      %1935 = vmatprep.subr.mxu0 0.0
      %1936 = vmatpush1.msra.mxu0 0.0
      %1937 = vmatprep.subr.mxu0 0.0
      %1938 = vmatpush1.msra.mxu0 0.0
      %1939 = vmatprep.subr.mxu0 0.0
      %1940 = vmatpush1.msra.mxu0 0.0
      %1941 = vmatprep.subr.mxu0 0.0
      %1942 = vmatpush1.msra.mxu0 0.0
      %1943 = vmatprep.subr.mxu0 0.0
      %1944 = vmatpush1.msra.mxu0 0.0
      %1945 = vmatprep.subr.mxu0 0.0
      %1946 = vmatpush1.msra.mxu0 0.0
      %1947 = vmatprep.subr.mxu0 0.0
      %1948 = vmatpush1.msra.mxu0 0.0
      %1949 = vmatprep.mubr.f32.mxu0 0.0
      %1950 = vmatmul.mubr.f32.gmra.mrb[0].mxu0 %v1852
      %v1951 = vpop.f32.mrb[0].mxu0
      %v1952 = vadd.f32 0.0, %v1951
      %v1953 = vpop.f32.mrb[0].mxu0
      %1954 = vmatprep.mubr.f32.mxu0 0.0
      %1955 = vmatmul.mubr.f32.gmra.mrb[0].mxu0 %v1853
      %v1956 = vpop.f32.mrb[0].mxu0
      %v1957 = vadd.f32 0.0, %v1956
      %v1958 = vpop.f32.mrb[0].mxu0
      %1959 = vmatprep.mubr.f32.mxu0 0.0
      %1960 = vmatmul.mubr.f32.gmra.mrb[0].mxu0 %v1854
      %v1961 = vpop.f32.mrb[0].mxu0
      %v1962 = vadd.f32 0.0, %v1961
      %v1963 = vpop.f32.mrb[0].mxu0
      %1964 = vmatprep.mubr.f32.mxu0 0.0
      %1965 = vmatmul.mubr.f32.gmra.mrb[0].mxu0 %v1855
      %v1966 = vpop.f32.mrb[0].mxu0
      %v1967 = vadd.f32 0.0, %v1966
      %v1968 = vpop.f32.mrb[0].mxu0
      %1969 = vmatprep.mubr.f32.mxu0 0.0
      %1970 = vmatmul.mubr.f32.gmra.mrb[0].mxu0 %v1856
      %v1971 = vpop.f32.mrb[0].mxu0
      %v1972 = vadd.f32 0.0, %v1971
      %v1973 = vpop.f32.mrb[0].mxu0
      %1974 = vmatprep.mubr.f32.mxu0 0.0
      %1975 = vmatmul.mubr.f32.gmra.mrb[0].mxu0 %v1857
      %v1976 = vpop.f32.mrb[0].mxu0
      %v1977 = vadd.f32 0.0, %v1976
      %v1978 = vpop.f32.mrb[0].mxu0
      %1979 = vmatprep.mubr.f32.mxu0 0.0
      %1980 = vmatmul.mubr.f32.gmra.mrb[0].mxu0 %v1858
      %v1981 = vpop.f32.mrb[0].mxu0
      %v1982 = vadd.f32 0.0, %v1981
      %v1983 = vpop.f32.mrb[0].mxu0
      %1984 = vmatprep.mubr.f32.mxu0 0.0
      %1985 = vmatmul.mubr.f32.gmra.mrb[0].mxu0 %v1859
      %v1986 = vpop.f32.mrb[0].mxu0
      %v1987 = vadd.f32 0.0, %v1986
      %v1988 = vpop.f32.mrb[0].mxu0
      %1989 = vmatprep.mubr.f32.mxu0 0.0
      %1990 = vmatmul.mubr.f32.gmra.mrb[0].mxu0 %v1860
      %v1991 = vpop.f32.mrb[0].mxu0
      %v1992 = vadd.f32 0.0, %v1991
      %v1993 = vpop.f32.mrb[0].mxu0
      %1994 = vmatprep.mubr.f32.mxu0 0.0
      %1995 = vmatmul.mubr.f32.gmra.mrb[0].mxu0 %v1861
      %v1996 = vpop.f32.mrb[0].mxu0
      %v1997 = vadd.f32 0.0, %v1996
      %v1998 = vpop.f32.mrb[0].mxu0
      %1999 = vmatprep.mubr.f32.mxu0 0.0
      %2000 = vmatmul.mubr.f32.gmra.mrb[0].mxu0 %v1862
      %v2001 = vpop.f32.mrb[0].mxu0
      %v2002 = vadd.f32 0.0, %v2001
      %v2003 = vpop.f32.mrb[0].mxu0
      %2004 = vmatprep.mubr.f32.mxu0 0.0
      %2005 = vmatmul.mubr.f32.gmra.mrb[0].mxu0 %v1863
      %v2006 = vpop.f32.mrb[0].mxu0
      %v2007 = vadd.f32 0.0, %v2006
      %v2008 = vpop.f32.mrb[0].mxu0
      %2009 = vmatprep.mubr.f32.mxu0 0.0
      %2010 = vmatmul.mubr.f32.gmra.mrb[0].mxu0 %v1864
      %v2011 = vpop.f32.mrb[0].mxu0
      %v2012 = vadd.f32 0.0, %v2011
      %v2013 = vpop.f32.mrb[0].mxu0
      %2014 = vmatprep.mubr.f32.mxu0 0.0
      %2015 = vmatmul.mubr.f32.gmra.mrb[0].mxu0 %v1865
      %v2016 = vpop.f32.mrb[0].mxu0
      %v2017 = vadd.f32 0.0, %v2016
      %v2018 = vpop.f32.mrb[0].mxu0
      %2019 = vmatprep.mubr.f32.mxu0 0.0
      %2020 = vmatmul.mubr.f32.gmra.mrb[0].mxu0 %v1866
      %v2021 = vpop.f32.mrb[0].mxu0
      %v2022 = vadd.f32 0.0, %v2021
      %v2023 = vpop.f32.mrb[0].mxu0
      %2024 = vmatprep.mubr.f32.mxu0 0.0
      %2025 = vmatmul.mubr.f32.gmra.mrb[0].mxu0 %v1867
      %v2026 = vpop.f32.mrb[0].mxu0
      %v2027 = vadd.f32 0.0, %v2026
      %v2028 = vpop.f32.mrb[0].mxu0
      %2029 = vdwg.mxu0
      %v2030 = vld [vmem:[#allocation4] sm:$0xff]
      %v2031 = vld [vmem:[#allocation4 + $0x8] sm:$0xff]
      %v2032 = vld [vmem:[#allocation4 + $0x10] sm:$0xff]
      %v2033 = vld [vmem:[#allocation4 + $0x18] sm:$0xff]
      %v2034 = vld [vmem:[#allocation4 + $0x20] sm:$0xff]
      %v2035 = vld [vmem:[#allocation4 + $0x28] sm:$0xff]
      %v2036 = vld [vmem:[#allocation4 + $0x30] sm:$0xff]
      %v2037 = vld [vmem:[#allocation4 + $0x38] sm:$0xff]
      %v2038 = vld [vmem:[#allocation4 + $0x40] sm:$0xff]
      %v2039 = vld [vmem:[#allocation4 + $0x48] sm:$0xff]
      %v2040 = vld [vmem:[#allocation4 + $0x50] sm:$0xff]
      %v2041 = vld [vmem:[#allocation4 + $0x58] sm:$0xff]
      %v2042 = vld [vmem:[#allocation4 + $0x60] sm:$0xff]
      %v2043 = vld [vmem:[#allocation4 + $0x68] sm:$0xff]
      %v2044 = vld [vmem:[#allocation4 + $0x70] sm:$0xff]
      %v2045 = vld [vmem:[#allocation4 + $0x78] sm:$0xff]
      %v2046 = vadd.f32 %v2030, %v1952
      %v2047 = vadd.f32 %v2031, %v1957
      %v2048 = vadd.f32 %v2032, %v1962
      %v2049 = vadd.f32 %v2033, %v1967
      %v2050 = vadd.f32 %v2034, %v1972
      %v2051 = vadd.f32 %v2035, %v1977
      %v2052 = vadd.f32 %v2036, %v1982
      %v2053 = vadd.f32 %v2037, %v1987
      %v2054 = vadd.f32 %v2038, %v1992
      %v2055 = vadd.f32 %v2039, %v1997
      %v2056 = vadd.f32 %v2040, %v2002
      %v2057 = vadd.f32 %v2041, %v2007
      %v2058 = vadd.f32 %v2042, %v2012
      %v2059 = vadd.f32 %v2043, %v2017
      %v2060 = vadd.f32 %v2044, %v2022
      %v2061 = vadd.f32 %v2045, %v2027
      %2062 = vst [vmem:[#allocation4] sm:$0xff] %v2046
      %2063 = vst [vmem:[#allocation4 + $0x8] sm:$0xff] %v2047
      %2064 = vst [vmem:[#allocation4 + $0x10] sm:$0xff] %v2048
      %2065 = vst [vmem:[#allocation4 + $0x18] sm:$0xff] %v2049
      %2066 = vst [vmem:[#allocation4 + $0x20] sm:$0xff] %v2050
      %2067 = vst [vmem:[#allocation4 + $0x28] sm:$0xff] %v2051
      %2068 = vst [vmem:[#allocation4 + $0x30] sm:$0xff] %v2052
      %2069 = vst [vmem:[#allocation4 + $0x38] sm:$0xff] %v2053
      %2070 = vst [vmem:[#allocation4 + $0x40] sm:$0xff] %v2054
      %2071 = vst [vmem:[#allocation4 + $0x48] sm:$0xff] %v2055
      %2072 = vst [vmem:[#allocation4 + $0x50] sm:$0xff] %v2056
      %2073 = vst [vmem:[#allocation4 + $0x58] sm:$0xff] %v2057
      %2074 = vst [vmem:[#allocation4 + $0x60] sm:$0xff] %v2058
      %2075 = vst [vmem:[#allocation4 + $0x68] sm:$0xff] %v2059
      %2076 = vst [vmem:[#allocation4 + $0x70] sm:$0xff] %v2060
      %2077 = vst [vmem:[#allocation4 + $0x78] sm:$0xff] %v2061
      %v2078 = vld [vmem:[%s1625 + $0x2] sm:$0xff]
      %v2079 = vld [vmem:[%s1625 + $0x12] sm:$0xff]
      %v2080 = vld [vmem:[%s1625 + $0x22] sm:$0xff]
      %v2081 = vld [vmem:[%s1625 + $0x32] sm:$0xff]
      %v2082 = vld [vmem:[%s1625 + $0x42] sm:$0xff]
      %v2083 = vld [vmem:[%s1625 + $0x52] sm:$0xff]
      %v2084 = vld [vmem:[%s1625 + $0x62] sm:$0xff]
      %v2085 = vld [vmem:[%s1625 + $0x72] sm:$0xff]
      %v2086 = vld [vmem:[%s1625 + $0xa2] sm:$0xff]
      %v2087 = vld [vmem:[%s1625 + $0xb2] sm:$0xff]
      %v2088 = vld [vmem:[%s1625 + $0xc2] sm:$0xff]
      %v2089 = vld [vmem:[%s1625 + $0xd2] sm:$0xff]
      %v2090 = vld [vmem:[%s1625 + $0xe2] sm:$0xff]
      %v2091 = vld [vmem:[%s1625 + $0xf2] sm:$0xff]
      %v2092 = vld [vmem:[%s1625 + $0x102] sm:$0xff]
      %v2093 = vld [vmem:[%s1625 + $0x112] sm:$0xff]
      %s2094 = scalar_lea.vmem %s176, 1024
      %v2095 = vld [vmem:[%s2094] sm:$0xff]
      %v2096 = vld [vmem:[%s2094 + $0x8] sm:$0xff]
      %v2097 = vld [vmem:[%s2094 + $0x10] sm:$0xff]
      %v2098 = vld [vmem:[%s2094 + $0x18] sm:$0xff]
      %v2099 = vld [vmem:[%s2094 + $0x20] sm:$0xff]
      %v2100 = vld [vmem:[%s2094 + $0x28] sm:$0xff]
      %v2101 = vld [vmem:[%s2094 + $0x30] sm:$0xff]
      %v2102 = vld [vmem:[%s2094 + $0x38] sm:$0xff]
      %v2103 = vld [vmem:[%s2094 + $0x40] sm:$0xff]
      %v2104 = vld [vmem:[%s2094 + $0x48] sm:$0xff]
      %v2105 = vld [vmem:[%s2094 + $0x50] sm:$0xff]
      %v2106 = vld [vmem:[%s2094 + $0x58] sm:$0xff]
      %v2107 = vld [vmem:[%s2094 + $0x60] sm:$0xff]
      %v2108 = vld [vmem:[%s2094 + $0x68] sm:$0xff]
      %v2109 = vld [vmem:[%s2094 + $0x70] sm:$0xff]
      %v2110 = vld [vmem:[%s2094 + $0x78] sm:$0xff]
      %2111 = vmatprep.subr.mxu0 0.0
      %2112 = vmatpush1.msra.mxu0 %v2095
      %2113 = vmatprep.subr.mxu0 0.0
      %2114 = vmatpush1.msra.mxu0 %v2096
      %2115 = vmatprep.subr.mxu0 0.0
      %2116 = vmatpush1.msra.mxu0 %v2097
      %2117 = vmatprep.subr.mxu0 0.0
      %2118 = vmatpush1.msra.mxu0 %v2098
      %2119 = vmatprep.subr.mxu0 0.0
      %2120 = vmatpush1.msra.mxu0 %v2099
      %2121 = vmatprep.subr.mxu0 0.0
      %2122 = vmatpush1.msra.mxu0 %v2100
      %2123 = vmatprep.subr.mxu0 0.0
      %2124 = vmatpush1.msra.mxu0 %v2101
      %2125 = vmatprep.subr.mxu0 0.0
      %2126 = vmatpush1.msra.mxu0 %v2102
      %2127 = vmatprep.subr.mxu0 0.0
      %2128 = vmatpush1.msra.mxu0 %v2103
      %2129 = vmatprep.subr.mxu0 0.0
      %2130 = vmatpush1.msra.mxu0 %v2104
      %2131 = vmatprep.subr.mxu0 0.0
      %2132 = vmatpush1.msra.mxu0 %v2105
      %2133 = vmatprep.subr.mxu0 0.0
      %2134 = vmatpush1.msra.mxu0 %v2106
      %2135 = vmatprep.subr.mxu0 0.0
      %2136 = vmatpush1.msra.mxu0 %v2107
      %2137 = vmatprep.subr.mxu0 0.0
      %2138 = vmatpush1.msra.mxu0 %v2108
      %2139 = vmatprep.subr.mxu0 0.0
      %2140 = vmatpush1.msra.mxu0 %v2109
      %2141 = vmatprep.subr.mxu0 0.0
      %2142 = vmatpush1.msra.mxu0 %v2110
      %2143 = vmatprep.subr.mxu0 0.0
      %2144 = vmatpush1.msra.mxu0 0.0
      %2145 = vmatprep.subr.mxu0 0.0
      %2146 = vmatpush1.msra.mxu0 0.0
      %2147 = vmatprep.subr.mxu0 0.0
      %2148 = vmatpush1.msra.mxu0 0.0
      %2149 = vmatprep.subr.mxu0 0.0
      %2150 = vmatpush1.msra.mxu0 0.0
      %2151 = vmatprep.subr.mxu0 0.0
      %2152 = vmatpush1.msra.mxu0 0.0
      %2153 = vmatprep.subr.mxu0 0.0
      %2154 = vmatpush1.msra.mxu0 0.0
      %2155 = vmatprep.subr.mxu0 0.0
      %2156 = vmatpush1.msra.mxu0 0.0
      %2157 = vmatprep.subr.mxu0 0.0
      %2158 = vmatpush1.msra.mxu0 0.0
      %2159 = vmatprep.subr.mxu0 0.0
      %2160 = vmatpush1.msra.mxu0 0.0
      %2161 = vmatprep.subr.mxu0 0.0
      %2162 = vmatpush1.msra.mxu0 0.0
      %2163 = vmatprep.subr.mxu0 0.0
      %2164 = vmatpush1.msra.mxu0 0.0
      %2165 = vmatprep.subr.mxu0 0.0
      %2166 = vmatpush1.msra.mxu0 0.0
      %2167 = vmatprep.subr.mxu0 0.0
      %2168 = vmatpush1.msra.mxu0 0.0
      %2169 = vmatprep.subr.mxu0 0.0
      %2170 = vmatpush1.msra.mxu0 0.0
      %2171 = vmatprep.subr.mxu0 0.0
      %2172 = vmatpush1.msra.mxu0 0.0
      %2173 = vmatprep.subr.mxu0 0.0
      %2174 = vmatpush1.msra.mxu0 0.0
      %2175 = vmatprep.mubr.f32.mxu0 0.0
      %2176 = vmatmul.mubr.f32.gmra.mrb[0].mxu0 %v2078
      %v2177 = vpop.f32.mrb[0].mxu0
      %v2178 = vadd.f32 0.0, %v2177
      %v2179 = vpop.f32.mrb[0].mxu0
      %2180 = vmatprep.mubr.f32.mxu0 0.0
      %2181 = vmatmul.mubr.f32.gmra.mrb[0].mxu0 %v2079
      %v2182 = vpop.f32.mrb[0].mxu0
      %v2183 = vadd.f32 0.0, %v2182
      %v2184 = vpop.f32.mrb[0].mxu0
      %2185 = vmatprep.mubr.f32.mxu0 0.0
      %2186 = vmatmul.mubr.f32.gmra.mrb[0].mxu0 %v2080
      %v2187 = vpop.f32.mrb[0].mxu0
      %v2188 = vadd.f32 0.0, %v2187
      %v2189 = vpop.f32.mrb[0].mxu0
      %2190 = vmatprep.mubr.f32.mxu0 0.0
      %2191 = vmatmul.mubr.f32.gmra.mrb[0].mxu0 %v2081
      %v2192 = vpop.f32.mrb[0].mxu0
      %v2193 = vadd.f32 0.0, %v2192
      %v2194 = vpop.f32.mrb[0].mxu0
      %2195 = vmatprep.mubr.f32.mxu0 0.0
      %2196 = vmatmul.mubr.f32.gmra.mrb[0].mxu0 %v2082
      %v2197 = vpop.f32.mrb[0].mxu0
      %v2198 = vadd.f32 0.0, %v2197
      %v2199 = vpop.f32.mrb[0].mxu0
      %2200 = vmatprep.mubr.f32.mxu0 0.0
      %2201 = vmatmul.mubr.f32.gmra.mrb[0].mxu0 %v2083
      %v2202 = vpop.f32.mrb[0].mxu0
      %v2203 = vadd.f32 0.0, %v2202
      %v2204 = vpop.f32.mrb[0].mxu0
      %2205 = vmatprep.mubr.f32.mxu0 0.0
      %2206 = vmatmul.mubr.f32.gmra.mrb[0].mxu0 %v2084
      %v2207 = vpop.f32.mrb[0].mxu0
      %v2208 = vadd.f32 0.0, %v2207
      %v2209 = vpop.f32.mrb[0].mxu0
      %2210 = vmatprep.mubr.f32.mxu0 0.0
      %2211 = vmatmul.mubr.f32.gmra.mrb[0].mxu0 %v2085
      %v2212 = vpop.f32.mrb[0].mxu0
      %v2213 = vadd.f32 0.0, %v2212
      %v2214 = vpop.f32.mrb[0].mxu0
      %2215 = vmatprep.mubr.f32.mxu0 0.0
      %2216 = vmatmul.mubr.f32.gmra.mrb[0].mxu0 %v2086
      %v2217 = vpop.f32.mrb[0].mxu0
      %v2218 = vadd.f32 0.0, %v2217
      %v2219 = vpop.f32.mrb[0].mxu0
      %2220 = vmatprep.mubr.f32.mxu0 0.0
      %2221 = vmatmul.mubr.f32.gmra.mrb[0].mxu0 %v2087
      %v2222 = vpop.f32.mrb[0].mxu0
      %v2223 = vadd.f32 0.0, %v2222
      %v2224 = vpop.f32.mrb[0].mxu0
      %2225 = vmatprep.mubr.f32.mxu0 0.0
      %2226 = vmatmul.mubr.f32.gmra.mrb[0].mxu0 %v2088
      %v2227 = vpop.f32.mrb[0].mxu0
      %v2228 = vadd.f32 0.0, %v2227
      %v2229 = vpop.f32.mrb[0].mxu0
      %2230 = vmatprep.mubr.f32.mxu0 0.0
      %2231 = vmatmul.mubr.f32.gmra.mrb[0].mxu0 %v2089
      %v2232 = vpop.f32.mrb[0].mxu0
      %v2233 = vadd.f32 0.0, %v2232
      %v2234 = vpop.f32.mrb[0].mxu0
      %2235 = vmatprep.mubr.f32.mxu0 0.0
      %2236 = vmatmul.mubr.f32.gmra.mrb[0].mxu0 %v2090
      %v2237 = vpop.f32.mrb[0].mxu0
      %v2238 = vadd.f32 0.0, %v2237
      %v2239 = vpop.f32.mrb[0].mxu0
      %2240 = vmatprep.mubr.f32.mxu0 0.0
      %2241 = vmatmul.mubr.f32.gmra.mrb[0].mxu0 %v2091
      %v2242 = vpop.f32.mrb[0].mxu0
      %v2243 = vadd.f32 0.0, %v2242
      %v2244 = vpop.f32.mrb[0].mxu0
      %2245 = vmatprep.mubr.f32.mxu0 0.0
      %2246 = vmatmul.mubr.f32.gmra.mrb[0].mxu0 %v2092
      %v2247 = vpop.f32.mrb[0].mxu0
      %v2248 = vadd.f32 0.0, %v2247
      %v2249 = vpop.f32.mrb[0].mxu0
      %2250 = vmatprep.mubr.f32.mxu0 0.0
      %2251 = vmatmul.mubr.f32.gmra.mrb[0].mxu0 %v2093
      %v2252 = vpop.f32.mrb[0].mxu0
      %v2253 = vadd.f32 0.0, %v2252
      %v2254 = vpop.f32.mrb[0].mxu0
      %2255 = vdwg.mxu0
      %v2256 = vld [vmem:[#allocation4] sm:$0xff]
      %v2257 = vld [vmem:[#allocation4 + $0x8] sm:$0xff]
      %v2258 = vld [vmem:[#allocation4 + $0x10] sm:$0xff]
      %v2259 = vld [vmem:[#allocation4 + $0x18] sm:$0xff]
      %v2260 = vld [vmem:[#allocation4 + $0x20] sm:$0xff]
      %v2261 = vld [vmem:[#allocation4 + $0x28] sm:$0xff]
      %v2262 = vld [vmem:[#allocation4 + $0x30] sm:$0xff]
      %v2263 = vld [vmem:[#allocation4 + $0x38] sm:$0xff]
      %v2264 = vld [vmem:[#allocation4 + $0x40] sm:$0xff]
      %v2265 = vld [vmem:[#allocation4 + $0x48] sm:$0xff]
      %v2266 = vld [vmem:[#allocation4 + $0x50] sm:$0xff]
      %v2267 = vld [vmem:[#allocation4 + $0x58] sm:$0xff]
      %v2268 = vld [vmem:[#allocation4 + $0x60] sm:$0xff]
      %v2269 = vld [vmem:[#allocation4 + $0x68] sm:$0xff]
      %v2270 = vld [vmem:[#allocation4 + $0x70] sm:$0xff]
      %v2271 = vld [vmem:[#allocation4 + $0x78] sm:$0xff]
      %v2272 = vadd.f32 %v2256, %v2178
      %v2273 = vadd.f32 %v2257, %v2183
      %v2274 = vadd.f32 %v2258, %v2188
      %v2275 = vadd.f32 %v2259, %v2193
      %v2276 = vadd.f32 %v2260, %v2198
      %v2277 = vadd.f32 %v2261, %v2203
      %v2278 = vadd.f32 %v2262, %v2208
      %v2279 = vadd.f32 %v2263, %v2213
      %v2280 = vadd.f32 %v2264, %v2218
      %v2281 = vadd.f32 %v2265, %v2223
      %v2282 = vadd.f32 %v2266, %v2228
      %v2283 = vadd.f32 %v2267, %v2233
      %v2284 = vadd.f32 %v2268, %v2238
      %v2285 = vadd.f32 %v2269, %v2243
      %v2286 = vadd.f32 %v2270, %v2248
      %v2287 = vadd.f32 %v2271, %v2253
      %2288 = vst [vmem:[#allocation4] sm:$0xff] %v2272
      %2289 = vst [vmem:[#allocation4 + $0x8] sm:$0xff] %v2273
      %2290 = vst [vmem:[#allocation4 + $0x10] sm:$0xff] %v2274
      %2291 = vst [vmem:[#allocation4 + $0x18] sm:$0xff] %v2275
      %2292 = vst [vmem:[#allocation4 + $0x20] sm:$0xff] %v2276
      %2293 = vst [vmem:[#allocation4 + $0x28] sm:$0xff] %v2277
      %2294 = vst [vmem:[#allocation4 + $0x30] sm:$0xff] %v2278
      %2295 = vst [vmem:[#allocation4 + $0x38] sm:$0xff] %v2279
      %2296 = vst [vmem:[#allocation4 + $0x40] sm:$0xff] %v2280
      %2297 = vst [vmem:[#allocation4 + $0x48] sm:$0xff] %v2281
      %2298 = vst [vmem:[#allocation4 + $0x50] sm:$0xff] %v2282
      %2299 = vst [vmem:[#allocation4 + $0x58] sm:$0xff] %v2283
      %2300 = vst [vmem:[#allocation4 + $0x60] sm:$0xff] %v2284
      %2301 = vst [vmem:[#allocation4 + $0x68] sm:$0xff] %v2285
      %2302 = vst [vmem:[#allocation4 + $0x70] sm:$0xff] %v2286
      %2303 = vst [vmem:[#allocation4 + $0x78] sm:$0xff] %v2287
      %v2304 = vld [vmem:[#allocation4] sm:$0xff]
      %v2305 = vld [vmem:[#allocation4 + $0x8] sm:$0xff]
      %v2306 = vld [vmem:[#allocation4 + $0x10] sm:$0xff]
      %v2307 = vld [vmem:[#allocation4 + $0x18] sm:$0xff]
      %v2308 = vld [vmem:[#allocation4 + $0x20] sm:$0xff]
      %v2309 = vld [vmem:[#allocation4 + $0x28] sm:$0xff]
      %v2310 = vld [vmem:[#allocation4 + $0x30] sm:$0xff]
      %v2311 = vld [vmem:[#allocation4 + $0x38] sm:$0xff]
      %v2312 = vld [vmem:[#allocation4 + $0x40] sm:$0xff]
      %v2313 = vld [vmem:[#allocation4 + $0x48] sm:$0xff]
      %v2314 = vld [vmem:[#allocation4 + $0x50] sm:$0xff]
      %v2315 = vld [vmem:[#allocation4 + $0x58] sm:$0xff]
      %v2316 = vld [vmem:[#allocation4 + $0x60] sm:$0xff]
      %v2317 = vld [vmem:[#allocation4 + $0x68] sm:$0xff]
      %v2318 = vld [vmem:[#allocation4 + $0x70] sm:$0xff]
      %v2319 = vld [vmem:[#allocation4 + $0x78] sm:$0xff]
      %v2320 = vadd.f32 %v2304, %v2305
      %v2321 = vadd.f32 %v2320, %v2306
      %v2322 = vadd.f32 %v2321, %v2307
      %v2323 = vadd.f32 %v2322, %v2308
      %v2324 = vadd.f32 %v2323, %v2309
      %v2325 = vadd.f32 %v2324, %v2310
      %v2326 = vadd.f32 %v2325, %v2311
      %v2327 = vrot.slane %v2326, 4
      %v2328 = vadd.f32 %v2326, %v2327
      %v2329 = vrot.slane %v2328, 2
      %v2330 = vadd.f32 %v2328, %v2329
      %v2331 = vrot.slane %v2330, 1
      %v2332 = vadd.f32 %v2330, %v2331
      %v2333 = vadd.f32 %v2312, %v2313
      %v2334 = vadd.f32 %v2333, %v2314
      %v2335 = vadd.f32 %v2334, %v2315
      %v2336 = vadd.f32 %v2335, %v2316
      %v2337 = vadd.f32 %v2336, %v2317
      %v2338 = vadd.f32 %v2337, %v2318
      %v2339 = vadd.f32 %v2338, %v2319
      %v2340 = vrot.slane %v2339, 4
      %v2341 = vadd.f32 %v2339, %v2340
      %v2342 = vrot.slane %v2341, 2
      %v2343 = vadd.f32 %v2341, %v2342
      %v2344 = vrot.slane %v2343, 1
      %v2345 = vadd.f32 %v2343, %v2344
      %v2346 = vmul.f32 %v2332, 0.015625
      %v2347 = vmul.f32 %v2345, 0.015625
      %v2348 = vsub.f32 %v2304, %v2346
      %v2349 = vsub.f32 %v2305, %v2346
      %v2350 = vsub.f32 %v2306, %v2346
      %v2351 = vsub.f32 %v2307, %v2346
      %v2352 = vsub.f32 %v2308, %v2346
      %v2353 = vsub.f32 %v2309, %v2346
      %v2354 = vsub.f32 %v2310, %v2346
      %v2355 = vsub.f32 %v2311, %v2346
      %v2356 = vsub.f32 %v2312, %v2347
      %v2357 = vsub.f32 %v2313, %v2347
      %v2358 = vsub.f32 %v2314, %v2347
      %v2359 = vsub.f32 %v2315, %v2347
      %v2360 = vsub.f32 %v2316, %v2347
      %v2361 = vsub.f32 %v2317, %v2347
      %v2362 = vsub.f32 %v2318, %v2347
      %v2363 = vsub.f32 %v2319, %v2347
      %v2364 = vmul.f32 %v2348, %v2348
      %v2365 = vmul.f32 %v2349, %v2349
      %v2366 = vmul.f32 %v2350, %v2350
      %v2367 = vmul.f32 %v2351, %v2351
      %v2368 = vmul.f32 %v2352, %v2352
      %v2369 = vmul.f32 %v2353, %v2353
      %v2370 = vmul.f32 %v2354, %v2354
      %v2371 = vmul.f32 %v2355, %v2355
      %v2372 = vmul.f32 %v2356, %v2356
      %v2373 = vmul.f32 %v2357, %v2357
      %v2374 = vmul.f32 %v2358, %v2358
      %v2375 = vmul.f32 %v2359, %v2359
      %v2376 = vmul.f32 %v2360, %v2360
      %v2377 = vmul.f32 %v2361, %v2361
      %v2378 = vmul.f32 %v2362, %v2362
      %v2379 = vmul.f32 %v2363, %v2363
      %v2380 = vadd.f32 %v2364, %v2365
      %v2381 = vadd.f32 %v2380, %v2366
      %v2382 = vadd.f32 %v2381, %v2367
      %v2383 = vadd.f32 %v2382, %v2368
      %v2384 = vadd.f32 %v2383, %v2369
      %v2385 = vadd.f32 %v2384, %v2370
      %v2386 = vadd.f32 %v2385, %v2371
      %v2387 = vrot.slane %v2386, 4
      %v2388 = vadd.f32 %v2386, %v2387
      %v2389 = vrot.slane %v2388, 2
      %v2390 = vadd.f32 %v2388, %v2389
      %v2391 = vrot.slane %v2390, 1
      %v2392 = vadd.f32 %v2390, %v2391
      %v2393 = vadd.f32 %v2372, %v2373
      %v2394 = vadd.f32 %v2393, %v2374
      %v2395 = vadd.f32 %v2394, %v2375
      %v2396 = vadd.f32 %v2395, %v2376
      %v2397 = vadd.f32 %v2396, %v2377
      %v2398 = vadd.f32 %v2397, %v2378
      %v2399 = vadd.f32 %v2398, %v2379
      %v2400 = vrot.slane %v2399, 4
      %v2401 = vadd.f32 %v2399, %v2400
      %v2402 = vrot.slane %v2401, 2
      %v2403 = vadd.f32 %v2401, %v2402
      %v2404 = vrot.slane %v2403, 1
      %v2405 = vadd.f32 %v2403, %v2404
      %v2406 = vmul.f32 %v2392, 0.015625
      %v2407 = vmul.f32 %v2405, 0.015625
      %v2408 = vadd.f32 %v2406, 1e-05
      %v2409 = vadd.f32 %v2407, 1e-05
      %v2410 = vrsqrt.pop %v2408
      %v2411 = vrsqrt.pop %v2409
      %v2412 = vmul.f32 %v2348, %v2410
      %v2413 = vmul.f32 %v2349, %v2410
      %v2414 = vmul.f32 %v2350, %v2410
      %v2415 = vmul.f32 %v2351, %v2410
      %v2416 = vmul.f32 %v2352, %v2410
      %v2417 = vmul.f32 %v2353, %v2410
      %v2418 = vmul.f32 %v2354, %v2410
      %v2419 = vmul.f32 %v2355, %v2410
      %v2420 = vmul.f32 %v2356, %v2411
      %v2421 = vmul.f32 %v2357, %v2411
      %v2422 = vmul.f32 %v2358, %v2411
      %v2423 = vmul.f32 %v2359, %v2411
      %v2424 = vmul.f32 %v2360, %v2411
      %v2425 = vmul.f32 %v2361, %v2411
      %v2426 = vmul.f32 %v2362, %v2411
      %v2427 = vmul.f32 %v2363, %v2411
      %v2428 = vmax.f32 %v2412, 0.0
      %v2429 = vmax.f32 %v2413, 0.0
      %v2430 = vmax.f32 %v2414, 0.0
      %v2431 = vmax.f32 %v2415, 0.0
      %v2432 = vmax.f32 %v2416, 0.0
      %v2433 = vmax.f32 %v2417, 0.0
      %v2434 = vmax.f32 %v2418, 0.0
      %v2435 = vmax.f32 %v2419, 0.0
      %v2436 = vmax.f32 %v2420, 0.0
      %v2437 = vmax.f32 %v2421, 0.0
      %v2438 = vmax.f32 %v2422, 0.0
      %v2439 = vmax.f32 %v2423, 0.0
      %v2440 = vmax.f32 %v2424, 0.0
      %v2441 = vmax.f32 %v2425, 0.0
      %v2442 = vmax.f32 %v2426, 0.0
      %v2443 = vmax.f32 %v2427, 0.0
      %2444 = vst [vmem:[%s285 + $0x1] sm:$0xff] %v2428
      %2445 = vst [vmem:[%s285 + $0x11] sm:$0xff] %v2429
      %2446 = vst [vmem:[%s285 + $0x21] sm:$0xff] %v2430
      %2447 = vst [vmem:[%s285 + $0x31] sm:$0xff] %v2431
      %2448 = vst [vmem:[%s285 + $0x41] sm:$0xff] %v2432
      %2449 = vst [vmem:[%s285 + $0x51] sm:$0xff] %v2433
      %2450 = vst [vmem:[%s285 + $0x61] sm:$0xff] %v2434
      %2451 = vst [vmem:[%s285 + $0x71] sm:$0xff] %v2435
      %2452 = vst [vmem:[%s285 + $0xa1] sm:$0xff] %v2436
      %2453 = vst [vmem:[%s285 + $0xb1] sm:$0xff] %v2437
      %2454 = vst [vmem:[%s285 + $0xc1] sm:$0xff] %v2438
      %2455 = vst [vmem:[%s285 + $0xd1] sm:$0xff] %v2439
      %2456 = vst [vmem:[%s285 + $0xe1] sm:$0xff] %v2440
      %2457 = vst [vmem:[%s285 + $0xf1] sm:$0xff] %v2441
      %2458 = vst [vmem:[%s285 + $0x101] sm:$0xff] %v2442
      %2459 = vst [vmem:[%s285 + $0x111] sm:$0xff] %v2443
      %v2460 = vld [vmem:[#allocation3] sm:$0xff]
      %v2461 = vld [vmem:[#allocation3 + $0x10] sm:$0xff]
      %v2462 = vld [vmem:[#allocation3 + $0x20] sm:$0xff]
      %v2463 = vld [vmem:[#allocation3 + $0x30] sm:$0xff]
      %v2464 = vld [vmem:[#allocation3 + $0x40] sm:$0xff]
      %v2465 = vld [vmem:[#allocation3 + $0x50] sm:$0xff]
      %v2466 = vld [vmem:[#allocation3 + $0x60] sm:$0xff]
      %v2467 = vld [vmem:[#allocation3 + $0x70] sm:$0xff]
      %v2468 = vld [vmem:[#allocation3 + $0xa0] sm:$0xff]
      %v2469 = vld [vmem:[#allocation3 + $0xb0] sm:$0xff]
      %v2470 = vld [vmem:[#allocation3 + $0xc0] sm:$0xff]
      %v2471 = vld [vmem:[#allocation3 + $0xd0] sm:$0xff]
      %v2472 = vld [vmem:[#allocation3 + $0xe0] sm:$0xff]
      %v2473 = vld [vmem:[#allocation3 + $0xf0] sm:$0xff]
      %v2474 = vld [vmem:[#allocation3 + $0x100] sm:$0xff]
      %v2475 = vld [vmem:[#allocation3 + $0x110] sm:$0xff]
      %s2476 = scalar_lea.vmem %s176, 1152
      %v2477 = vld [vmem:[%s2476] sm:$0xff]
      %v2478 = vld [vmem:[%s2476 + $0x8] sm:$0xff]
      %v2479 = vld [vmem:[%s2476 + $0x10] sm:$0xff]
      %v2480 = vld [vmem:[%s2476 + $0x18] sm:$0xff]
      %v2481 = vld [vmem:[%s2476 + $0x20] sm:$0xff]
      %v2482 = vld [vmem:[%s2476 + $0x28] sm:$0xff]
      %v2483 = vld [vmem:[%s2476 + $0x30] sm:$0xff]
      %v2484 = vld [vmem:[%s2476 + $0x38] sm:$0xff]
      %v2485 = vld [vmem:[%s2476 + $0x40] sm:$0xff]
      %v2486 = vld [vmem:[%s2476 + $0x48] sm:$0xff]
      %v2487 = vld [vmem:[%s2476 + $0x50] sm:$0xff]
      %v2488 = vld [vmem:[%s2476 + $0x58] sm:$0xff]
      %v2489 = vld [vmem:[%s2476 + $0x60] sm:$0xff]
      %v2490 = vld [vmem:[%s2476 + $0x68] sm:$0xff]
      %v2491 = vld [vmem:[%s2476 + $0x70] sm:$0xff]
      %v2492 = vld [vmem:[%s2476 + $0x78] sm:$0xff]
      %2493 = vmatprep.subr.mxu0 0.0
      %2494 = vmatpush1.msra.mxu0 %v2477
      %2495 = vmatprep.subr.mxu0 0.0
      %2496 = vmatpush1.msra.mxu0 %v2478
      %2497 = vmatprep.subr.mxu0 0.0
      %2498 = vmatpush1.msra.mxu0 %v2479
      %2499 = vmatprep.subr.mxu0 0.0
      %2500 = vmatpush1.msra.mxu0 %v2480
      %2501 = vmatprep.subr.mxu0 0.0
      %2502 = vmatpush1.msra.mxu0 %v2481
      %2503 = vmatprep.subr.mxu0 0.0
      %2504 = vmatpush1.msra.mxu0 %v2482
      %2505 = vmatprep.subr.mxu0 0.0
      %2506 = vmatpush1.msra.mxu0 %v2483
      %2507 = vmatprep.subr.mxu0 0.0
      %2508 = vmatpush1.msra.mxu0 %v2484
      %2509 = vmatprep.subr.mxu0 0.0
      %2510 = vmatpush1.msra.mxu0 %v2485
      %2511 = vmatprep.subr.mxu0 0.0
      %2512 = vmatpush1.msra.mxu0 %v2486
      %2513 = vmatprep.subr.mxu0 0.0
      %2514 = vmatpush1.msra.mxu0 %v2487
      %2515 = vmatprep.subr.mxu0 0.0
      %2516 = vmatpush1.msra.mxu0 %v2488
      %2517 = vmatprep.subr.mxu0 0.0
      %2518 = vmatpush1.msra.mxu0 %v2489
      %2519 = vmatprep.subr.mxu0 0.0
      %2520 = vmatpush1.msra.mxu0 %v2490
      %2521 = vmatprep.subr.mxu0 0.0
      %2522 = vmatpush1.msra.mxu0 %v2491
      %2523 = vmatprep.subr.mxu0 0.0
      %2524 = vmatpush1.msra.mxu0 %v2492
      %2525 = vmatprep.subr.mxu0 0.0
      %2526 = vmatpush1.msra.mxu0 0.0
      %2527 = vmatprep.subr.mxu0 0.0
      %2528 = vmatpush1.msra.mxu0 0.0
      %2529 = vmatprep.subr.mxu0 0.0
      %2530 = vmatpush1.msra.mxu0 0.0
      %2531 = vmatprep.subr.mxu0 0.0
      %2532 = vmatpush1.msra.mxu0 0.0
      %2533 = vmatprep.subr.mxu0 0.0
      %2534 = vmatpush1.msra.mxu0 0.0
      %2535 = vmatprep.subr.mxu0 0.0
      %2536 = vmatpush1.msra.mxu0 0.0
      %2537 = vmatprep.subr.mxu0 0.0
      %2538 = vmatpush1.msra.mxu0 0.0
      %2539 = vmatprep.subr.mxu0 0.0
      %2540 = vmatpush1.msra.mxu0 0.0
      %2541 = vmatprep.subr.mxu0 0.0
      %2542 = vmatpush1.msra.mxu0 0.0
      %2543 = vmatprep.subr.mxu0 0.0
      %2544 = vmatpush1.msra.mxu0 0.0
      %2545 = vmatprep.subr.mxu0 0.0
      %2546 = vmatpush1.msra.mxu0 0.0
      %2547 = vmatprep.subr.mxu0 0.0
      %2548 = vmatpush1.msra.mxu0 0.0
      %2549 = vmatprep.subr.mxu0 0.0
      %2550 = vmatpush1.msra.mxu0 0.0
      %2551 = vmatprep.subr.mxu0 0.0
      %2552 = vmatpush1.msra.mxu0 0.0
      %2553 = vmatprep.subr.mxu0 0.0
      %2554 = vmatpush1.msra.mxu0 0.0
      %2555 = vmatprep.subr.mxu0 0.0
      %2556 = vmatpush1.msra.mxu0 0.0
      %2557 = vmatprep.mubr.f32.mxu0 0.0
      %2558 = vmatmul.mubr.f32.gmra.mrb[0].mxu0 %v2460
      %v2559 = vpop.f32.mrb[0].mxu0
      %v2560 = vadd.f32 0.0, %v2559
      %v2561 = vpop.f32.mrb[0].mxu0
      %2562 = vmatprep.mubr.f32.mxu0 0.0
      %2563 = vmatmul.mubr.f32.gmra.mrb[0].mxu0 %v2461
      %v2564 = vpop.f32.mrb[0].mxu0
      %v2565 = vadd.f32 0.0, %v2564
      %v2566 = vpop.f32.mrb[0].mxu0
      %2567 = vmatprep.mubr.f32.mxu0 0.0
      %2568 = vmatmul.mubr.f32.gmra.mrb[0].mxu0 %v2462
      %v2569 = vpop.f32.mrb[0].mxu0
      %v2570 = vadd.f32 0.0, %v2569
      %v2571 = vpop.f32.mrb[0].mxu0
      %2572 = vmatprep.mubr.f32.mxu0 0.0
      %2573 = vmatmul.mubr.f32.gmra.mrb[0].mxu0 %v2463
      %v2574 = vpop.f32.mrb[0].mxu0
      %v2575 = vadd.f32 0.0, %v2574
      %v2576 = vpop.f32.mrb[0].mxu0
      %2577 = vmatprep.mubr.f32.mxu0 0.0
      %2578 = vmatmul.mubr.f32.gmra.mrb[0].mxu0 %v2464
      %v2579 = vpop.f32.mrb[0].mxu0
      %v2580 = vadd.f32 0.0, %v2579
      %v2581 = vpop.f32.mrb[0].mxu0
      %2582 = vmatprep.mubr.f32.mxu0 0.0
      %2583 = vmatmul.mubr.f32.gmra.mrb[0].mxu0 %v2465
      %v2584 = vpop.f32.mrb[0].mxu0
      %v2585 = vadd.f32 0.0, %v2584
      %v2586 = vpop.f32.mrb[0].mxu0
      %2587 = vmatprep.mubr.f32.mxu0 0.0
      %2588 = vmatmul.mubr.f32.gmra.mrb[0].mxu0 %v2466
      %v2589 = vpop.f32.mrb[0].mxu0
      %v2590 = vadd.f32 0.0, %v2589
      %v2591 = vpop.f32.mrb[0].mxu0
      %2592 = vmatprep.mubr.f32.mxu0 0.0
      %2593 = vmatmul.mubr.f32.gmra.mrb[0].mxu0 %v2467
      %v2594 = vpop.f32.mrb[0].mxu0
      %v2595 = vadd.f32 0.0, %v2594
      %v2596 = vpop.f32.mrb[0].mxu0
      %2597 = vmatprep.mubr.f32.mxu0 0.0
      %2598 = vmatmul.mubr.f32.gmra.mrb[0].mxu0 %v2468
      %v2599 = vpop.f32.mrb[0].mxu0
      %v2600 = vadd.f32 0.0, %v2599
      %v2601 = vpop.f32.mrb[0].mxu0
      %2602 = vmatprep.mubr.f32.mxu0 0.0
      %2603 = vmatmul.mubr.f32.gmra.mrb[0].mxu0 %v2469
      %v2604 = vpop.f32.mrb[0].mxu0
      %v2605 = vadd.f32 0.0, %v2604
      %v2606 = vpop.f32.mrb[0].mxu0
      %2607 = vmatprep.mubr.f32.mxu0 0.0
      %2608 = vmatmul.mubr.f32.gmra.mrb[0].mxu0 %v2470
      %v2609 = vpop.f32.mrb[0].mxu0
      %v2610 = vadd.f32 0.0, %v2609
      %v2611 = vpop.f32.mrb[0].mxu0
      %2612 = vmatprep.mubr.f32.mxu0 0.0
      %2613 = vmatmul.mubr.f32.gmra.mrb[0].mxu0 %v2471
      %v2614 = vpop.f32.mrb[0].mxu0
      %v2615 = vadd.f32 0.0, %v2614
      %v2616 = vpop.f32.mrb[0].mxu0
      %2617 = vmatprep.mubr.f32.mxu0 0.0
      %2618 = vmatmul.mubr.f32.gmra.mrb[0].mxu0 %v2472
      %v2619 = vpop.f32.mrb[0].mxu0
      %v2620 = vadd.f32 0.0, %v2619
      %v2621 = vpop.f32.mrb[0].mxu0
      %2622 = vmatprep.mubr.f32.mxu0 0.0
      %2623 = vmatmul.mubr.f32.gmra.mrb[0].mxu0 %v2473
      %v2624 = vpop.f32.mrb[0].mxu0
      %v2625 = vadd.f32 0.0, %v2624
      %v2626 = vpop.f32.mrb[0].mxu0
      %2627 = vmatprep.mubr.f32.mxu0 0.0
      %2628 = vmatmul.mubr.f32.gmra.mrb[0].mxu0 %v2474
      %v2629 = vpop.f32.mrb[0].mxu0
      %v2630 = vadd.f32 0.0, %v2629
      %v2631 = vpop.f32.mrb[0].mxu0
      %2632 = vmatprep.mubr.f32.mxu0 0.0
      %2633 = vmatmul.mubr.f32.gmra.mrb[0].mxu0 %v2475
      %v2634 = vpop.f32.mrb[0].mxu0
      %v2635 = vadd.f32 0.0, %v2634
      %v2636 = vpop.f32.mrb[0].mxu0
      %2637 = vdwg.mxu0
      %2638 = vst [vmem:[#allocation4] sm:$0xff] %v2560
      %2639 = vst [vmem:[#allocation4 + $0x8] sm:$0xff] %v2565
      %2640 = vst [vmem:[#allocation4 + $0x10] sm:$0xff] %v2570
      %2641 = vst [vmem:[#allocation4 + $0x18] sm:$0xff] %v2575
      %2642 = vst [vmem:[#allocation4 + $0x20] sm:$0xff] %v2580
      %2643 = vst [vmem:[#allocation4 + $0x28] sm:$0xff] %v2585
      %2644 = vst [vmem:[#allocation4 + $0x30] sm:$0xff] %v2590
      %2645 = vst [vmem:[#allocation4 + $0x38] sm:$0xff] %v2595
      %2646 = vst [vmem:[#allocation4 + $0x40] sm:$0xff] %v2600
      %2647 = vst [vmem:[#allocation4 + $0x48] sm:$0xff] %v2605
      %2648 = vst [vmem:[#allocation4 + $0x50] sm:$0xff] %v2610
      %2649 = vst [vmem:[#allocation4 + $0x58] sm:$0xff] %v2615
      %2650 = vst [vmem:[#allocation4 + $0x60] sm:$0xff] %v2620
      %2651 = vst [vmem:[#allocation4 + $0x68] sm:$0xff] %v2625
      %2652 = vst [vmem:[#allocation4 + $0x70] sm:$0xff] %v2630
      %2653 = vst [vmem:[#allocation4 + $0x78] sm:$0xff] %v2635
      %v2654 = vld [vmem:[#allocation3 + $0x1] sm:$0xff]
      %v2655 = vld [vmem:[#allocation3 + $0x11] sm:$0xff]
      %v2656 = vld [vmem:[#allocation3 + $0x21] sm:$0xff]
      %v2657 = vld [vmem:[#allocation3 + $0x31] sm:$0xff]
      %v2658 = vld [vmem:[#allocation3 + $0x41] sm:$0xff]
      %v2659 = vld [vmem:[#allocation3 + $0x51] sm:$0xff]
      %v2660 = vld [vmem:[#allocation3 + $0x61] sm:$0xff]
      %v2661 = vld [vmem:[#allocation3 + $0x71] sm:$0xff]
      %v2662 = vld [vmem:[#allocation3 + $0xa1] sm:$0xff]
      %v2663 = vld [vmem:[#allocation3 + $0xb1] sm:$0xff]
      %v2664 = vld [vmem:[#allocation3 + $0xc1] sm:$0xff]
      %v2665 = vld [vmem:[#allocation3 + $0xd1] sm:$0xff]
      %v2666 = vld [vmem:[#allocation3 + $0xe1] sm:$0xff]
      %v2667 = vld [vmem:[#allocation3 + $0xf1] sm:$0xff]
      %v2668 = vld [vmem:[#allocation3 + $0x101] sm:$0xff]
      %v2669 = vld [vmem:[#allocation3 + $0x111] sm:$0xff]
      %s2670 = scalar_lea.vmem %s176, 1280
      %v2671 = vld [vmem:[%s2670] sm:$0xff]
      %v2672 = vld [vmem:[%s2670 + $0x8] sm:$0xff]
      %v2673 = vld [vmem:[%s2670 + $0x10] sm:$0xff]
      %v2674 = vld [vmem:[%s2670 + $0x18] sm:$0xff]
      %v2675 = vld [vmem:[%s2670 + $0x20] sm:$0xff]
      %v2676 = vld [vmem:[%s2670 + $0x28] sm:$0xff]
      %v2677 = vld [vmem:[%s2670 + $0x30] sm:$0xff]
      %v2678 = vld [vmem:[%s2670 + $0x38] sm:$0xff]
      %v2679 = vld [vmem:[%s2670 + $0x40] sm:$0xff]
      %v2680 = vld [vmem:[%s2670 + $0x48] sm:$0xff]
      %v2681 = vld [vmem:[%s2670 + $0x50] sm:$0xff]
      %v2682 = vld [vmem:[%s2670 + $0x58] sm:$0xff]
      %v2683 = vld [vmem:[%s2670 + $0x60] sm:$0xff]
      %v2684 = vld [vmem:[%s2670 + $0x68] sm:$0xff]
      %v2685 = vld [vmem:[%s2670 + $0x70] sm:$0xff]
      %v2686 = vld [vmem:[%s2670 + $0x78] sm:$0xff]
      %2687 = vmatprep.subr.mxu0 0.0
      %2688 = vmatpush1.msra.mxu0 %v2671
      %2689 = vmatprep.subr.mxu0 0.0
      %2690 = vmatpush1.msra.mxu0 %v2672
      %2691 = vmatprep.subr.mxu0 0.0
      %2692 = vmatpush1.msra.mxu0 %v2673
      %2693 = vmatprep.subr.mxu0 0.0
      %2694 = vmatpush1.msra.mxu0 %v2674
      %2695 = vmatprep.subr.mxu0 0.0
      %2696 = vmatpush1.msra.mxu0 %v2675
      %2697 = vmatprep.subr.mxu0 0.0
      %2698 = vmatpush1.msra.mxu0 %v2676
      %2699 = vmatprep.subr.mxu0 0.0
      %2700 = vmatpush1.msra.mxu0 %v2677
      %2701 = vmatprep.subr.mxu0 0.0
      %2702 = vmatpush1.msra.mxu0 %v2678
      %2703 = vmatprep.subr.mxu0 0.0
      %2704 = vmatpush1.msra.mxu0 %v2679
      %2705 = vmatprep.subr.mxu0 0.0
      %2706 = vmatpush1.msra.mxu0 %v2680
      %2707 = vmatprep.subr.mxu0 0.0
      %2708 = vmatpush1.msra.mxu0 %v2681
      %2709 = vmatprep.subr.mxu0 0.0
      %2710 = vmatpush1.msra.mxu0 %v2682
      %2711 = vmatprep.subr.mxu0 0.0
      %2712 = vmatpush1.msra.mxu0 %v2683
      %2713 = vmatprep.subr.mxu0 0.0
      %2714 = vmatpush1.msra.mxu0 %v2684
      %2715 = vmatprep.subr.mxu0 0.0
      %2716 = vmatpush1.msra.mxu0 %v2685
      %2717 = vmatprep.subr.mxu0 0.0
      %2718 = vmatpush1.msra.mxu0 %v2686
      %2719 = vmatprep.subr.mxu0 0.0
      %2720 = vmatpush1.msra.mxu0 0.0
      %2721 = vmatprep.subr.mxu0 0.0
      %2722 = vmatpush1.msra.mxu0 0.0
      %2723 = vmatprep.subr.mxu0 0.0
      %2724 = vmatpush1.msra.mxu0 0.0
      %2725 = vmatprep.subr.mxu0 0.0
      %2726 = vmatpush1.msra.mxu0 0.0
      %2727 = vmatprep.subr.mxu0 0.0
      %2728 = vmatpush1.msra.mxu0 0.0
      %2729 = vmatprep.subr.mxu0 0.0
      %2730 = vmatpush1.msra.mxu0 0.0
      %2731 = vmatprep.subr.mxu0 0.0
      %2732 = vmatpush1.msra.mxu0 0.0
      %2733 = vmatprep.subr.mxu0 0.0
      %2734 = vmatpush1.msra.mxu0 0.0
      %2735 = vmatprep.subr.mxu0 0.0
      %2736 = vmatpush1.msra.mxu0 0.0
      %2737 = vmatprep.subr.mxu0 0.0
      %2738 = vmatpush1.msra.mxu0 0.0
      %2739 = vmatprep.subr.mxu0 0.0
      %2740 = vmatpush1.msra.mxu0 0.0
      %2741 = vmatprep.subr.mxu0 0.0
      %2742 = vmatpush1.msra.mxu0 0.0
      %2743 = vmatprep.subr.mxu0 0.0
      %2744 = vmatpush1.msra.mxu0 0.0
      %2745 = vmatprep.subr.mxu0 0.0
      %2746 = vmatpush1.msra.mxu0 0.0
      %2747 = vmatprep.subr.mxu0 0.0
      %2748 = vmatpush1.msra.mxu0 0.0
      %2749 = vmatprep.subr.mxu0 0.0
      %2750 = vmatpush1.msra.mxu0 0.0
      %2751 = vmatprep.mubr.f32.mxu0 0.0
      %2752 = vmatmul.mubr.f32.gmra.mrb[0].mxu0 %v2654
      %v2753 = vpop.f32.mrb[0].mxu0
      %v2754 = vadd.f32 0.0, %v2753
      %v2755 = vpop.f32.mrb[0].mxu0
      %2756 = vmatprep.mubr.f32.mxu0 0.0
      %2757 = vmatmul.mubr.f32.gmra.mrb[0].mxu0 %v2655
      %v2758 = vpop.f32.mrb[0].mxu0
      %v2759 = vadd.f32 0.0, %v2758
      %v2760 = vpop.f32.mrb[0].mxu0
      %2761 = vmatprep.mubr.f32.mxu0 0.0
      %2762 = vmatmul.mubr.f32.gmra.mrb[0].mxu0 %v2656
      %v2763 = vpop.f32.mrb[0].mxu0
      %v2764 = vadd.f32 0.0, %v2763
      %v2765 = vpop.f32.mrb[0].mxu0
      %2766 = vmatprep.mubr.f32.mxu0 0.0
      %2767 = vmatmul.mubr.f32.gmra.mrb[0].mxu0 %v2657
      %v2768 = vpop.f32.mrb[0].mxu0
      %v2769 = vadd.f32 0.0, %v2768
      %v2770 = vpop.f32.mrb[0].mxu0
      %2771 = vmatprep.mubr.f32.mxu0 0.0
      %2772 = vmatmul.mubr.f32.gmra.mrb[0].mxu0 %v2658
      %v2773 = vpop.f32.mrb[0].mxu0
      %v2774 = vadd.f32 0.0, %v2773
      %v2775 = vpop.f32.mrb[0].mxu0
      %2776 = vmatprep.mubr.f32.mxu0 0.0
      %2777 = vmatmul.mubr.f32.gmra.mrb[0].mxu0 %v2659
      %v2778 = vpop.f32.mrb[0].mxu0
      %v2779 = vadd.f32 0.0, %v2778
      %v2780 = vpop.f32.mrb[0].mxu0
      %2781 = vmatprep.mubr.f32.mxu0 0.0
      %2782 = vmatmul.mubr.f32.gmra.mrb[0].mxu0 %v2660
      %v2783 = vpop.f32.mrb[0].mxu0
      %v2784 = vadd.f32 0.0, %v2783
      %v2785 = vpop.f32.mrb[0].mxu0
      %2786 = vmatprep.mubr.f32.mxu0 0.0
      %2787 = vmatmul.mubr.f32.gmra.mrb[0].mxu0 %v2661
      %v2788 = vpop.f32.mrb[0].mxu0
      %v2789 = vadd.f32 0.0, %v2788
      %v2790 = vpop.f32.mrb[0].mxu0
      %2791 = vmatprep.mubr.f32.mxu0 0.0
      %2792 = vmatmul.mubr.f32.gmra.mrb[0].mxu0 %v2662
      %v2793 = vpop.f32.mrb[0].mxu0
      %v2794 = vadd.f32 0.0, %v2793
      %v2795 = vpop.f32.mrb[0].mxu0
      %2796 = vmatprep.mubr.f32.mxu0 0.0
      %2797 = vmatmul.mubr.f32.gmra.mrb[0].mxu0 %v2663
      %v2798 = vpop.f32.mrb[0].mxu0
      %v2799 = vadd.f32 0.0, %v2798
      %v2800 = vpop.f32.mrb[0].mxu0
      %2801 = vmatprep.mubr.f32.mxu0 0.0
      %2802 = vmatmul.mubr.f32.gmra.mrb[0].mxu0 %v2664
      %v2803 = vpop.f32.mrb[0].mxu0
      %v2804 = vadd.f32 0.0, %v2803
      %v2805 = vpop.f32.mrb[0].mxu0
      %2806 = vmatprep.mubr.f32.mxu0 0.0
      %2807 = vmatmul.mubr.f32.gmra.mrb[0].mxu0 %v2665
      %v2808 = vpop.f32.mrb[0].mxu0
      %v2809 = vadd.f32 0.0, %v2808
      %v2810 = vpop.f32.mrb[0].mxu0
      %2811 = vmatprep.mubr.f32.mxu0 0.0
      %2812 = vmatmul.mubr.f32.gmra.mrb[0].mxu0 %v2666
      %v2813 = vpop.f32.mrb[0].mxu0
      %v2814 = vadd.f32 0.0, %v2813
      %v2815 = vpop.f32.mrb[0].mxu0
      %2816 = vmatprep.mubr.f32.mxu0 0.0
      %2817 = vmatmul.mubr.f32.gmra.mrb[0].mxu0 %v2667
      %v2818 = vpop.f32.mrb[0].mxu0
      %v2819 = vadd.f32 0.0, %v2818
      %v2820 = vpop.f32.mrb[0].mxu0
      %2821 = vmatprep.mubr.f32.mxu0 0.0
      %2822 = vmatmul.mubr.f32.gmra.mrb[0].mxu0 %v2668
      %v2823 = vpop.f32.mrb[0].mxu0
      %v2824 = vadd.f32 0.0, %v2823
      %v2825 = vpop.f32.mrb[0].mxu0
      %2826 = vmatprep.mubr.f32.mxu0 0.0
      %2827 = vmatmul.mubr.f32.gmra.mrb[0].mxu0 %v2669
      %v2828 = vpop.f32.mrb[0].mxu0
      %v2829 = vadd.f32 0.0, %v2828
      %v2830 = vpop.f32.mrb[0].mxu0
      %2831 = vdwg.mxu0
      %v2832 = vld [vmem:[#allocation4] sm:$0xff]
      %v2833 = vld [vmem:[#allocation4 + $0x8] sm:$0xff]
      %v2834 = vld [vmem:[#allocation4 + $0x10] sm:$0xff]
      %v2835 = vld [vmem:[#allocation4 + $0x18] sm:$0xff]
      %v2836 = vld [vmem:[#allocation4 + $0x20] sm:$0xff]
      %v2837 = vld [vmem:[#allocation4 + $0x28] sm:$0xff]
      %v2838 = vld [vmem:[#allocation4 + $0x30] sm:$0xff]
      %v2839 = vld [vmem:[#allocation4 + $0x38] sm:$0xff]
      %v2840 = vld [vmem:[#allocation4 + $0x40] sm:$0xff]
      %v2841 = vld [vmem:[#allocation4 + $0x48] sm:$0xff]
      %v2842 = vld [vmem:[#allocation4 + $0x50] sm:$0xff]
      %v2843 = vld [vmem:[#allocation4 + $0x58] sm:$0xff]
      %v2844 = vld [vmem:[#allocation4 + $0x60] sm:$0xff]
      %v2845 = vld [vmem:[#allocation4 + $0x68] sm:$0xff]
      %v2846 = vld [vmem:[#allocation4 + $0x70] sm:$0xff]
      %v2847 = vld [vmem:[#allocation4 + $0x78] sm:$0xff]
      %v2848 = vadd.f32 %v2832, %v2754
      %v2849 = vadd.f32 %v2833, %v2759
      %v2850 = vadd.f32 %v2834, %v2764
      %v2851 = vadd.f32 %v2835, %v2769
      %v2852 = vadd.f32 %v2836, %v2774
      %v2853 = vadd.f32 %v2837, %v2779
      %v2854 = vadd.f32 %v2838, %v2784
      %v2855 = vadd.f32 %v2839, %v2789
      %v2856 = vadd.f32 %v2840, %v2794
      %v2857 = vadd.f32 %v2841, %v2799
      %v2858 = vadd.f32 %v2842, %v2804
      %v2859 = vadd.f32 %v2843, %v2809
      %v2860 = vadd.f32 %v2844, %v2814
      %v2861 = vadd.f32 %v2845, %v2819
      %v2862 = vadd.f32 %v2846, %v2824
      %v2863 = vadd.f32 %v2847, %v2829
      %2864 = vst [vmem:[#allocation4] sm:$0xff] %v2848
      %2865 = vst [vmem:[#allocation4 + $0x8] sm:$0xff] %v2849
      %2866 = vst [vmem:[#allocation4 + $0x10] sm:$0xff] %v2850
      %2867 = vst [vmem:[#allocation4 + $0x18] sm:$0xff] %v2851
      %2868 = vst [vmem:[#allocation4 + $0x20] sm:$0xff] %v2852
      %2869 = vst [vmem:[#allocation4 + $0x28] sm:$0xff] %v2853
      %2870 = vst [vmem:[#allocation4 + $0x30] sm:$0xff] %v2854
      %2871 = vst [vmem:[#allocation4 + $0x38] sm:$0xff] %v2855
      %2872 = vst [vmem:[#allocation4 + $0x40] sm:$0xff] %v2856
      %2873 = vst [vmem:[#allocation4 + $0x48] sm:$0xff] %v2857
      %2874 = vst [vmem:[#allocation4 + $0x50] sm:$0xff] %v2858
      %2875 = vst [vmem:[#allocation4 + $0x58] sm:$0xff] %v2859
      %2876 = vst [vmem:[#allocation4 + $0x60] sm:$0xff] %v2860
      %2877 = vst [vmem:[#allocation4 + $0x68] sm:$0xff] %v2861
      %2878 = vst [vmem:[#allocation4 + $0x70] sm:$0xff] %v2862
      %2879 = vst [vmem:[#allocation4 + $0x78] sm:$0xff] %v2863
      %v2880 = vld [vmem:[#allocation3 + $0x2] sm:$0xff]
      %v2881 = vld [vmem:[#allocation3 + $0x12] sm:$0xff]
      %v2882 = vld [vmem:[#allocation3 + $0x22] sm:$0xff]
      %v2883 = vld [vmem:[#allocation3 + $0x32] sm:$0xff]
      %v2884 = vld [vmem:[#allocation3 + $0x42] sm:$0xff]
      %v2885 = vld [vmem:[#allocation3 + $0x52] sm:$0xff]
      %v2886 = vld [vmem:[#allocation3 + $0x62] sm:$0xff]
      %v2887 = vld [vmem:[#allocation3 + $0x72] sm:$0xff]
      %v2888 = vld [vmem:[#allocation3 + $0xa2] sm:$0xff]
      %v2889 = vld [vmem:[#allocation3 + $0xb2] sm:$0xff]
      %v2890 = vld [vmem:[#allocation3 + $0xc2] sm:$0xff]
      %v2891 = vld [vmem:[#allocation3 + $0xd2] sm:$0xff]
      %v2892 = vld [vmem:[#allocation3 + $0xe2] sm:$0xff]
      %v2893 = vld [vmem:[#allocation3 + $0xf2] sm:$0xff]
      %v2894 = vld [vmem:[#allocation3 + $0x102] sm:$0xff]
      %v2895 = vld [vmem:[#allocation3 + $0x112] sm:$0xff]
      %s2896 = scalar_lea.vmem %s176, 1408
      %v2897 = vld [vmem:[%s2896] sm:$0xff]
      %v2898 = vld [vmem:[%s2896 + $0x8] sm:$0xff]
      %v2899 = vld [vmem:[%s2896 + $0x10] sm:$0xff]
      %v2900 = vld [vmem:[%s2896 + $0x18] sm:$0xff]
      %v2901 = vld [vmem:[%s2896 + $0x20] sm:$0xff]
      %v2902 = vld [vmem:[%s2896 + $0x28] sm:$0xff]
      %v2903 = vld [vmem:[%s2896 + $0x30] sm:$0xff]
      %v2904 = vld [vmem:[%s2896 + $0x38] sm:$0xff]
      %v2905 = vld [vmem:[%s2896 + $0x40] sm:$0xff]
      %v2906 = vld [vmem:[%s2896 + $0x48] sm:$0xff]
      %v2907 = vld [vmem:[%s2896 + $0x50] sm:$0xff]
      %v2908 = vld [vmem:[%s2896 + $0x58] sm:$0xff]
      %v2909 = vld [vmem:[%s2896 + $0x60] sm:$0xff]
      %v2910 = vld [vmem:[%s2896 + $0x68] sm:$0xff]
      %v2911 = vld [vmem:[%s2896 + $0x70] sm:$0xff]
      %v2912 = vld [vmem:[%s2896 + $0x78] sm:$0xff]
      %2913 = vmatprep.subr.mxu0 0.0
      %2914 = vmatpush1.msra.mxu0 %v2897
      %2915 = vmatprep.subr.mxu0 0.0
      %2916 = vmatpush1.msra.mxu0 %v2898
      %2917 = vmatprep.subr.mxu0 0.0
      %2918 = vmatpush1.msra.mxu0 %v2899
      %2919 = vmatprep.subr.mxu0 0.0
      %2920 = vmatpush1.msra.mxu0 %v2900
      %2921 = vmatprep.subr.mxu0 0.0
      %2922 = vmatpush1.msra.mxu0 %v2901
      %2923 = vmatprep.subr.mxu0 0.0
      %2924 = vmatpush1.msra.mxu0 %v2902
      %2925 = vmatprep.subr.mxu0 0.0
      %2926 = vmatpush1.msra.mxu0 %v2903
      %2927 = vmatprep.subr.mxu0 0.0
      %2928 = vmatpush1.msra.mxu0 %v2904
      %2929 = vmatprep.subr.mxu0 0.0
      %2930 = vmatpush1.msra.mxu0 %v2905
      %2931 = vmatprep.subr.mxu0 0.0
      %2932 = vmatpush1.msra.mxu0 %v2906
      %2933 = vmatprep.subr.mxu0 0.0
      %2934 = vmatpush1.msra.mxu0 %v2907
      %2935 = vmatprep.subr.mxu0 0.0
      %2936 = vmatpush1.msra.mxu0 %v2908
      %2937 = vmatprep.subr.mxu0 0.0
      %2938 = vmatpush1.msra.mxu0 %v2909
      %2939 = vmatprep.subr.mxu0 0.0
      %2940 = vmatpush1.msra.mxu0 %v2910
      %2941 = vmatprep.subr.mxu0 0.0
      %2942 = vmatpush1.msra.mxu0 %v2911
      %2943 = vmatprep.subr.mxu0 0.0
      %2944 = vmatpush1.msra.mxu0 %v2912
      %2945 = vmatprep.subr.mxu0 0.0
      %2946 = vmatpush1.msra.mxu0 0.0
      %2947 = vmatprep.subr.mxu0 0.0
      %2948 = vmatpush1.msra.mxu0 0.0
      %2949 = vmatprep.subr.mxu0 0.0
      %2950 = vmatpush1.msra.mxu0 0.0
      %2951 = vmatprep.subr.mxu0 0.0
      %2952 = vmatpush1.msra.mxu0 0.0
      %2953 = vmatprep.subr.mxu0 0.0
      %2954 = vmatpush1.msra.mxu0 0.0
      %2955 = vmatprep.subr.mxu0 0.0
      %2956 = vmatpush1.msra.mxu0 0.0
      %2957 = vmatprep.subr.mxu0 0.0
      %2958 = vmatpush1.msra.mxu0 0.0
      %2959 = vmatprep.subr.mxu0 0.0
      %2960 = vmatpush1.msra.mxu0 0.0
      %2961 = vmatprep.subr.mxu0 0.0
      %2962 = vmatpush1.msra.mxu0 0.0
      %2963 = vmatprep.subr.mxu0 0.0
      %2964 = vmatpush1.msra.mxu0 0.0
      %2965 = vmatprep.subr.mxu0 0.0
      %2966 = vmatpush1.msra.mxu0 0.0
      %2967 = vmatprep.subr.mxu0 0.0
      %2968 = vmatpush1.msra.mxu0 0.0
      %2969 = vmatprep.subr.mxu0 0.0
      %2970 = vmatpush1.msra.mxu0 0.0
      %2971 = vmatprep.subr.mxu0 0.0
      %2972 = vmatpush1.msra.mxu0 0.0
      %2973 = vmatprep.subr.mxu0 0.0
      %2974 = vmatpush1.msra.mxu0 0.0
      %2975 = vmatprep.subr.mxu0 0.0
      %2976 = vmatpush1.msra.mxu0 0.0
      %2977 = vmatprep.mubr.f32.mxu0 0.0
      %2978 = vmatmul.mubr.f32.gmra.mrb[0].mxu0 %v2880
      %v2979 = vpop.f32.mrb[0].mxu0
      %v2980 = vadd.f32 0.0, %v2979
      %v2981 = vpop.f32.mrb[0].mxu0
      %2982 = vmatprep.mubr.f32.mxu0 0.0
      %2983 = vmatmul.mubr.f32.gmra.mrb[0].mxu0 %v2881
      %v2984 = vpop.f32.mrb[0].mxu0
      %v2985 = vadd.f32 0.0, %v2984
      %v2986 = vpop.f32.mrb[0].mxu0
      %2987 = vmatprep.mubr.f32.mxu0 0.0
      %2988 = vmatmul.mubr.f32.gmra.mrb[0].mxu0 %v2882
      %v2989 = vpop.f32.mrb[0].mxu0
      %v2990 = vadd.f32 0.0, %v2989
      %v2991 = vpop.f32.mrb[0].mxu0
      %2992 = vmatprep.mubr.f32.mxu0 0.0
      %2993 = vmatmul.mubr.f32.gmra.mrb[0].mxu0 %v2883
      %v2994 = vpop.f32.mrb[0].mxu0
      %v2995 = vadd.f32 0.0, %v2994
      %v2996 = vpop.f32.mrb[0].mxu0
      %2997 = vmatprep.mubr.f32.mxu0 0.0
      %2998 = vmatmul.mubr.f32.gmra.mrb[0].mxu0 %v2884
      %v2999 = vpop.f32.mrb[0].mxu0
      %v3000 = vadd.f32 0.0, %v2999
      %v3001 = vpop.f32.mrb[0].mxu0
      %3002 = vmatprep.mubr.f32.mxu0 0.0
      %3003 = vmatmul.mubr.f32.gmra.mrb[0].mxu0 %v2885
      %v3004 = vpop.f32.mrb[0].mxu0
      %v3005 = vadd.f32 0.0, %v3004
      %v3006 = vpop.f32.mrb[0].mxu0
      %3007 = vmatprep.mubr.f32.mxu0 0.0
      %3008 = vmatmul.mubr.f32.gmra.mrb[0].mxu0 %v2886
      %v3009 = vpop.f32.mrb[0].mxu0
      %v3010 = vadd.f32 0.0, %v3009
      %v3011 = vpop.f32.mrb[0].mxu0
      %3012 = vmatprep.mubr.f32.mxu0 0.0
      %3013 = vmatmul.mubr.f32.gmra.mrb[0].mxu0 %v2887
      %v3014 = vpop.f32.mrb[0].mxu0
      %v3015 = vadd.f32 0.0, %v3014
      %v3016 = vpop.f32.mrb[0].mxu0
      %3017 = vmatprep.mubr.f32.mxu0 0.0
      %3018 = vmatmul.mubr.f32.gmra.mrb[0].mxu0 %v2888
      %v3019 = vpop.f32.mrb[0].mxu0
      %v3020 = vadd.f32 0.0, %v3019
      %v3021 = vpop.f32.mrb[0].mxu0
      %3022 = vmatprep.mubr.f32.mxu0 0.0
      %3023 = vmatmul.mubr.f32.gmra.mrb[0].mxu0 %v2889
      %v3024 = vpop.f32.mrb[0].mxu0
      %v3025 = vadd.f32 0.0, %v3024
      %v3026 = vpop.f32.mrb[0].mxu0
      %3027 = vmatprep.mubr.f32.mxu0 0.0
      %3028 = vmatmul.mubr.f32.gmra.mrb[0].mxu0 %v2890
      %v3029 = vpop.f32.mrb[0].mxu0
      %v3030 = vadd.f32 0.0, %v3029
      %v3031 = vpop.f32.mrb[0].mxu0
      %3032 = vmatprep.mubr.f32.mxu0 0.0
      %3033 = vmatmul.mubr.f32.gmra.mrb[0].mxu0 %v2891
      %v3034 = vpop.f32.mrb[0].mxu0
      %v3035 = vadd.f32 0.0, %v3034
      %v3036 = vpop.f32.mrb[0].mxu0
      %3037 = vmatprep.mubr.f32.mxu0 0.0
      %3038 = vmatmul.mubr.f32.gmra.mrb[0].mxu0 %v2892
      %v3039 = vpop.f32.mrb[0].mxu0
      %v3040 = vadd.f32 0.0, %v3039
      %v3041 = vpop.f32.mrb[0].mxu0
      %3042 = vmatprep.mubr.f32.mxu0 0.0
      %3043 = vmatmul.mubr.f32.gmra.mrb[0].mxu0 %v2893
      %v3044 = vpop.f32.mrb[0].mxu0
      %v3045 = vadd.f32 0.0, %v3044
      %v3046 = vpop.f32.mrb[0].mxu0
      %3047 = vmatprep.mubr.f32.mxu0 0.0
      %3048 = vmatmul.mubr.f32.gmra.mrb[0].mxu0 %v2894
      %v3049 = vpop.f32.mrb[0].mxu0
      %v3050 = vadd.f32 0.0, %v3049
      %v3051 = vpop.f32.mrb[0].mxu0
      %3052 = vmatprep.mubr.f32.mxu0 0.0
      %3053 = vmatmul.mubr.f32.gmra.mrb[0].mxu0 %v2895
      %v3054 = vpop.f32.mrb[0].mxu0
      %v3055 = vadd.f32 0.0, %v3054
      %v3056 = vpop.f32.mrb[0].mxu0
      %3057 = vdwg.mxu0
      %v3058 = vld [vmem:[#allocation4] sm:$0xff]
      %v3059 = vld [vmem:[#allocation4 + $0x8] sm:$0xff]
      %v3060 = vld [vmem:[#allocation4 + $0x10] sm:$0xff]
      %v3061 = vld [vmem:[#allocation4 + $0x18] sm:$0xff]
      %v3062 = vld [vmem:[#allocation4 + $0x20] sm:$0xff]
      %v3063 = vld [vmem:[#allocation4 + $0x28] sm:$0xff]
      %v3064 = vld [vmem:[#allocation4 + $0x30] sm:$0xff]
      %v3065 = vld [vmem:[#allocation4 + $0x38] sm:$0xff]
      %v3066 = vld [vmem:[#allocation4 + $0x40] sm:$0xff]
      %v3067 = vld [vmem:[#allocation4 + $0x48] sm:$0xff]
      %v3068 = vld [vmem:[#allocation4 + $0x50] sm:$0xff]
      %v3069 = vld [vmem:[#allocation4 + $0x58] sm:$0xff]
      %v3070 = vld [vmem:[#allocation4 + $0x60] sm:$0xff]
      %v3071 = vld [vmem:[#allocation4 + $0x68] sm:$0xff]
      %v3072 = vld [vmem:[#allocation4 + $0x70] sm:$0xff]
      %v3073 = vld [vmem:[#allocation4 + $0x78] sm:$0xff]
      %v3074 = vadd.f32 %v3058, %v2980
      %v3075 = vadd.f32 %v3059, %v2985
      %v3076 = vadd.f32 %v3060, %v2990
      %v3077 = vadd.f32 %v3061, %v2995
      %v3078 = vadd.f32 %v3062, %v3000
      %v3079 = vadd.f32 %v3063, %v3005
      %v3080 = vadd.f32 %v3064, %v3010
      %v3081 = vadd.f32 %v3065, %v3015
      %v3082 = vadd.f32 %v3066, %v3020
      %v3083 = vadd.f32 %v3067, %v3025
      %v3084 = vadd.f32 %v3068, %v3030
      %v3085 = vadd.f32 %v3069, %v3035
      %v3086 = vadd.f32 %v3070, %v3040
      %v3087 = vadd.f32 %v3071, %v3045
      %v3088 = vadd.f32 %v3072, %v3050
      %v3089 = vadd.f32 %v3073, %v3055
      %3090 = vst [vmem:[#allocation4] sm:$0xff] %v3074
      %3091 = vst [vmem:[#allocation4 + $0x8] sm:$0xff] %v3075
      %3092 = vst [vmem:[#allocation4 + $0x10] sm:$0xff] %v3076
      %3093 = vst [vmem:[#allocation4 + $0x18] sm:$0xff] %v3077
      %3094 = vst [vmem:[#allocation4 + $0x20] sm:$0xff] %v3078
      %3095 = vst [vmem:[#allocation4 + $0x28] sm:$0xff] %v3079
      %3096 = vst [vmem:[#allocation4 + $0x30] sm:$0xff] %v3080
      %3097 = vst [vmem:[#allocation4 + $0x38] sm:$0xff] %v3081
      %3098 = vst [vmem:[#allocation4 + $0x40] sm:$0xff] %v3082
      %3099 = vst [vmem:[#allocation4 + $0x48] sm:$0xff] %v3083
      %3100 = vst [vmem:[#allocation4 + $0x50] sm:$0xff] %v3084
      %3101 = vst [vmem:[#allocation4 + $0x58] sm:$0xff] %v3085
      %3102 = vst [vmem:[#allocation4 + $0x60] sm:$0xff] %v3086
      %3103 = vst [vmem:[#allocation4 + $0x68] sm:$0xff] %v3087
      %3104 = vst [vmem:[#allocation4 + $0x70] sm:$0xff] %v3088
      %3105 = vst [vmem:[#allocation4 + $0x78] sm:$0xff] %v3089
      %v3106 = vld [vmem:[%s285] sm:$0xff]
      %v3107 = vld [vmem:[%s285 + $0x10] sm:$0xff]
      %v3108 = vld [vmem:[%s285 + $0x20] sm:$0xff]
      %v3109 = vld [vmem:[%s285 + $0x30] sm:$0xff]
      %v3110 = vld [vmem:[%s285 + $0x40] sm:$0xff]
      %v3111 = vld [vmem:[%s285 + $0x50] sm:$0xff]
      %v3112 = vld [vmem:[%s285 + $0x60] sm:$0xff]
      %v3113 = vld [vmem:[%s285 + $0x70] sm:$0xff]
      %v3114 = vld [vmem:[%s285 + $0xa0] sm:$0xff]
      %v3115 = vld [vmem:[%s285 + $0xb0] sm:$0xff]
      %v3116 = vld [vmem:[%s285 + $0xc0] sm:$0xff]
      %v3117 = vld [vmem:[%s285 + $0xd0] sm:$0xff]
      %v3118 = vld [vmem:[%s285 + $0xe0] sm:$0xff]
      %v3119 = vld [vmem:[%s285 + $0xf0] sm:$0xff]
      %v3120 = vld [vmem:[%s285 + $0x100] sm:$0xff]
      %v3121 = vld [vmem:[%s285 + $0x110] sm:$0xff]
      %s3122 = scalar_lea.vmem %s176, 1536
      %v3123 = vld [vmem:[%s3122] sm:$0xff]
      %v3124 = vld [vmem:[%s3122 + $0x8] sm:$0xff]
      %v3125 = vld [vmem:[%s3122 + $0x10] sm:$0xff]
      %v3126 = vld [vmem:[%s3122 + $0x18] sm:$0xff]
      %v3127 = vld [vmem:[%s3122 + $0x20] sm:$0xff]
      %v3128 = vld [vmem:[%s3122 + $0x28] sm:$0xff]
      %v3129 = vld [vmem:[%s3122 + $0x30] sm:$0xff]
      %v3130 = vld [vmem:[%s3122 + $0x38] sm:$0xff]
      %v3131 = vld [vmem:[%s3122 + $0x40] sm:$0xff]
      %v3132 = vld [vmem:[%s3122 + $0x48] sm:$0xff]
      %v3133 = vld [vmem:[%s3122 + $0x50] sm:$0xff]
      %v3134 = vld [vmem:[%s3122 + $0x58] sm:$0xff]
      %v3135 = vld [vmem:[%s3122 + $0x60] sm:$0xff]
      %v3136 = vld [vmem:[%s3122 + $0x68] sm:$0xff]
      %v3137 = vld [vmem:[%s3122 + $0x70] sm:$0xff]
      %v3138 = vld [vmem:[%s3122 + $0x78] sm:$0xff]
      %3139 = vmatprep.subr.mxu0 0.0
      %3140 = vmatpush1.msra.mxu0 %v3123
      %3141 = vmatprep.subr.mxu0 0.0
      %3142 = vmatpush1.msra.mxu0 %v3124
      %3143 = vmatprep.subr.mxu0 0.0
      %3144 = vmatpush1.msra.mxu0 %v3125
      %3145 = vmatprep.subr.mxu0 0.0
      %3146 = vmatpush1.msra.mxu0 %v3126
      %3147 = vmatprep.subr.mxu0 0.0
      %3148 = vmatpush1.msra.mxu0 %v3127
      %3149 = vmatprep.subr.mxu0 0.0
      %3150 = vmatpush1.msra.mxu0 %v3128
      %3151 = vmatprep.subr.mxu0 0.0
      %3152 = vmatpush1.msra.mxu0 %v3129
      %3153 = vmatprep.subr.mxu0 0.0
      %3154 = vmatpush1.msra.mxu0 %v3130
      %3155 = vmatprep.subr.mxu0 0.0
      %3156 = vmatpush1.msra.mxu0 %v3131
      %3157 = vmatprep.subr.mxu0 0.0
      %3158 = vmatpush1.msra.mxu0 %v3132
      %3159 = vmatprep.subr.mxu0 0.0
      %3160 = vmatpush1.msra.mxu0 %v3133
      %3161 = vmatprep.subr.mxu0 0.0
      %3162 = vmatpush1.msra.mxu0 %v3134
      %3163 = vmatprep.subr.mxu0 0.0
      %3164 = vmatpush1.msra.mxu0 %v3135
      %3165 = vmatprep.subr.mxu0 0.0
      %3166 = vmatpush1.msra.mxu0 %v3136
      %3167 = vmatprep.subr.mxu0 0.0
      %3168 = vmatpush1.msra.mxu0 %v3137
      %3169 = vmatprep.subr.mxu0 0.0
      %3170 = vmatpush1.msra.mxu0 %v3138
      %3171 = vmatprep.subr.mxu0 0.0
      %3172 = vmatpush1.msra.mxu0 0.0
      %3173 = vmatprep.subr.mxu0 0.0
      %3174 = vmatpush1.msra.mxu0 0.0
      %3175 = vmatprep.subr.mxu0 0.0
      %3176 = vmatpush1.msra.mxu0 0.0
      %3177 = vmatprep.subr.mxu0 0.0
      %3178 = vmatpush1.msra.mxu0 0.0
      %3179 = vmatprep.subr.mxu0 0.0
      %3180 = vmatpush1.msra.mxu0 0.0
      %3181 = vmatprep.subr.mxu0 0.0
      %3182 = vmatpush1.msra.mxu0 0.0
      %3183 = vmatprep.subr.mxu0 0.0
      %3184 = vmatpush1.msra.mxu0 0.0
      %3185 = vmatprep.subr.mxu0 0.0
      %3186 = vmatpush1.msra.mxu0 0.0
      %3187 = vmatprep.subr.mxu0 0.0
      %3188 = vmatpush1.msra.mxu0 0.0
      %3189 = vmatprep.subr.mxu0 0.0
      %3190 = vmatpush1.msra.mxu0 0.0
      %3191 = vmatprep.subr.mxu0 0.0
      %3192 = vmatpush1.msra.mxu0 0.0
      %3193 = vmatprep.subr.mxu0 0.0
      %3194 = vmatpush1.msra.mxu0 0.0
      %3195 = vmatprep.subr.mxu0 0.0
      %3196 = vmatpush1.msra.mxu0 0.0
      %3197 = vmatprep.subr.mxu0 0.0
      %3198 = vmatpush1.msra.mxu0 0.0
      %3199 = vmatprep.subr.mxu0 0.0
      %3200 = vmatpush1.msra.mxu0 0.0
      %3201 = vmatprep.subr.mxu0 0.0
      %3202 = vmatpush1.msra.mxu0 0.0
      %3203 = vmatprep.mubr.f32.mxu0 0.0
      %3204 = vmatmul.mubr.f32.gmra.mrb[0].mxu0 %v3106
      %v3205 = vpop.f32.mrb[0].mxu0
      %v3206 = vadd.f32 0.0, %v3205
      %v3207 = vpop.f32.mrb[0].mxu0
      %3208 = vmatprep.mubr.f32.mxu0 0.0
      %3209 = vmatmul.mubr.f32.gmra.mrb[0].mxu0 %v3107
      %v3210 = vpop.f32.mrb[0].mxu0
      %v3211 = vadd.f32 0.0, %v3210
      %v3212 = vpop.f32.mrb[0].mxu0
      %3213 = vmatprep.mubr.f32.mxu0 0.0
      %3214 = vmatmul.mubr.f32.gmra.mrb[0].mxu0 %v3108
      %v3215 = vpop.f32.mrb[0].mxu0
      %v3216 = vadd.f32 0.0, %v3215
      %v3217 = vpop.f32.mrb[0].mxu0
      %3218 = vmatprep.mubr.f32.mxu0 0.0
      %3219 = vmatmul.mubr.f32.gmra.mrb[0].mxu0 %v3109
      %v3220 = vpop.f32.mrb[0].mxu0
      %v3221 = vadd.f32 0.0, %v3220
      %v3222 = vpop.f32.mrb[0].mxu0
      %3223 = vmatprep.mubr.f32.mxu0 0.0
      %3224 = vmatmul.mubr.f32.gmra.mrb[0].mxu0 %v3110
      %v3225 = vpop.f32.mrb[0].mxu0
      %v3226 = vadd.f32 0.0, %v3225
      %v3227 = vpop.f32.mrb[0].mxu0
      %3228 = vmatprep.mubr.f32.mxu0 0.0
      %3229 = vmatmul.mubr.f32.gmra.mrb[0].mxu0 %v3111
      %v3230 = vpop.f32.mrb[0].mxu0
      %v3231 = vadd.f32 0.0, %v3230
      %v3232 = vpop.f32.mrb[0].mxu0
      %3233 = vmatprep.mubr.f32.mxu0 0.0
      %3234 = vmatmul.mubr.f32.gmra.mrb[0].mxu0 %v3112
      %v3235 = vpop.f32.mrb[0].mxu0
      %v3236 = vadd.f32 0.0, %v3235
      %v3237 = vpop.f32.mrb[0].mxu0
      %3238 = vmatprep.mubr.f32.mxu0 0.0
      %3239 = vmatmul.mubr.f32.gmra.mrb[0].mxu0 %v3113
      %v3240 = vpop.f32.mrb[0].mxu0
      %v3241 = vadd.f32 0.0, %v3240
      %v3242 = vpop.f32.mrb[0].mxu0
      %3243 = vmatprep.mubr.f32.mxu0 0.0
      %3244 = vmatmul.mubr.f32.gmra.mrb[0].mxu0 %v3114
      %v3245 = vpop.f32.mrb[0].mxu0
      %v3246 = vadd.f32 0.0, %v3245
      %v3247 = vpop.f32.mrb[0].mxu0
      %3248 = vmatprep.mubr.f32.mxu0 0.0
      %3249 = vmatmul.mubr.f32.gmra.mrb[0].mxu0 %v3115
      %v3250 = vpop.f32.mrb[0].mxu0
      %v3251 = vadd.f32 0.0, %v3250
      %v3252 = vpop.f32.mrb[0].mxu0
      %3253 = vmatprep.mubr.f32.mxu0 0.0
      %3254 = vmatmul.mubr.f32.gmra.mrb[0].mxu0 %v3116
      %v3255 = vpop.f32.mrb[0].mxu0
      %v3256 = vadd.f32 0.0, %v3255
      %v3257 = vpop.f32.mrb[0].mxu0
      %3258 = vmatprep.mubr.f32.mxu0 0.0
      %3259 = vmatmul.mubr.f32.gmra.mrb[0].mxu0 %v3117
      %v3260 = vpop.f32.mrb[0].mxu0
      %v3261 = vadd.f32 0.0, %v3260
      %v3262 = vpop.f32.mrb[0].mxu0
      %3263 = vmatprep.mubr.f32.mxu0 0.0
      %3264 = vmatmul.mubr.f32.gmra.mrb[0].mxu0 %v3118
      %v3265 = vpop.f32.mrb[0].mxu0
      %v3266 = vadd.f32 0.0, %v3265
      %v3267 = vpop.f32.mrb[0].mxu0
      %3268 = vmatprep.mubr.f32.mxu0 0.0
      %3269 = vmatmul.mubr.f32.gmra.mrb[0].mxu0 %v3119
      %v3270 = vpop.f32.mrb[0].mxu0
      %v3271 = vadd.f32 0.0, %v3270
      %v3272 = vpop.f32.mrb[0].mxu0
      %3273 = vmatprep.mubr.f32.mxu0 0.0
      %3274 = vmatmul.mubr.f32.gmra.mrb[0].mxu0 %v3120
      %v3275 = vpop.f32.mrb[0].mxu0
      %v3276 = vadd.f32 0.0, %v3275
      %v3277 = vpop.f32.mrb[0].mxu0
      %3278 = vmatprep.mubr.f32.mxu0 0.0
      %3279 = vmatmul.mubr.f32.gmra.mrb[0].mxu0 %v3121
      %v3280 = vpop.f32.mrb[0].mxu0
      %v3281 = vadd.f32 0.0, %v3280
      %v3282 = vpop.f32.mrb[0].mxu0
      %3283 = vdwg.mxu0
      %v3284 = vld [vmem:[#allocation4] sm:$0xff]
      %v3285 = vld [vmem:[#allocation4 + $0x8] sm:$0xff]
      %v3286 = vld [vmem:[#allocation4 + $0x10] sm:$0xff]
      %v3287 = vld [vmem:[#allocation4 + $0x18] sm:$0xff]
      %v3288 = vld [vmem:[#allocation4 + $0x20] sm:$0xff]
      %v3289 = vld [vmem:[#allocation4 + $0x28] sm:$0xff]
      %v3290 = vld [vmem:[#allocation4 + $0x30] sm:$0xff]
      %v3291 = vld [vmem:[#allocation4 + $0x38] sm:$0xff]
      %v3292 = vld [vmem:[#allocation4 + $0x40] sm:$0xff]
      %v3293 = vld [vmem:[#allocation4 + $0x48] sm:$0xff]
      %v3294 = vld [vmem:[#allocation4 + $0x50] sm:$0xff]
      %v3295 = vld [vmem:[#allocation4 + $0x58] sm:$0xff]
      %v3296 = vld [vmem:[#allocation4 + $0x60] sm:$0xff]
      %v3297 = vld [vmem:[#allocation4 + $0x68] sm:$0xff]
      %v3298 = vld [vmem:[#allocation4 + $0x70] sm:$0xff]
      %v3299 = vld [vmem:[#allocation4 + $0x78] sm:$0xff]
      %v3300 = vadd.f32 %v3284, %v3206
      %v3301 = vadd.f32 %v3285, %v3211
      %v3302 = vadd.f32 %v3286, %v3216
      %v3303 = vadd.f32 %v3287, %v3221
      %v3304 = vadd.f32 %v3288, %v3226
      %v3305 = vadd.f32 %v3289, %v3231
      %v3306 = vadd.f32 %v3290, %v3236
      %v3307 = vadd.f32 %v3291, %v3241
      %v3308 = vadd.f32 %v3292, %v3246
      %v3309 = vadd.f32 %v3293, %v3251
      %v3310 = vadd.f32 %v3294, %v3256
      %v3311 = vadd.f32 %v3295, %v3261
      %v3312 = vadd.f32 %v3296, %v3266
      %v3313 = vadd.f32 %v3297, %v3271
      %v3314 = vadd.f32 %v3298, %v3276
      %v3315 = vadd.f32 %v3299, %v3281
      %3316 = vst [vmem:[#allocation4] sm:$0xff] %v3300
      %3317 = vst [vmem:[#allocation4 + $0x8] sm:$0xff] %v3301
      %3318 = vst [vmem:[#allocation4 + $0x10] sm:$0xff] %v3302
      %3319 = vst [vmem:[#allocation4 + $0x18] sm:$0xff] %v3303
      %3320 = vst [vmem:[#allocation4 + $0x20] sm:$0xff] %v3304
      %3321 = vst [vmem:[#allocation4 + $0x28] sm:$0xff] %v3305
      %3322 = vst [vmem:[#allocation4 + $0x30] sm:$0xff] %v3306
      %3323 = vst [vmem:[#allocation4 + $0x38] sm:$0xff] %v3307
      %3324 = vst [vmem:[#allocation4 + $0x40] sm:$0xff] %v3308
      %3325 = vst [vmem:[#allocation4 + $0x48] sm:$0xff] %v3309
      %3326 = vst [vmem:[#allocation4 + $0x50] sm:$0xff] %v3310
      %3327 = vst [vmem:[#allocation4 + $0x58] sm:$0xff] %v3311
      %3328 = vst [vmem:[#allocation4 + $0x60] sm:$0xff] %v3312
      %3329 = vst [vmem:[#allocation4 + $0x68] sm:$0xff] %v3313
      %3330 = vst [vmem:[#allocation4 + $0x70] sm:$0xff] %v3314
      %3331 = vst [vmem:[#allocation4 + $0x78] sm:$0xff] %v3315
      %v3332 = vld [vmem:[%s285 + $0x1] sm:$0xff]
      %v3333 = vld [vmem:[%s285 + $0x11] sm:$0xff]
      %v3334 = vld [vmem:[%s285 + $0x21] sm:$0xff]
      %v3335 = vld [vmem:[%s285 + $0x31] sm:$0xff]
      %v3336 = vld [vmem:[%s285 + $0x41] sm:$0xff]
      %v3337 = vld [vmem:[%s285 + $0x51] sm:$0xff]
      %v3338 = vld [vmem:[%s285 + $0x61] sm:$0xff]
      %v3339 = vld [vmem:[%s285 + $0x71] sm:$0xff]
      %v3340 = vld [vmem:[%s285 + $0xa1] sm:$0xff]
      %v3341 = vld [vmem:[%s285 + $0xb1] sm:$0xff]
      %v3342 = vld [vmem:[%s285 + $0xc1] sm:$0xff]
      %v3343 = vld [vmem:[%s285 + $0xd1] sm:$0xff]
      %v3344 = vld [vmem:[%s285 + $0xe1] sm:$0xff]
      %v3345 = vld [vmem:[%s285 + $0xf1] sm:$0xff]
      %v3346 = vld [vmem:[%s285 + $0x101] sm:$0xff]
      %v3347 = vld [vmem:[%s285 + $0x111] sm:$0xff]
      %s3348 = scalar_lea.vmem %s176, 1664
      %v3349 = vld [vmem:[%s3348] sm:$0xff]
      %v3350 = vld [vmem:[%s3348 + $0x8] sm:$0xff]
      %v3351 = vld [vmem:[%s3348 + $0x10] sm:$0xff]
      %v3352 = vld [vmem:[%s3348 + $0x18] sm:$0xff]
      %v3353 = vld [vmem:[%s3348 + $0x20] sm:$0xff]
      %v3354 = vld [vmem:[%s3348 + $0x28] sm:$0xff]
      %v3355 = vld [vmem:[%s3348 + $0x30] sm:$0xff]
      %v3356 = vld [vmem:[%s3348 + $0x38] sm:$0xff]
      %v3357 = vld [vmem:[%s3348 + $0x40] sm:$0xff]
      %v3358 = vld [vmem:[%s3348 + $0x48] sm:$0xff]
      %v3359 = vld [vmem:[%s3348 + $0x50] sm:$0xff]
      %v3360 = vld [vmem:[%s3348 + $0x58] sm:$0xff]
      %v3361 = vld [vmem:[%s3348 + $0x60] sm:$0xff]
      %v3362 = vld [vmem:[%s3348 + $0x68] sm:$0xff]
      %v3363 = vld [vmem:[%s3348 + $0x70] sm:$0xff]
      %v3364 = vld [vmem:[%s3348 + $0x78] sm:$0xff]
      %3365 = vmatprep.subr.mxu0 0.0
      %3366 = vmatpush1.msra.mxu0 %v3349
      %3367 = vmatprep.subr.mxu0 0.0
      %3368 = vmatpush1.msra.mxu0 %v3350
      %3369 = vmatprep.subr.mxu0 0.0
      %3370 = vmatpush1.msra.mxu0 %v3351
      %3371 = vmatprep.subr.mxu0 0.0
      %3372 = vmatpush1.msra.mxu0 %v3352
      %3373 = vmatprep.subr.mxu0 0.0
      %3374 = vmatpush1.msra.mxu0 %v3353
      %3375 = vmatprep.subr.mxu0 0.0
      %3376 = vmatpush1.msra.mxu0 %v3354
      %3377 = vmatprep.subr.mxu0 0.0
      %3378 = vmatpush1.msra.mxu0 %v3355
      %3379 = vmatprep.subr.mxu0 0.0
      %3380 = vmatpush1.msra.mxu0 %v3356
      %3381 = vmatprep.subr.mxu0 0.0
      %3382 = vmatpush1.msra.mxu0 %v3357
      %3383 = vmatprep.subr.mxu0 0.0
      %3384 = vmatpush1.msra.mxu0 %v3358
      %3385 = vmatprep.subr.mxu0 0.0
      %3386 = vmatpush1.msra.mxu0 %v3359
      %3387 = vmatprep.subr.mxu0 0.0
      %3388 = vmatpush1.msra.mxu0 %v3360
      %3389 = vmatprep.subr.mxu0 0.0
      %3390 = vmatpush1.msra.mxu0 %v3361
      %3391 = vmatprep.subr.mxu0 0.0
      %3392 = vmatpush1.msra.mxu0 %v3362
      %3393 = vmatprep.subr.mxu0 0.0
      %3394 = vmatpush1.msra.mxu0 %v3363
      %3395 = vmatprep.subr.mxu0 0.0
      %3396 = vmatpush1.msra.mxu0 %v3364
      %3397 = vmatprep.subr.mxu0 0.0
      %3398 = vmatpush1.msra.mxu0 0.0
      %3399 = vmatprep.subr.mxu0 0.0
      %3400 = vmatpush1.msra.mxu0 0.0
      %3401 = vmatprep.subr.mxu0 0.0
      %3402 = vmatpush1.msra.mxu0 0.0
      %3403 = vmatprep.subr.mxu0 0.0
      %3404 = vmatpush1.msra.mxu0 0.0
      %3405 = vmatprep.subr.mxu0 0.0
      %3406 = vmatpush1.msra.mxu0 0.0
      %3407 = vmatprep.subr.mxu0 0.0
      %3408 = vmatpush1.msra.mxu0 0.0
      %3409 = vmatprep.subr.mxu0 0.0
      %3410 = vmatpush1.msra.mxu0 0.0
      %3411 = vmatprep.subr.mxu0 0.0
      %3412 = vmatpush1.msra.mxu0 0.0
      %3413 = vmatprep.subr.mxu0 0.0
      %3414 = vmatpush1.msra.mxu0 0.0
      %3415 = vmatprep.subr.mxu0 0.0
      %3416 = vmatpush1.msra.mxu0 0.0
      %3417 = vmatprep.subr.mxu0 0.0
      %3418 = vmatpush1.msra.mxu0 0.0
      %3419 = vmatprep.subr.mxu0 0.0
      %3420 = vmatpush1.msra.mxu0 0.0
      %3421 = vmatprep.subr.mxu0 0.0
      %3422 = vmatpush1.msra.mxu0 0.0
      %3423 = vmatprep.subr.mxu0 0.0
      %3424 = vmatpush1.msra.mxu0 0.0
      %3425 = vmatprep.subr.mxu0 0.0
      %3426 = vmatpush1.msra.mxu0 0.0
      %3427 = vmatprep.subr.mxu0 0.0
      %3428 = vmatpush1.msra.mxu0 0.0
      %3429 = vmatprep.mubr.f32.mxu0 0.0
      %3430 = vmatmul.mubr.f32.gmra.mrb[0].mxu0 %v3332
      %v3431 = vpop.f32.mrb[0].mxu0
      %v3432 = vadd.f32 0.0, %v3431
      %v3433 = vpop.f32.mrb[0].mxu0
      %3434 = vmatprep.mubr.f32.mxu0 0.0
      %3435 = vmatmul.mubr.f32.gmra.mrb[0].mxu0 %v3333
      %v3436 = vpop.f32.mrb[0].mxu0
      %v3437 = vadd.f32 0.0, %v3436
      %v3438 = vpop.f32.mrb[0].mxu0
      %3439 = vmatprep.mubr.f32.mxu0 0.0
      %3440 = vmatmul.mubr.f32.gmra.mrb[0].mxu0 %v3334
      %v3441 = vpop.f32.mrb[0].mxu0
      %v3442 = vadd.f32 0.0, %v3441
      %v3443 = vpop.f32.mrb[0].mxu0
      %3444 = vmatprep.mubr.f32.mxu0 0.0
      %3445 = vmatmul.mubr.f32.gmra.mrb[0].mxu0 %v3335
      %v3446 = vpop.f32.mrb[0].mxu0
      %v3447 = vadd.f32 0.0, %v3446
      %v3448 = vpop.f32.mrb[0].mxu0
      %3449 = vmatprep.mubr.f32.mxu0 0.0
      %3450 = vmatmul.mubr.f32.gmra.mrb[0].mxu0 %v3336
      %v3451 = vpop.f32.mrb[0].mxu0
      %v3452 = vadd.f32 0.0, %v3451
      %v3453 = vpop.f32.mrb[0].mxu0
      %3454 = vmatprep.mubr.f32.mxu0 0.0
      %3455 = vmatmul.mubr.f32.gmra.mrb[0].mxu0 %v3337
      %v3456 = vpop.f32.mrb[0].mxu0
      %v3457 = vadd.f32 0.0, %v3456
      %v3458 = vpop.f32.mrb[0].mxu0
      %3459 = vmatprep.mubr.f32.mxu0 0.0
      %3460 = vmatmul.mubr.f32.gmra.mrb[0].mxu0 %v3338
      %v3461 = vpop.f32.mrb[0].mxu0
      %v3462 = vadd.f32 0.0, %v3461
      %v3463 = vpop.f32.mrb[0].mxu0
      %3464 = vmatprep.mubr.f32.mxu0 0.0
      %3465 = vmatmul.mubr.f32.gmra.mrb[0].mxu0 %v3339
      %v3466 = vpop.f32.mrb[0].mxu0
      %v3467 = vadd.f32 0.0, %v3466
      %v3468 = vpop.f32.mrb[0].mxu0
      %3469 = vmatprep.mubr.f32.mxu0 0.0
      %3470 = vmatmul.mubr.f32.gmra.mrb[0].mxu0 %v3340
      %v3471 = vpop.f32.mrb[0].mxu0
      %v3472 = vadd.f32 0.0, %v3471
      %v3473 = vpop.f32.mrb[0].mxu0
      %3474 = vmatprep.mubr.f32.mxu0 0.0
      %3475 = vmatmul.mubr.f32.gmra.mrb[0].mxu0 %v3341
      %v3476 = vpop.f32.mrb[0].mxu0
      %v3477 = vadd.f32 0.0, %v3476
      %v3478 = vpop.f32.mrb[0].mxu0
      %3479 = vmatprep.mubr.f32.mxu0 0.0
      %3480 = vmatmul.mubr.f32.gmra.mrb[0].mxu0 %v3342
      %v3481 = vpop.f32.mrb[0].mxu0
      %v3482 = vadd.f32 0.0, %v3481
      %v3483 = vpop.f32.mrb[0].mxu0
      %3484 = vmatprep.mubr.f32.mxu0 0.0
      %3485 = vmatmul.mubr.f32.gmra.mrb[0].mxu0 %v3343
      %v3486 = vpop.f32.mrb[0].mxu0
      %v3487 = vadd.f32 0.0, %v3486
      %v3488 = vpop.f32.mrb[0].mxu0
      %3489 = vmatprep.mubr.f32.mxu0 0.0
      %3490 = vmatmul.mubr.f32.gmra.mrb[0].mxu0 %v3344
      %v3491 = vpop.f32.mrb[0].mxu0
      %v3492 = vadd.f32 0.0, %v3491
      %v3493 = vpop.f32.mrb[0].mxu0
      %3494 = vmatprep.mubr.f32.mxu0 0.0
      %3495 = vmatmul.mubr.f32.gmra.mrb[0].mxu0 %v3345
      %v3496 = vpop.f32.mrb[0].mxu0
      %v3497 = vadd.f32 0.0, %v3496
      %v3498 = vpop.f32.mrb[0].mxu0
      %3499 = vmatprep.mubr.f32.mxu0 0.0
      %3500 = vmatmul.mubr.f32.gmra.mrb[0].mxu0 %v3346
      %v3501 = vpop.f32.mrb[0].mxu0
      %v3502 = vadd.f32 0.0, %v3501
      %v3503 = vpop.f32.mrb[0].mxu0
      %3504 = vmatprep.mubr.f32.mxu0 0.0
      %3505 = vmatmul.mubr.f32.gmra.mrb[0].mxu0 %v3347
      %v3506 = vpop.f32.mrb[0].mxu0
      %v3507 = vadd.f32 0.0, %v3506
      %v3508 = vpop.f32.mrb[0].mxu0
      %3509 = vdwg.mxu0
      %v3510 = vld [vmem:[#allocation4] sm:$0xff]
      %v3511 = vld [vmem:[#allocation4 + $0x8] sm:$0xff]
      %v3512 = vld [vmem:[#allocation4 + $0x10] sm:$0xff]
      %v3513 = vld [vmem:[#allocation4 + $0x18] sm:$0xff]
      %v3514 = vld [vmem:[#allocation4 + $0x20] sm:$0xff]
      %v3515 = vld [vmem:[#allocation4 + $0x28] sm:$0xff]
      %v3516 = vld [vmem:[#allocation4 + $0x30] sm:$0xff]
      %v3517 = vld [vmem:[#allocation4 + $0x38] sm:$0xff]
      %v3518 = vld [vmem:[#allocation4 + $0x40] sm:$0xff]
      %v3519 = vld [vmem:[#allocation4 + $0x48] sm:$0xff]
      %v3520 = vld [vmem:[#allocation4 + $0x50] sm:$0xff]
      %v3521 = vld [vmem:[#allocation4 + $0x58] sm:$0xff]
      %v3522 = vld [vmem:[#allocation4 + $0x60] sm:$0xff]
      %v3523 = vld [vmem:[#allocation4 + $0x68] sm:$0xff]
      %v3524 = vld [vmem:[#allocation4 + $0x70] sm:$0xff]
      %v3525 = vld [vmem:[#allocation4 + $0x78] sm:$0xff]
      %v3526 = vadd.f32 %v3510, %v3432
      %v3527 = vadd.f32 %v3511, %v3437
      %v3528 = vadd.f32 %v3512, %v3442
      %v3529 = vadd.f32 %v3513, %v3447
      %v3530 = vadd.f32 %v3514, %v3452
      %v3531 = vadd.f32 %v3515, %v3457
      %v3532 = vadd.f32 %v3516, %v3462
      %v3533 = vadd.f32 %v3517, %v3467
      %v3534 = vadd.f32 %v3518, %v3472
      %v3535 = vadd.f32 %v3519, %v3477
      %v3536 = vadd.f32 %v3520, %v3482
      %v3537 = vadd.f32 %v3521, %v3487
      %v3538 = vadd.f32 %v3522, %v3492
      %v3539 = vadd.f32 %v3523, %v3497
      %v3540 = vadd.f32 %v3524, %v3502
      %v3541 = vadd.f32 %v3525, %v3507
      %3542 = vst [vmem:[#allocation4] sm:$0xff] %v3526
      %3543 = vst [vmem:[#allocation4 + $0x8] sm:$0xff] %v3527
      %3544 = vst [vmem:[#allocation4 + $0x10] sm:$0xff] %v3528
      %3545 = vst [vmem:[#allocation4 + $0x18] sm:$0xff] %v3529
      %3546 = vst [vmem:[#allocation4 + $0x20] sm:$0xff] %v3530
      %3547 = vst [vmem:[#allocation4 + $0x28] sm:$0xff] %v3531
      %3548 = vst [vmem:[#allocation4 + $0x30] sm:$0xff] %v3532
      %3549 = vst [vmem:[#allocation4 + $0x38] sm:$0xff] %v3533
      %3550 = vst [vmem:[#allocation4 + $0x40] sm:$0xff] %v3534
      %3551 = vst [vmem:[#allocation4 + $0x48] sm:$0xff] %v3535
      %3552 = vst [vmem:[#allocation4 + $0x50] sm:$0xff] %v3536
      %3553 = vst [vmem:[#allocation4 + $0x58] sm:$0xff] %v3537
      %3554 = vst [vmem:[#allocation4 + $0x60] sm:$0xff] %v3538
      %3555 = vst [vmem:[#allocation4 + $0x68] sm:$0xff] %v3539
      %3556 = vst [vmem:[#allocation4 + $0x70] sm:$0xff] %v3540
      %3557 = vst [vmem:[#allocation4 + $0x78] sm:$0xff] %v3541
      %v3558 = vld [vmem:[%s285 + $0x2] sm:$0xff]
      %v3559 = vld [vmem:[%s285 + $0x12] sm:$0xff]
      %v3560 = vld [vmem:[%s285 + $0x22] sm:$0xff]
      %v3561 = vld [vmem:[%s285 + $0x32] sm:$0xff]
      %v3562 = vld [vmem:[%s285 + $0x42] sm:$0xff]
      %v3563 = vld [vmem:[%s285 + $0x52] sm:$0xff]
      %v3564 = vld [vmem:[%s285 + $0x62] sm:$0xff]
      %v3565 = vld [vmem:[%s285 + $0x72] sm:$0xff]
      %v3566 = vld [vmem:[%s285 + $0xa2] sm:$0xff]
      %v3567 = vld [vmem:[%s285 + $0xb2] sm:$0xff]
      %v3568 = vld [vmem:[%s285 + $0xc2] sm:$0xff]
      %v3569 = vld [vmem:[%s285 + $0xd2] sm:$0xff]
      %v3570 = vld [vmem:[%s285 + $0xe2] sm:$0xff]
      %v3571 = vld [vmem:[%s285 + $0xf2] sm:$0xff]
      %v3572 = vld [vmem:[%s285 + $0x102] sm:$0xff]
      %v3573 = vld [vmem:[%s285 + $0x112] sm:$0xff]
      %s3574 = scalar_lea.vmem %s176, 1792
      %v3575 = vld [vmem:[%s3574] sm:$0xff]
      %v3576 = vld [vmem:[%s3574 + $0x8] sm:$0xff]
      %v3577 = vld [vmem:[%s3574 + $0x10] sm:$0xff]
      %v3578 = vld [vmem:[%s3574 + $0x18] sm:$0xff]
      %v3579 = vld [vmem:[%s3574 + $0x20] sm:$0xff]
      %v3580 = vld [vmem:[%s3574 + $0x28] sm:$0xff]
      %v3581 = vld [vmem:[%s3574 + $0x30] sm:$0xff]
      %v3582 = vld [vmem:[%s3574 + $0x38] sm:$0xff]
      %v3583 = vld [vmem:[%s3574 + $0x40] sm:$0xff]
      %v3584 = vld [vmem:[%s3574 + $0x48] sm:$0xff]
      %v3585 = vld [vmem:[%s3574 + $0x50] sm:$0xff]
      %v3586 = vld [vmem:[%s3574 + $0x58] sm:$0xff]
      %v3587 = vld [vmem:[%s3574 + $0x60] sm:$0xff]
      %v3588 = vld [vmem:[%s3574 + $0x68] sm:$0xff]
      %v3589 = vld [vmem:[%s3574 + $0x70] sm:$0xff]
      %v3590 = vld [vmem:[%s3574 + $0x78] sm:$0xff]
      %3591 = vmatprep.subr.mxu0 0.0
      %3592 = vmatpush1.msra.mxu0 %v3575
      %3593 = vmatprep.subr.mxu0 0.0
      %3594 = vmatpush1.msra.mxu0 %v3576
      %3595 = vmatprep.subr.mxu0 0.0
      %3596 = vmatpush1.msra.mxu0 %v3577
      %3597 = vmatprep.subr.mxu0 0.0
      %3598 = vmatpush1.msra.mxu0 %v3578
      %3599 = vmatprep.subr.mxu0 0.0
      %3600 = vmatpush1.msra.mxu0 %v3579
      %3601 = vmatprep.subr.mxu0 0.0
      %3602 = vmatpush1.msra.mxu0 %v3580
      %3603 = vmatprep.subr.mxu0 0.0
      %3604 = vmatpush1.msra.mxu0 %v3581
      %3605 = vmatprep.subr.mxu0 0.0
      %3606 = vmatpush1.msra.mxu0 %v3582
      %3607 = vmatprep.subr.mxu0 0.0
      %3608 = vmatpush1.msra.mxu0 %v3583
      %3609 = vmatprep.subr.mxu0 0.0
      %3610 = vmatpush1.msra.mxu0 %v3584
      %3611 = vmatprep.subr.mxu0 0.0
      %3612 = vmatpush1.msra.mxu0 %v3585
      %3613 = vmatprep.subr.mxu0 0.0
      %3614 = vmatpush1.msra.mxu0 %v3586
      %3615 = vmatprep.subr.mxu0 0.0
      %3616 = vmatpush1.msra.mxu0 %v3587
      %3617 = vmatprep.subr.mxu0 0.0
      %3618 = vmatpush1.msra.mxu0 %v3588
      %3619 = vmatprep.subr.mxu0 0.0
      %3620 = vmatpush1.msra.mxu0 %v3589
      %3621 = vmatprep.subr.mxu0 0.0
      %3622 = vmatpush1.msra.mxu0 %v3590
      %3623 = vmatprep.subr.mxu0 0.0
      %3624 = vmatpush1.msra.mxu0 0.0
      %3625 = vmatprep.subr.mxu0 0.0
      %3626 = vmatpush1.msra.mxu0 0.0
      %3627 = vmatprep.subr.mxu0 0.0
      %3628 = vmatpush1.msra.mxu0 0.0
      %3629 = vmatprep.subr.mxu0 0.0
      %3630 = vmatpush1.msra.mxu0 0.0
      %3631 = vmatprep.subr.mxu0 0.0
      %3632 = vmatpush1.msra.mxu0 0.0
      %3633 = vmatprep.subr.mxu0 0.0
      %3634 = vmatpush1.msra.mxu0 0.0
      %3635 = vmatprep.subr.mxu0 0.0
      %3636 = vmatpush1.msra.mxu0 0.0
      %3637 = vmatprep.subr.mxu0 0.0
      %3638 = vmatpush1.msra.mxu0 0.0
      %3639 = vmatprep.subr.mxu0 0.0
      %3640 = vmatpush1.msra.mxu0 0.0
      %3641 = vmatprep.subr.mxu0 0.0
      %3642 = vmatpush1.msra.mxu0 0.0
      %3643 = vmatprep.subr.mxu0 0.0
      %3644 = vmatpush1.msra.mxu0 0.0
      %3645 = vmatprep.subr.mxu0 0.0
      %3646 = vmatpush1.msra.mxu0 0.0
      %3647 = vmatprep.subr.mxu0 0.0
      %3648 = vmatpush1.msra.mxu0 0.0
      %3649 = vmatprep.subr.mxu0 0.0
      %3650 = vmatpush1.msra.mxu0 0.0
      %3651 = vmatprep.subr.mxu0 0.0
      %3652 = vmatpush1.msra.mxu0 0.0
      %3653 = vmatprep.subr.mxu0 0.0
      %3654 = vmatpush1.msra.mxu0 0.0
      %3655 = vmatprep.mubr.f32.mxu0 0.0
      %3656 = vmatmul.mubr.f32.gmra.mrb[0].mxu0 %v3558
      %v3657 = vpop.f32.mrb[0].mxu0
      %v3658 = vadd.f32 0.0, %v3657
      %v3659 = vpop.f32.mrb[0].mxu0
      %3660 = vmatprep.mubr.f32.mxu0 0.0
      %3661 = vmatmul.mubr.f32.gmra.mrb[0].mxu0 %v3559
      %v3662 = vpop.f32.mrb[0].mxu0
      %v3663 = vadd.f32 0.0, %v3662
      %v3664 = vpop.f32.mrb[0].mxu0
      %3665 = vmatprep.mubr.f32.mxu0 0.0
      %3666 = vmatmul.mubr.f32.gmra.mrb[0].mxu0 %v3560
      %v3667 = vpop.f32.mrb[0].mxu0
      %v3668 = vadd.f32 0.0, %v3667
      %v3669 = vpop.f32.mrb[0].mxu0
      %3670 = vmatprep.mubr.f32.mxu0 0.0
      %3671 = vmatmul.mubr.f32.gmra.mrb[0].mxu0 %v3561
      %v3672 = vpop.f32.mrb[0].mxu0
      %v3673 = vadd.f32 0.0, %v3672
      %v3674 = vpop.f32.mrb[0].mxu0
      %3675 = vmatprep.mubr.f32.mxu0 0.0
      %3676 = vmatmul.mubr.f32.gmra.mrb[0].mxu0 %v3562
      %v3677 = vpop.f32.mrb[0].mxu0
      %v3678 = vadd.f32 0.0, %v3677
      %v3679 = vpop.f32.mrb[0].mxu0
      %3680 = vmatprep.mubr.f32.mxu0 0.0
      %3681 = vmatmul.mubr.f32.gmra.mrb[0].mxu0 %v3563
      %v3682 = vpop.f32.mrb[0].mxu0
      %v3683 = vadd.f32 0.0, %v3682
      %v3684 = vpop.f32.mrb[0].mxu0
      %3685 = vmatprep.mubr.f32.mxu0 0.0
      %3686 = vmatmul.mubr.f32.gmra.mrb[0].mxu0 %v3564
      %v3687 = vpop.f32.mrb[0].mxu0
      %v3688 = vadd.f32 0.0, %v3687
      %v3689 = vpop.f32.mrb[0].mxu0
      %3690 = vmatprep.mubr.f32.mxu0 0.0
      %3691 = vmatmul.mubr.f32.gmra.mrb[0].mxu0 %v3565
      %v3692 = vpop.f32.mrb[0].mxu0
      %v3693 = vadd.f32 0.0, %v3692
      %v3694 = vpop.f32.mrb[0].mxu0
      %3695 = vmatprep.mubr.f32.mxu0 0.0
      %3696 = vmatmul.mubr.f32.gmra.mrb[0].mxu0 %v3566
      %v3697 = vpop.f32.mrb[0].mxu0
      %v3698 = vadd.f32 0.0, %v3697
      %v3699 = vpop.f32.mrb[0].mxu0
      %3700 = vmatprep.mubr.f32.mxu0 0.0
      %3701 = vmatmul.mubr.f32.gmra.mrb[0].mxu0 %v3567
      %v3702 = vpop.f32.mrb[0].mxu0
      %v3703 = vadd.f32 0.0, %v3702
      %v3704 = vpop.f32.mrb[0].mxu0
      %3705 = vmatprep.mubr.f32.mxu0 0.0
      %3706 = vmatmul.mubr.f32.gmra.mrb[0].mxu0 %v3568
      %v3707 = vpop.f32.mrb[0].mxu0
      %v3708 = vadd.f32 0.0, %v3707
      %v3709 = vpop.f32.mrb[0].mxu0
      %3710 = vmatprep.mubr.f32.mxu0 0.0
      %3711 = vmatmul.mubr.f32.gmra.mrb[0].mxu0 %v3569
      %v3712 = vpop.f32.mrb[0].mxu0
      %v3713 = vadd.f32 0.0, %v3712
      %v3714 = vpop.f32.mrb[0].mxu0
      %3715 = vmatprep.mubr.f32.mxu0 0.0
      %3716 = vmatmul.mubr.f32.gmra.mrb[0].mxu0 %v3570
      %v3717 = vpop.f32.mrb[0].mxu0
      %v3718 = vadd.f32 0.0, %v3717
      %v3719 = vpop.f32.mrb[0].mxu0
      %3720 = vmatprep.mubr.f32.mxu0 0.0
      %3721 = vmatmul.mubr.f32.gmra.mrb[0].mxu0 %v3571
      %v3722 = vpop.f32.mrb[0].mxu0
      %v3723 = vadd.f32 0.0, %v3722
      %v3724 = vpop.f32.mrb[0].mxu0
      %3725 = vmatprep.mubr.f32.mxu0 0.0
      %3726 = vmatmul.mubr.f32.gmra.mrb[0].mxu0 %v3572
      %v3727 = vpop.f32.mrb[0].mxu0
      %v3728 = vadd.f32 0.0, %v3727
      %v3729 = vpop.f32.mrb[0].mxu0
      %3730 = vmatprep.mubr.f32.mxu0 0.0
      %3731 = vmatmul.mubr.f32.gmra.mrb[0].mxu0 %v3573
      %v3732 = vpop.f32.mrb[0].mxu0
      %v3733 = vadd.f32 0.0, %v3732
      %v3734 = vpop.f32.mrb[0].mxu0
      %3735 = vdwg.mxu0
      %v3736 = vld [vmem:[#allocation4] sm:$0xff]
      %v3737 = vld [vmem:[#allocation4 + $0x8] sm:$0xff]
      %v3738 = vld [vmem:[#allocation4 + $0x10] sm:$0xff]
      %v3739 = vld [vmem:[#allocation4 + $0x18] sm:$0xff]
      %v3740 = vld [vmem:[#allocation4 + $0x20] sm:$0xff]
      %v3741 = vld [vmem:[#allocation4 + $0x28] sm:$0xff]
      %v3742 = vld [vmem:[#allocation4 + $0x30] sm:$0xff]
      %v3743 = vld [vmem:[#allocation4 + $0x38] sm:$0xff]
      %v3744 = vld [vmem:[#allocation4 + $0x40] sm:$0xff]
      %v3745 = vld [vmem:[#allocation4 + $0x48] sm:$0xff]
      %v3746 = vld [vmem:[#allocation4 + $0x50] sm:$0xff]
      %v3747 = vld [vmem:[#allocation4 + $0x58] sm:$0xff]
      %v3748 = vld [vmem:[#allocation4 + $0x60] sm:$0xff]
      %v3749 = vld [vmem:[#allocation4 + $0x68] sm:$0xff]
      %v3750 = vld [vmem:[#allocation4 + $0x70] sm:$0xff]
      %v3751 = vld [vmem:[#allocation4 + $0x78] sm:$0xff]
      %v3752 = vadd.f32 %v3736, %v3658
      %v3753 = vadd.f32 %v3737, %v3663
      %v3754 = vadd.f32 %v3738, %v3668
      %v3755 = vadd.f32 %v3739, %v3673
      %v3756 = vadd.f32 %v3740, %v3678
      %v3757 = vadd.f32 %v3741, %v3683
      %v3758 = vadd.f32 %v3742, %v3688
      %v3759 = vadd.f32 %v3743, %v3693
      %v3760 = vadd.f32 %v3744, %v3698
      %v3761 = vadd.f32 %v3745, %v3703
      %v3762 = vadd.f32 %v3746, %v3708
      %v3763 = vadd.f32 %v3747, %v3713
      %v3764 = vadd.f32 %v3748, %v3718
      %v3765 = vadd.f32 %v3749, %v3723
      %v3766 = vadd.f32 %v3750, %v3728
      %v3767 = vadd.f32 %v3751, %v3733
      %3768 = vst [vmem:[#allocation4] sm:$0xff] %v3752
      %3769 = vst [vmem:[#allocation4 + $0x8] sm:$0xff] %v3753
      %3770 = vst [vmem:[#allocation4 + $0x10] sm:$0xff] %v3754
      %3771 = vst [vmem:[#allocation4 + $0x18] sm:$0xff] %v3755
      %3772 = vst [vmem:[#allocation4 + $0x20] sm:$0xff] %v3756
      %3773 = vst [vmem:[#allocation4 + $0x28] sm:$0xff] %v3757
      %3774 = vst [vmem:[#allocation4 + $0x30] sm:$0xff] %v3758
      %3775 = vst [vmem:[#allocation4 + $0x38] sm:$0xff] %v3759
      %3776 = vst [vmem:[#allocation4 + $0x40] sm:$0xff] %v3760
      %3777 = vst [vmem:[#allocation4 + $0x48] sm:$0xff] %v3761
      %3778 = vst [vmem:[#allocation4 + $0x50] sm:$0xff] %v3762
      %3779 = vst [vmem:[#allocation4 + $0x58] sm:$0xff] %v3763
      %3780 = vst [vmem:[#allocation4 + $0x60] sm:$0xff] %v3764
      %3781 = vst [vmem:[#allocation4 + $0x68] sm:$0xff] %v3765
      %3782 = vst [vmem:[#allocation4 + $0x70] sm:$0xff] %v3766
      %3783 = vst [vmem:[#allocation4 + $0x78] sm:$0xff] %v3767
      %v3784 = vld [vmem:[%s1625] sm:$0xff]
      %v3785 = vld [vmem:[%s1625 + $0x10] sm:$0xff]
      %v3786 = vld [vmem:[%s1625 + $0x20] sm:$0xff]
      %v3787 = vld [vmem:[%s1625 + $0x30] sm:$0xff]
      %v3788 = vld [vmem:[%s1625 + $0x40] sm:$0xff]
      %v3789 = vld [vmem:[%s1625 + $0x50] sm:$0xff]
      %v3790 = vld [vmem:[%s1625 + $0x60] sm:$0xff]
      %v3791 = vld [vmem:[%s1625 + $0x70] sm:$0xff]
      %v3792 = vld [vmem:[%s1625 + $0xa0] sm:$0xff]
      %v3793 = vld [vmem:[%s1625 + $0xb0] sm:$0xff]
      %v3794 = vld [vmem:[%s1625 + $0xc0] sm:$0xff]
      %v3795 = vld [vmem:[%s1625 + $0xd0] sm:$0xff]
      %v3796 = vld [vmem:[%s1625 + $0xe0] sm:$0xff]
      %v3797 = vld [vmem:[%s1625 + $0xf0] sm:$0xff]
      %v3798 = vld [vmem:[%s1625 + $0x100] sm:$0xff]
      %v3799 = vld [vmem:[%s1625 + $0x110] sm:$0xff]
      %s3800 = scalar_lea.vmem %s176, 1920
      %v3801 = vld [vmem:[%s3800] sm:$0xff]
      %v3802 = vld [vmem:[%s3800 + $0x8] sm:$0xff]
      %v3803 = vld [vmem:[%s3800 + $0x10] sm:$0xff]
      %v3804 = vld [vmem:[%s3800 + $0x18] sm:$0xff]
      %v3805 = vld [vmem:[%s3800 + $0x20] sm:$0xff]
      %v3806 = vld [vmem:[%s3800 + $0x28] sm:$0xff]
      %v3807 = vld [vmem:[%s3800 + $0x30] sm:$0xff]
      %v3808 = vld [vmem:[%s3800 + $0x38] sm:$0xff]
      %v3809 = vld [vmem:[%s3800 + $0x40] sm:$0xff]
      %v3810 = vld [vmem:[%s3800 + $0x48] sm:$0xff]
      %v3811 = vld [vmem:[%s3800 + $0x50] sm:$0xff]
      %v3812 = vld [vmem:[%s3800 + $0x58] sm:$0xff]
      %v3813 = vld [vmem:[%s3800 + $0x60] sm:$0xff]
      %v3814 = vld [vmem:[%s3800 + $0x68] sm:$0xff]
      %v3815 = vld [vmem:[%s3800 + $0x70] sm:$0xff]
      %v3816 = vld [vmem:[%s3800 + $0x78] sm:$0xff]
      %3817 = vmatprep.subr.mxu0 0.0
      %3818 = vmatpush1.msra.mxu0 %v3801
      %3819 = vmatprep.subr.mxu0 0.0
      %3820 = vmatpush1.msra.mxu0 %v3802
      %3821 = vmatprep.subr.mxu0 0.0
      %3822 = vmatpush1.msra.mxu0 %v3803
      %3823 = vmatprep.subr.mxu0 0.0
      %3824 = vmatpush1.msra.mxu0 %v3804
      %3825 = vmatprep.subr.mxu0 0.0
      %3826 = vmatpush1.msra.mxu0 %v3805
      %3827 = vmatprep.subr.mxu0 0.0
      %3828 = vmatpush1.msra.mxu0 %v3806
      %3829 = vmatprep.subr.mxu0 0.0
      %3830 = vmatpush1.msra.mxu0 %v3807
      %3831 = vmatprep.subr.mxu0 0.0
      %3832 = vmatpush1.msra.mxu0 %v3808
      %3833 = vmatprep.subr.mxu0 0.0
      %3834 = vmatpush1.msra.mxu0 %v3809
      %3835 = vmatprep.subr.mxu0 0.0
      %3836 = vmatpush1.msra.mxu0 %v3810
      %3837 = vmatprep.subr.mxu0 0.0
      %3838 = vmatpush1.msra.mxu0 %v3811
      %3839 = vmatprep.subr.mxu0 0.0
      %3840 = vmatpush1.msra.mxu0 %v3812
      %3841 = vmatprep.subr.mxu0 0.0
      %3842 = vmatpush1.msra.mxu0 %v3813
      %3843 = vmatprep.subr.mxu0 0.0
      %3844 = vmatpush1.msra.mxu0 %v3814
      %3845 = vmatprep.subr.mxu0 0.0
      %3846 = vmatpush1.msra.mxu0 %v3815
      %3847 = vmatprep.subr.mxu0 0.0
      %3848 = vmatpush1.msra.mxu0 %v3816
      %3849 = vmatprep.subr.mxu0 0.0
      %3850 = vmatpush1.msra.mxu0 0.0
      %3851 = vmatprep.subr.mxu0 0.0
      %3852 = vmatpush1.msra.mxu0 0.0
      %3853 = vmatprep.subr.mxu0 0.0
      %3854 = vmatpush1.msra.mxu0 0.0
      %3855 = vmatprep.subr.mxu0 0.0
      %3856 = vmatpush1.msra.mxu0 0.0
      %3857 = vmatprep.subr.mxu0 0.0
      %3858 = vmatpush1.msra.mxu0 0.0
      %3859 = vmatprep.subr.mxu0 0.0
      %3860 = vmatpush1.msra.mxu0 0.0
      %3861 = vmatprep.subr.mxu0 0.0
      %3862 = vmatpush1.msra.mxu0 0.0
      %3863 = vmatprep.subr.mxu0 0.0
      %3864 = vmatpush1.msra.mxu0 0.0
      %3865 = vmatprep.subr.mxu0 0.0
      %3866 = vmatpush1.msra.mxu0 0.0
      %3867 = vmatprep.subr.mxu0 0.0
      %3868 = vmatpush1.msra.mxu0 0.0
      %3869 = vmatprep.subr.mxu0 0.0
      %3870 = vmatpush1.msra.mxu0 0.0
      %3871 = vmatprep.subr.mxu0 0.0
      %3872 = vmatpush1.msra.mxu0 0.0
      %3873 = vmatprep.subr.mxu0 0.0
      %3874 = vmatpush1.msra.mxu0 0.0
      %3875 = vmatprep.subr.mxu0 0.0
      %3876 = vmatpush1.msra.mxu0 0.0
      %3877 = vmatprep.subr.mxu0 0.0
      %3878 = vmatpush1.msra.mxu0 0.0
      %3879 = vmatprep.subr.mxu0 0.0
      %3880 = vmatpush1.msra.mxu0 0.0
      %3881 = vmatprep.mubr.f32.mxu0 0.0
      %3882 = vmatmul.mubr.f32.gmra.mrb[0].mxu0 %v3784
      %v3883 = vpop.f32.mrb[0].mxu0
      %v3884 = vadd.f32 0.0, %v3883
      %v3885 = vpop.f32.mrb[0].mxu0
      %3886 = vmatprep.mubr.f32.mxu0 0.0
      %3887 = vmatmul.mubr.f32.gmra.mrb[0].mxu0 %v3785
      %v3888 = vpop.f32.mrb[0].mxu0
      %v3889 = vadd.f32 0.0, %v3888
      %v3890 = vpop.f32.mrb[0].mxu0
      %3891 = vmatprep.mubr.f32.mxu0 0.0
      %3892 = vmatmul.mubr.f32.gmra.mrb[0].mxu0 %v3786
      %v3893 = vpop.f32.mrb[0].mxu0
      %v3894 = vadd.f32 0.0, %v3893
      %v3895 = vpop.f32.mrb[0].mxu0
      %3896 = vmatprep.mubr.f32.mxu0 0.0
      %3897 = vmatmul.mubr.f32.gmra.mrb[0].mxu0 %v3787
      %v3898 = vpop.f32.mrb[0].mxu0
      %v3899 = vadd.f32 0.0, %v3898
      %v3900 = vpop.f32.mrb[0].mxu0
      %3901 = vmatprep.mubr.f32.mxu0 0.0
      %3902 = vmatmul.mubr.f32.gmra.mrb[0].mxu0 %v3788
      %v3903 = vpop.f32.mrb[0].mxu0
      %v3904 = vadd.f32 0.0, %v3903
      %v3905 = vpop.f32.mrb[0].mxu0
      %3906 = vmatprep.mubr.f32.mxu0 0.0
      %3907 = vmatmul.mubr.f32.gmra.mrb[0].mxu0 %v3789
      %v3908 = vpop.f32.mrb[0].mxu0
      %v3909 = vadd.f32 0.0, %v3908
      %v3910 = vpop.f32.mrb[0].mxu0
      %3911 = vmatprep.mubr.f32.mxu0 0.0
      %3912 = vmatmul.mubr.f32.gmra.mrb[0].mxu0 %v3790
      %v3913 = vpop.f32.mrb[0].mxu0
      %v3914 = vadd.f32 0.0, %v3913
      %v3915 = vpop.f32.mrb[0].mxu0
      %3916 = vmatprep.mubr.f32.mxu0 0.0
      %3917 = vmatmul.mubr.f32.gmra.mrb[0].mxu0 %v3791
      %v3918 = vpop.f32.mrb[0].mxu0
      %v3919 = vadd.f32 0.0, %v3918
      %v3920 = vpop.f32.mrb[0].mxu0
      %3921 = vmatprep.mubr.f32.mxu0 0.0
      %3922 = vmatmul.mubr.f32.gmra.mrb[0].mxu0 %v3792
      %v3923 = vpop.f32.mrb[0].mxu0
      %v3924 = vadd.f32 0.0, %v3923
      %v3925 = vpop.f32.mrb[0].mxu0
      %3926 = vmatprep.mubr.f32.mxu0 0.0
      %3927 = vmatmul.mubr.f32.gmra.mrb[0].mxu0 %v3793
      %v3928 = vpop.f32.mrb[0].mxu0
      %v3929 = vadd.f32 0.0, %v3928
      %v3930 = vpop.f32.mrb[0].mxu0
      %3931 = vmatprep.mubr.f32.mxu0 0.0
      %3932 = vmatmul.mubr.f32.gmra.mrb[0].mxu0 %v3794
      %v3933 = vpop.f32.mrb[0].mxu0
      %v3934 = vadd.f32 0.0, %v3933
      %v3935 = vpop.f32.mrb[0].mxu0
      %3936 = vmatprep.mubr.f32.mxu0 0.0
      %3937 = vmatmul.mubr.f32.gmra.mrb[0].mxu0 %v3795
      %v3938 = vpop.f32.mrb[0].mxu0
      %v3939 = vadd.f32 0.0, %v3938
      %v3940 = vpop.f32.mrb[0].mxu0
      %3941 = vmatprep.mubr.f32.mxu0 0.0
      %3942 = vmatmul.mubr.f32.gmra.mrb[0].mxu0 %v3796
      %v3943 = vpop.f32.mrb[0].mxu0
      %v3944 = vadd.f32 0.0, %v3943
      %v3945 = vpop.f32.mrb[0].mxu0
      %3946 = vmatprep.mubr.f32.mxu0 0.0
      %3947 = vmatmul.mubr.f32.gmra.mrb[0].mxu0 %v3797
      %v3948 = vpop.f32.mrb[0].mxu0
      %v3949 = vadd.f32 0.0, %v3948
      %v3950 = vpop.f32.mrb[0].mxu0
      %3951 = vmatprep.mubr.f32.mxu0 0.0
      %3952 = vmatmul.mubr.f32.gmra.mrb[0].mxu0 %v3798
      %v3953 = vpop.f32.mrb[0].mxu0
      %v3954 = vadd.f32 0.0, %v3953
      %v3955 = vpop.f32.mrb[0].mxu0
      %3956 = vmatprep.mubr.f32.mxu0 0.0
      %3957 = vmatmul.mubr.f32.gmra.mrb[0].mxu0 %v3799
      %v3958 = vpop.f32.mrb[0].mxu0
      %v3959 = vadd.f32 0.0, %v3958
      %v3960 = vpop.f32.mrb[0].mxu0
      %3961 = vdwg.mxu0
      %v3962 = vld [vmem:[#allocation4] sm:$0xff]
      %v3963 = vld [vmem:[#allocation4 + $0x8] sm:$0xff]
      %v3964 = vld [vmem:[#allocation4 + $0x10] sm:$0xff]
      %v3965 = vld [vmem:[#allocation4 + $0x18] sm:$0xff]
      %v3966 = vld [vmem:[#allocation4 + $0x20] sm:$0xff]
      %v3967 = vld [vmem:[#allocation4 + $0x28] sm:$0xff]
      %v3968 = vld [vmem:[#allocation4 + $0x30] sm:$0xff]
      %v3969 = vld [vmem:[#allocation4 + $0x38] sm:$0xff]
      %v3970 = vld [vmem:[#allocation4 + $0x40] sm:$0xff]
      %v3971 = vld [vmem:[#allocation4 + $0x48] sm:$0xff]
      %v3972 = vld [vmem:[#allocation4 + $0x50] sm:$0xff]
      %v3973 = vld [vmem:[#allocation4 + $0x58] sm:$0xff]
      %v3974 = vld [vmem:[#allocation4 + $0x60] sm:$0xff]
      %v3975 = vld [vmem:[#allocation4 + $0x68] sm:$0xff]
      %v3976 = vld [vmem:[#allocation4 + $0x70] sm:$0xff]
      %v3977 = vld [vmem:[#allocation4 + $0x78] sm:$0xff]
      %v3978 = vadd.f32 %v3962, %v3884
      %v3979 = vadd.f32 %v3963, %v3889
      %v3980 = vadd.f32 %v3964, %v3894
      %v3981 = vadd.f32 %v3965, %v3899
      %v3982 = vadd.f32 %v3966, %v3904
      %v3983 = vadd.f32 %v3967, %v3909
      %v3984 = vadd.f32 %v3968, %v3914
      %v3985 = vadd.f32 %v3969, %v3919
      %v3986 = vadd.f32 %v3970, %v3924
      %v3987 = vadd.f32 %v3971, %v3929
      %v3988 = vadd.f32 %v3972, %v3934
      %v3989 = vadd.f32 %v3973, %v3939
      %v3990 = vadd.f32 %v3974, %v3944
      %v3991 = vadd.f32 %v3975, %v3949
      %v3992 = vadd.f32 %v3976, %v3954
      %v3993 = vadd.f32 %v3977, %v3959
      %3994 = vst [vmem:[#allocation4] sm:$0xff] %v3978
      %3995 = vst [vmem:[#allocation4 + $0x8] sm:$0xff] %v3979
      %3996 = vst [vmem:[#allocation4 + $0x10] sm:$0xff] %v3980
      %3997 = vst [vmem:[#allocation4 + $0x18] sm:$0xff] %v3981
      %3998 = vst [vmem:[#allocation4 + $0x20] sm:$0xff] %v3982
      %3999 = vst [vmem:[#allocation4 + $0x28] sm:$0xff] %v3983
      %4000 = vst [vmem:[#allocation4 + $0x30] sm:$0xff] %v3984
      %4001 = vst [vmem:[#allocation4 + $0x38] sm:$0xff] %v3985
      %4002 = vst [vmem:[#allocation4 + $0x40] sm:$0xff] %v3986
      %4003 = vst [vmem:[#allocation4 + $0x48] sm:$0xff] %v3987
      %4004 = vst [vmem:[#allocation4 + $0x50] sm:$0xff] %v3988
      %4005 = vst [vmem:[#allocation4 + $0x58] sm:$0xff] %v3989
      %4006 = vst [vmem:[#allocation4 + $0x60] sm:$0xff] %v3990
      %4007 = vst [vmem:[#allocation4 + $0x68] sm:$0xff] %v3991
      %4008 = vst [vmem:[#allocation4 + $0x70] sm:$0xff] %v3992
      %4009 = vst [vmem:[#allocation4 + $0x78] sm:$0xff] %v3993
      %v4010 = vld [vmem:[%s1625 + $0x1] sm:$0xff]
      %v4011 = vld [vmem:[%s1625 + $0x11] sm:$0xff]
      %v4012 = vld [vmem:[%s1625 + $0x21] sm:$0xff]
      %v4013 = vld [vmem:[%s1625 + $0x31] sm:$0xff]
      %v4014 = vld [vmem:[%s1625 + $0x41] sm:$0xff]
      %v4015 = vld [vmem:[%s1625 + $0x51] sm:$0xff]
      %v4016 = vld [vmem:[%s1625 + $0x61] sm:$0xff]
      %v4017 = vld [vmem:[%s1625 + $0x71] sm:$0xff]
      %v4018 = vld [vmem:[%s1625 + $0xa1] sm:$0xff]
      %v4019 = vld [vmem:[%s1625 + $0xb1] sm:$0xff]
      %v4020 = vld [vmem:[%s1625 + $0xc1] sm:$0xff]
      %v4021 = vld [vmem:[%s1625 + $0xd1] sm:$0xff]
      %v4022 = vld [vmem:[%s1625 + $0xe1] sm:$0xff]
      %v4023 = vld [vmem:[%s1625 + $0xf1] sm:$0xff]
      %v4024 = vld [vmem:[%s1625 + $0x101] sm:$0xff]
      %v4025 = vld [vmem:[%s1625 + $0x111] sm:$0xff]
      %s4026 = scalar_lea.vmem %s176, 2048
      %v4027 = vld [vmem:[%s4026] sm:$0xff]
      %v4028 = vld [vmem:[%s4026 + $0x8] sm:$0xff]
      %v4029 = vld [vmem:[%s4026 + $0x10] sm:$0xff]
      %v4030 = vld [vmem:[%s4026 + $0x18] sm:$0xff]
      %v4031 = vld [vmem:[%s4026 + $0x20] sm:$0xff]
      %v4032 = vld [vmem:[%s4026 + $0x28] sm:$0xff]
      %v4033 = vld [vmem:[%s4026 + $0x30] sm:$0xff]
      %v4034 = vld [vmem:[%s4026 + $0x38] sm:$0xff]
      %v4035 = vld [vmem:[%s4026 + $0x40] sm:$0xff]
      %v4036 = vld [vmem:[%s4026 + $0x48] sm:$0xff]
      %v4037 = vld [vmem:[%s4026 + $0x50] sm:$0xff]
      %v4038 = vld [vmem:[%s4026 + $0x58] sm:$0xff]
      %v4039 = vld [vmem:[%s4026 + $0x60] sm:$0xff]
      %v4040 = vld [vmem:[%s4026 + $0x68] sm:$0xff]
      %v4041 = vld [vmem:[%s4026 + $0x70] sm:$0xff]
      %v4042 = vld [vmem:[%s4026 + $0x78] sm:$0xff]
      %4043 = vmatprep.subr.mxu0 0.0
      %4044 = vmatpush1.msra.mxu0 %v4027
      %4045 = vmatprep.subr.mxu0 0.0
      %4046 = vmatpush1.msra.mxu0 %v4028
      %4047 = vmatprep.subr.mxu0 0.0
      %4048 = vmatpush1.msra.mxu0 %v4029
      %4049 = vmatprep.subr.mxu0 0.0
      %4050 = vmatpush1.msra.mxu0 %v4030
      %4051 = vmatprep.subr.mxu0 0.0
      %4052 = vmatpush1.msra.mxu0 %v4031
      %4053 = vmatprep.subr.mxu0 0.0
      %4054 = vmatpush1.msra.mxu0 %v4032
      %4055 = vmatprep.subr.mxu0 0.0
      %4056 = vmatpush1.msra.mxu0 %v4033
      %4057 = vmatprep.subr.mxu0 0.0
      %4058 = vmatpush1.msra.mxu0 %v4034
      %4059 = vmatprep.subr.mxu0 0.0
      %4060 = vmatpush1.msra.mxu0 %v4035
      %4061 = vmatprep.subr.mxu0 0.0
      %4062 = vmatpush1.msra.mxu0 %v4036
      %4063 = vmatprep.subr.mxu0 0.0
      %4064 = vmatpush1.msra.mxu0 %v4037
      %4065 = vmatprep.subr.mxu0 0.0
      %4066 = vmatpush1.msra.mxu0 %v4038
      %4067 = vmatprep.subr.mxu0 0.0
      %4068 = vmatpush1.msra.mxu0 %v4039
      %4069 = vmatprep.subr.mxu0 0.0
      %4070 = vmatpush1.msra.mxu0 %v4040
      %4071 = vmatprep.subr.mxu0 0.0
      %4072 = vmatpush1.msra.mxu0 %v4041
      %4073 = vmatprep.subr.mxu0 0.0
      %4074 = vmatpush1.msra.mxu0 %v4042
      %4075 = vmatprep.subr.mxu0 0.0
      %4076 = vmatpush1.msra.mxu0 0.0
      %4077 = vmatprep.subr.mxu0 0.0
      %4078 = vmatpush1.msra.mxu0 0.0
      %4079 = vmatprep.subr.mxu0 0.0
      %4080 = vmatpush1.msra.mxu0 0.0
      %4081 = vmatprep.subr.mxu0 0.0
      %4082 = vmatpush1.msra.mxu0 0.0
      %4083 = vmatprep.subr.mxu0 0.0
      %4084 = vmatpush1.msra.mxu0 0.0
      %4085 = vmatprep.subr.mxu0 0.0
      %4086 = vmatpush1.msra.mxu0 0.0
      %4087 = vmatprep.subr.mxu0 0.0
      %4088 = vmatpush1.msra.mxu0 0.0
      %4089 = vmatprep.subr.mxu0 0.0
      %4090 = vmatpush1.msra.mxu0 0.0
      %4091 = vmatprep.subr.mxu0 0.0
      %4092 = vmatpush1.msra.mxu0 0.0
      %4093 = vmatprep.subr.mxu0 0.0
      %4094 = vmatpush1.msra.mxu0 0.0
      %4095 = vmatprep.subr.mxu0 0.0
      %4096 = vmatpush1.msra.mxu0 0.0
      %4097 = vmatprep.subr.mxu0 0.0
      %4098 = vmatpush1.msra.mxu0 0.0
      %4099 = vmatprep.subr.mxu0 0.0
      %4100 = vmatpush1.msra.mxu0 0.0
      %4101 = vmatprep.subr.mxu0 0.0
      %4102 = vmatpush1.msra.mxu0 0.0
      %4103 = vmatprep.subr.mxu0 0.0
      %4104 = vmatpush1.msra.mxu0 0.0
      %4105 = vmatprep.subr.mxu0 0.0
      %4106 = vmatpush1.msra.mxu0 0.0
      %4107 = vmatprep.mubr.f32.mxu0 0.0
      %4108 = vmatmul.mubr.f32.gmra.mrb[0].mxu0 %v4010
      %v4109 = vpop.f32.mrb[0].mxu0
      %v4110 = vadd.f32 0.0, %v4109
      %v4111 = vpop.f32.mrb[0].mxu0
      %4112 = vmatprep.mubr.f32.mxu0 0.0
      %4113 = vmatmul.mubr.f32.gmra.mrb[0].mxu0 %v4011
      %v4114 = vpop.f32.mrb[0].mxu0
      %v4115 = vadd.f32 0.0, %v4114
      %v4116 = vpop.f32.mrb[0].mxu0
      %4117 = vmatprep.mubr.f32.mxu0 0.0
      %4118 = vmatmul.mubr.f32.gmra.mrb[0].mxu0 %v4012
      %v4119 = vpop.f32.mrb[0].mxu0
      %v4120 = vadd.f32 0.0, %v4119
      %v4121 = vpop.f32.mrb[0].mxu0
      %4122 = vmatprep.mubr.f32.mxu0 0.0
      %4123 = vmatmul.mubr.f32.gmra.mrb[0].mxu0 %v4013
      %v4124 = vpop.f32.mrb[0].mxu0
      %v4125 = vadd.f32 0.0, %v4124
      %v4126 = vpop.f32.mrb[0].mxu0
      %4127 = vmatprep.mubr.f32.mxu0 0.0
      %4128 = vmatmul.mubr.f32.gmra.mrb[0].mxu0 %v4014
      %v4129 = vpop.f32.mrb[0].mxu0
      %v4130 = vadd.f32 0.0, %v4129
      %v4131 = vpop.f32.mrb[0].mxu0
      %4132 = vmatprep.mubr.f32.mxu0 0.0
      %4133 = vmatmul.mubr.f32.gmra.mrb[0].mxu0 %v4015
      %v4134 = vpop.f32.mrb[0].mxu0
      %v4135 = vadd.f32 0.0, %v4134
      %v4136 = vpop.f32.mrb[0].mxu0
      %4137 = vmatprep.mubr.f32.mxu0 0.0
      %4138 = vmatmul.mubr.f32.gmra.mrb[0].mxu0 %v4016
      %v4139 = vpop.f32.mrb[0].mxu0
      %v4140 = vadd.f32 0.0, %v4139
      %v4141 = vpop.f32.mrb[0].mxu0
      %4142 = vmatprep.mubr.f32.mxu0 0.0
      %4143 = vmatmul.mubr.f32.gmra.mrb[0].mxu0 %v4017
      %v4144 = vpop.f32.mrb[0].mxu0
      %v4145 = vadd.f32 0.0, %v4144
      %v4146 = vpop.f32.mrb[0].mxu0
      %4147 = vmatprep.mubr.f32.mxu0 0.0
      %4148 = vmatmul.mubr.f32.gmra.mrb[0].mxu0 %v4018
      %v4149 = vpop.f32.mrb[0].mxu0
      %v4150 = vadd.f32 0.0, %v4149
      %v4151 = vpop.f32.mrb[0].mxu0
      %4152 = vmatprep.mubr.f32.mxu0 0.0
      %4153 = vmatmul.mubr.f32.gmra.mrb[0].mxu0 %v4019
      %v4154 = vpop.f32.mrb[0].mxu0
      %v4155 = vadd.f32 0.0, %v4154
      %v4156 = vpop.f32.mrb[0].mxu0
      %4157 = vmatprep.mubr.f32.mxu0 0.0
      %4158 = vmatmul.mubr.f32.gmra.mrb[0].mxu0 %v4020
      %v4159 = vpop.f32.mrb[0].mxu0
      %v4160 = vadd.f32 0.0, %v4159
      %v4161 = vpop.f32.mrb[0].mxu0
      %4162 = vmatprep.mubr.f32.mxu0 0.0
      %4163 = vmatmul.mubr.f32.gmra.mrb[0].mxu0 %v4021
      %v4164 = vpop.f32.mrb[0].mxu0
      %v4165 = vadd.f32 0.0, %v4164
      %v4166 = vpop.f32.mrb[0].mxu0
      %4167 = vmatprep.mubr.f32.mxu0 0.0
      %4168 = vmatmul.mubr.f32.gmra.mrb[0].mxu0 %v4022
      %v4169 = vpop.f32.mrb[0].mxu0
      %v4170 = vadd.f32 0.0, %v4169
      %v4171 = vpop.f32.mrb[0].mxu0
      %4172 = vmatprep.mubr.f32.mxu0 0.0
      %4173 = vmatmul.mubr.f32.gmra.mrb[0].mxu0 %v4023
      %v4174 = vpop.f32.mrb[0].mxu0
      %v4175 = vadd.f32 0.0, %v4174
      %v4176 = vpop.f32.mrb[0].mxu0
      %4177 = vmatprep.mubr.f32.mxu0 0.0
      %4178 = vmatmul.mubr.f32.gmra.mrb[0].mxu0 %v4024
      %v4179 = vpop.f32.mrb[0].mxu0
      %v4180 = vadd.f32 0.0, %v4179
      %v4181 = vpop.f32.mrb[0].mxu0
      %4182 = vmatprep.mubr.f32.mxu0 0.0
      %4183 = vmatmul.mubr.f32.gmra.mrb[0].mxu0 %v4025
      %v4184 = vpop.f32.mrb[0].mxu0
      %v4185 = vadd.f32 0.0, %v4184
      %v4186 = vpop.f32.mrb[0].mxu0
      %4187 = vdwg.mxu0
      %v4188 = vld [vmem:[#allocation4] sm:$0xff]
      %v4189 = vld [vmem:[#allocation4 + $0x8] sm:$0xff]
      %v4190 = vld [vmem:[#allocation4 + $0x10] sm:$0xff]
      %v4191 = vld [vmem:[#allocation4 + $0x18] sm:$0xff]
      %v4192 = vld [vmem:[#allocation4 + $0x20] sm:$0xff]
      %v4193 = vld [vmem:[#allocation4 + $0x28] sm:$0xff]
      %v4194 = vld [vmem:[#allocation4 + $0x30] sm:$0xff]
      %v4195 = vld [vmem:[#allocation4 + $0x38] sm:$0xff]
      %v4196 = vld [vmem:[#allocation4 + $0x40] sm:$0xff]
      %v4197 = vld [vmem:[#allocation4 + $0x48] sm:$0xff]
      %v4198 = vld [vmem:[#allocation4 + $0x50] sm:$0xff]
      %v4199 = vld [vmem:[#allocation4 + $0x58] sm:$0xff]
      %v4200 = vld [vmem:[#allocation4 + $0x60] sm:$0xff]
      %v4201 = vld [vmem:[#allocation4 + $0x68] sm:$0xff]
      %v4202 = vld [vmem:[#allocation4 + $0x70] sm:$0xff]
      %v4203 = vld [vmem:[#allocation4 + $0x78] sm:$0xff]
      %v4204 = vadd.f32 %v4188, %v4110
      %v4205 = vadd.f32 %v4189, %v4115
      %v4206 = vadd.f32 %v4190, %v4120
      %v4207 = vadd.f32 %v4191, %v4125
      %v4208 = vadd.f32 %v4192, %v4130
      %v4209 = vadd.f32 %v4193, %v4135
      %v4210 = vadd.f32 %v4194, %v4140
      %v4211 = vadd.f32 %v4195, %v4145
      %v4212 = vadd.f32 %v4196, %v4150
      %v4213 = vadd.f32 %v4197, %v4155
      %v4214 = vadd.f32 %v4198, %v4160
      %v4215 = vadd.f32 %v4199, %v4165
      %v4216 = vadd.f32 %v4200, %v4170
      %v4217 = vadd.f32 %v4201, %v4175
      %v4218 = vadd.f32 %v4202, %v4180
      %v4219 = vadd.f32 %v4203, %v4185
      %4220 = vst [vmem:[#allocation4] sm:$0xff] %v4204
      %4221 = vst [vmem:[#allocation4 + $0x8] sm:$0xff] %v4205
      %4222 = vst [vmem:[#allocation4 + $0x10] sm:$0xff] %v4206
      %4223 = vst [vmem:[#allocation4 + $0x18] sm:$0xff] %v4207
      %4224 = vst [vmem:[#allocation4 + $0x20] sm:$0xff] %v4208
      %4225 = vst [vmem:[#allocation4 + $0x28] sm:$0xff] %v4209
      %4226 = vst [vmem:[#allocation4 + $0x30] sm:$0xff] %v4210
      %4227 = vst [vmem:[#allocation4 + $0x38] sm:$0xff] %v4211
      %4228 = vst [vmem:[#allocation4 + $0x40] sm:$0xff] %v4212
      %4229 = vst [vmem:[#allocation4 + $0x48] sm:$0xff] %v4213
      %4230 = vst [vmem:[#allocation4 + $0x50] sm:$0xff] %v4214
      %4231 = vst [vmem:[#allocation4 + $0x58] sm:$0xff] %v4215
      %4232 = vst [vmem:[#allocation4 + $0x60] sm:$0xff] %v4216
      %4233 = vst [vmem:[#allocation4 + $0x68] sm:$0xff] %v4217
      %4234 = vst [vmem:[#allocation4 + $0x70] sm:$0xff] %v4218
      %4235 = vst [vmem:[#allocation4 + $0x78] sm:$0xff] %v4219
      %v4236 = vld [vmem:[%s1625 + $0x2] sm:$0xff]
      %v4237 = vld [vmem:[%s1625 + $0x12] sm:$0xff]
      %v4238 = vld [vmem:[%s1625 + $0x22] sm:$0xff]
      %v4239 = vld [vmem:[%s1625 + $0x32] sm:$0xff]
      %v4240 = vld [vmem:[%s1625 + $0x42] sm:$0xff]
      %v4241 = vld [vmem:[%s1625 + $0x52] sm:$0xff]
      %v4242 = vld [vmem:[%s1625 + $0x62] sm:$0xff]
      %v4243 = vld [vmem:[%s1625 + $0x72] sm:$0xff]
      %v4244 = vld [vmem:[%s1625 + $0xa2] sm:$0xff]
      %v4245 = vld [vmem:[%s1625 + $0xb2] sm:$0xff]
      %v4246 = vld [vmem:[%s1625 + $0xc2] sm:$0xff]
      %v4247 = vld [vmem:[%s1625 + $0xd2] sm:$0xff]
      %v4248 = vld [vmem:[%s1625 + $0xe2] sm:$0xff]
      %v4249 = vld [vmem:[%s1625 + $0xf2] sm:$0xff]
      %v4250 = vld [vmem:[%s1625 + $0x102] sm:$0xff]
      %v4251 = vld [vmem:[%s1625 + $0x112] sm:$0xff]
      %s4252 = scalar_lea.vmem %s176, 2176
      %v4253 = vld [vmem:[%s4252] sm:$0xff]
      %v4254 = vld [vmem:[%s4252 + $0x8] sm:$0xff]
      %v4255 = vld [vmem:[%s4252 + $0x10] sm:$0xff]
      %v4256 = vld [vmem:[%s4252 + $0x18] sm:$0xff]
      %v4257 = vld [vmem:[%s4252 + $0x20] sm:$0xff]
      %v4258 = vld [vmem:[%s4252 + $0x28] sm:$0xff]
      %v4259 = vld [vmem:[%s4252 + $0x30] sm:$0xff]
      %v4260 = vld [vmem:[%s4252 + $0x38] sm:$0xff]
      %v4261 = vld [vmem:[%s4252 + $0x40] sm:$0xff]
      %v4262 = vld [vmem:[%s4252 + $0x48] sm:$0xff]
      %v4263 = vld [vmem:[%s4252 + $0x50] sm:$0xff]
      %v4264 = vld [vmem:[%s4252 + $0x58] sm:$0xff]
      %v4265 = vld [vmem:[%s4252 + $0x60] sm:$0xff]
      %v4266 = vld [vmem:[%s4252 + $0x68] sm:$0xff]
      %v4267 = vld [vmem:[%s4252 + $0x70] sm:$0xff]
      %v4268 = vld [vmem:[%s4252 + $0x78] sm:$0xff]
      %4269 = vmatprep.subr.mxu0 0.0
      %4270 = vmatpush1.msra.mxu0 %v4253
      %4271 = vmatprep.subr.mxu0 0.0
      %4272 = vmatpush1.msra.mxu0 %v4254
      %4273 = vmatprep.subr.mxu0 0.0
      %4274 = vmatpush1.msra.mxu0 %v4255
      %4275 = vmatprep.subr.mxu0 0.0
      %4276 = vmatpush1.msra.mxu0 %v4256
      %4277 = vmatprep.subr.mxu0 0.0
      %4278 = vmatpush1.msra.mxu0 %v4257
      %4279 = vmatprep.subr.mxu0 0.0
      %4280 = vmatpush1.msra.mxu0 %v4258
      %4281 = vmatprep.subr.mxu0 0.0
      %4282 = vmatpush1.msra.mxu0 %v4259
      %4283 = vmatprep.subr.mxu0 0.0
      %4284 = vmatpush1.msra.mxu0 %v4260
      %4285 = vmatprep.subr.mxu0 0.0
      %4286 = vmatpush1.msra.mxu0 %v4261
      %4287 = vmatprep.subr.mxu0 0.0
      %4288 = vmatpush1.msra.mxu0 %v4262
      %4289 = vmatprep.subr.mxu0 0.0
      %4290 = vmatpush1.msra.mxu0 %v4263
      %4291 = vmatprep.subr.mxu0 0.0
      %4292 = vmatpush1.msra.mxu0 %v4264
      %4293 = vmatprep.subr.mxu0 0.0
      %4294 = vmatpush1.msra.mxu0 %v4265
      %4295 = vmatprep.subr.mxu0 0.0
      %4296 = vmatpush1.msra.mxu0 %v4266
      %4297 = vmatprep.subr.mxu0 0.0
      %4298 = vmatpush1.msra.mxu0 %v4267
      %4299 = vmatprep.subr.mxu0 0.0
      %4300 = vmatpush1.msra.mxu0 %v4268
      %4301 = vmatprep.subr.mxu0 0.0
      %4302 = vmatpush1.msra.mxu0 0.0
      %4303 = vmatprep.subr.mxu0 0.0
      %4304 = vmatpush1.msra.mxu0 0.0
      %4305 = vmatprep.subr.mxu0 0.0
      %4306 = vmatpush1.msra.mxu0 0.0
      %4307 = vmatprep.subr.mxu0 0.0
      %4308 = vmatpush1.msra.mxu0 0.0
      %4309 = vmatprep.subr.mxu0 0.0
      %4310 = vmatpush1.msra.mxu0 0.0
      %4311 = vmatprep.subr.mxu0 0.0
      %4312 = vmatpush1.msra.mxu0 0.0
      %4313 = vmatprep.subr.mxu0 0.0
      %4314 = vmatpush1.msra.mxu0 0.0
      %4315 = vmatprep.subr.mxu0 0.0
      %4316 = vmatpush1.msra.mxu0 0.0
      %4317 = vmatprep.subr.mxu0 0.0
      %4318 = vmatpush1.msra.mxu0 0.0
      %4319 = vmatprep.subr.mxu0 0.0
      %4320 = vmatpush1.msra.mxu0 0.0
      %4321 = vmatprep.subr.mxu0 0.0
      %4322 = vmatpush1.msra.mxu0 0.0
      %4323 = vmatprep.subr.mxu0 0.0
      %4324 = vmatpush1.msra.mxu0 0.0
      %4325 = vmatprep.subr.mxu0 0.0
      %4326 = vmatpush1.msra.mxu0 0.0
      %4327 = vmatprep.subr.mxu0 0.0
      %4328 = vmatpush1.msra.mxu0 0.0
      %4329 = vmatprep.subr.mxu0 0.0
      %4330 = vmatpush1.msra.mxu0 0.0
      %4331 = vmatprep.subr.mxu0 0.0
      %4332 = vmatpush1.msra.mxu0 0.0
      %4333 = vmatprep.mubr.f32.mxu0 0.0
      %4334 = vmatmul.mubr.f32.gmra.mrb[0].mxu0 %v4236
      %v4335 = vpop.f32.mrb[0].mxu0
      %v4336 = vadd.f32 0.0, %v4335
      %v4337 = vpop.f32.mrb[0].mxu0
      %4338 = vmatprep.mubr.f32.mxu0 0.0
      %4339 = vmatmul.mubr.f32.gmra.mrb[0].mxu0 %v4237
      %v4340 = vpop.f32.mrb[0].mxu0
      %v4341 = vadd.f32 0.0, %v4340
      %v4342 = vpop.f32.mrb[0].mxu0
      %4343 = vmatprep.mubr.f32.mxu0 0.0
      %4344 = vmatmul.mubr.f32.gmra.mrb[0].mxu0 %v4238
      %v4345 = vpop.f32.mrb[0].mxu0
      %v4346 = vadd.f32 0.0, %v4345
      %v4347 = vpop.f32.mrb[0].mxu0
      %4348 = vmatprep.mubr.f32.mxu0 0.0
      %4349 = vmatmul.mubr.f32.gmra.mrb[0].mxu0 %v4239
      %v4350 = vpop.f32.mrb[0].mxu0
      %v4351 = vadd.f32 0.0, %v4350
      %v4352 = vpop.f32.mrb[0].mxu0
      %4353 = vmatprep.mubr.f32.mxu0 0.0
      %4354 = vmatmul.mubr.f32.gmra.mrb[0].mxu0 %v4240
      %v4355 = vpop.f32.mrb[0].mxu0
      %v4356 = vadd.f32 0.0, %v4355
      %v4357 = vpop.f32.mrb[0].mxu0
      %4358 = vmatprep.mubr.f32.mxu0 0.0
      %4359 = vmatmul.mubr.f32.gmra.mrb[0].mxu0 %v4241
      %v4360 = vpop.f32.mrb[0].mxu0
      %v4361 = vadd.f32 0.0, %v4360
      %v4362 = vpop.f32.mrb[0].mxu0
      %4363 = vmatprep.mubr.f32.mxu0 0.0
      %4364 = vmatmul.mubr.f32.gmra.mrb[0].mxu0 %v4242
      %v4365 = vpop.f32.mrb[0].mxu0
      %v4366 = vadd.f32 0.0, %v4365
      %v4367 = vpop.f32.mrb[0].mxu0
      %4368 = vmatprep.mubr.f32.mxu0 0.0
      %4369 = vmatmul.mubr.f32.gmra.mrb[0].mxu0 %v4243
      %v4370 = vpop.f32.mrb[0].mxu0
      %v4371 = vadd.f32 0.0, %v4370
      %v4372 = vpop.f32.mrb[0].mxu0
      %4373 = vmatprep.mubr.f32.mxu0 0.0
      %4374 = vmatmul.mubr.f32.gmra.mrb[0].mxu0 %v4244
      %v4375 = vpop.f32.mrb[0].mxu0
      %v4376 = vadd.f32 0.0, %v4375
      %v4377 = vpop.f32.mrb[0].mxu0
      %4378 = vmatprep.mubr.f32.mxu0 0.0
      %4379 = vmatmul.mubr.f32.gmra.mrb[0].mxu0 %v4245
      %v4380 = vpop.f32.mrb[0].mxu0
      %v4381 = vadd.f32 0.0, %v4380
      %v4382 = vpop.f32.mrb[0].mxu0
      %4383 = vmatprep.mubr.f32.mxu0 0.0
      %4384 = vmatmul.mubr.f32.gmra.mrb[0].mxu0 %v4246
      %v4385 = vpop.f32.mrb[0].mxu0
      %v4386 = vadd.f32 0.0, %v4385
      %v4387 = vpop.f32.mrb[0].mxu0
      %4388 = vmatprep.mubr.f32.mxu0 0.0
      %4389 = vmatmul.mubr.f32.gmra.mrb[0].mxu0 %v4247
      %v4390 = vpop.f32.mrb[0].mxu0
      %v4391 = vadd.f32 0.0, %v4390
      %v4392 = vpop.f32.mrb[0].mxu0
      %4393 = vmatprep.mubr.f32.mxu0 0.0
      %4394 = vmatmul.mubr.f32.gmra.mrb[0].mxu0 %v4248
      %v4395 = vpop.f32.mrb[0].mxu0
      %v4396 = vadd.f32 0.0, %v4395
      %v4397 = vpop.f32.mrb[0].mxu0
      %4398 = vmatprep.mubr.f32.mxu0 0.0
      %4399 = vmatmul.mubr.f32.gmra.mrb[0].mxu0 %v4249
      %v4400 = vpop.f32.mrb[0].mxu0
      %v4401 = vadd.f32 0.0, %v4400
      %v4402 = vpop.f32.mrb[0].mxu0
      %4403 = vmatprep.mubr.f32.mxu0 0.0
      %4404 = vmatmul.mubr.f32.gmra.mrb[0].mxu0 %v4250
      %v4405 = vpop.f32.mrb[0].mxu0
      %v4406 = vadd.f32 0.0, %v4405
      %v4407 = vpop.f32.mrb[0].mxu0
      %4408 = vmatprep.mubr.f32.mxu0 0.0
      %4409 = vmatmul.mubr.f32.gmra.mrb[0].mxu0 %v4251
      %v4410 = vpop.f32.mrb[0].mxu0
      %v4411 = vadd.f32 0.0, %v4410
      %v4412 = vpop.f32.mrb[0].mxu0
      %4413 = vdwg.mxu0
      %v4414 = vld [vmem:[#allocation4] sm:$0xff]
      %v4415 = vld [vmem:[#allocation4 + $0x8] sm:$0xff]
      %v4416 = vld [vmem:[#allocation4 + $0x10] sm:$0xff]
      %v4417 = vld [vmem:[#allocation4 + $0x18] sm:$0xff]
      %v4418 = vld [vmem:[#allocation4 + $0x20] sm:$0xff]
      %v4419 = vld [vmem:[#allocation4 + $0x28] sm:$0xff]
      %v4420 = vld [vmem:[#allocation4 + $0x30] sm:$0xff]
      %v4421 = vld [vmem:[#allocation4 + $0x38] sm:$0xff]
      %v4422 = vld [vmem:[#allocation4 + $0x40] sm:$0xff]
      %v4423 = vld [vmem:[#allocation4 + $0x48] sm:$0xff]
      %v4424 = vld [vmem:[#allocation4 + $0x50] sm:$0xff]
      %v4425 = vld [vmem:[#allocation4 + $0x58] sm:$0xff]
      %v4426 = vld [vmem:[#allocation4 + $0x60] sm:$0xff]
      %v4427 = vld [vmem:[#allocation4 + $0x68] sm:$0xff]
      %v4428 = vld [vmem:[#allocation4 + $0x70] sm:$0xff]
      %v4429 = vld [vmem:[#allocation4 + $0x78] sm:$0xff]
      %v4430 = vadd.f32 %v4414, %v4336
      %v4431 = vadd.f32 %v4415, %v4341
      %v4432 = vadd.f32 %v4416, %v4346
      %v4433 = vadd.f32 %v4417, %v4351
      %v4434 = vadd.f32 %v4418, %v4356
      %v4435 = vadd.f32 %v4419, %v4361
      %v4436 = vadd.f32 %v4420, %v4366
      %v4437 = vadd.f32 %v4421, %v4371
      %v4438 = vadd.f32 %v4422, %v4376
      %v4439 = vadd.f32 %v4423, %v4381
      %v4440 = vadd.f32 %v4424, %v4386
      %v4441 = vadd.f32 %v4425, %v4391
      %v4442 = vadd.f32 %v4426, %v4396
      %v4443 = vadd.f32 %v4427, %v4401
      %v4444 = vadd.f32 %v4428, %v4406
      %v4445 = vadd.f32 %v4429, %v4411
      %4446 = vst [vmem:[#allocation4] sm:$0xff] %v4430
      %4447 = vst [vmem:[#allocation4 + $0x8] sm:$0xff] %v4431
      %4448 = vst [vmem:[#allocation4 + $0x10] sm:$0xff] %v4432
      %4449 = vst [vmem:[#allocation4 + $0x18] sm:$0xff] %v4433
      %4450 = vst [vmem:[#allocation4 + $0x20] sm:$0xff] %v4434
      %4451 = vst [vmem:[#allocation4 + $0x28] sm:$0xff] %v4435
      %4452 = vst [vmem:[#allocation4 + $0x30] sm:$0xff] %v4436
      %4453 = vst [vmem:[#allocation4 + $0x38] sm:$0xff] %v4437
      %4454 = vst [vmem:[#allocation4 + $0x40] sm:$0xff] %v4438
      %4455 = vst [vmem:[#allocation4 + $0x48] sm:$0xff] %v4439
      %4456 = vst [vmem:[#allocation4 + $0x50] sm:$0xff] %v4440
      %4457 = vst [vmem:[#allocation4 + $0x58] sm:$0xff] %v4441
      %4458 = vst [vmem:[#allocation4 + $0x60] sm:$0xff] %v4442
      %4459 = vst [vmem:[#allocation4 + $0x68] sm:$0xff] %v4443
      %4460 = vst [vmem:[#allocation4 + $0x70] sm:$0xff] %v4444
      %4461 = vst [vmem:[#allocation4 + $0x78] sm:$0xff] %v4445
      %v4462 = vld [vmem:[#allocation4] sm:$0xff]
      %v4463 = vld [vmem:[#allocation4 + $0x8] sm:$0xff]
      %v4464 = vld [vmem:[#allocation4 + $0x10] sm:$0xff]
      %v4465 = vld [vmem:[#allocation4 + $0x18] sm:$0xff]
      %v4466 = vld [vmem:[#allocation4 + $0x20] sm:$0xff]
      %v4467 = vld [vmem:[#allocation4 + $0x28] sm:$0xff]
      %v4468 = vld [vmem:[#allocation4 + $0x30] sm:$0xff]
      %v4469 = vld [vmem:[#allocation4 + $0x38] sm:$0xff]
      %v4470 = vld [vmem:[#allocation4 + $0x40] sm:$0xff]
      %v4471 = vld [vmem:[#allocation4 + $0x48] sm:$0xff]
      %v4472 = vld [vmem:[#allocation4 + $0x50] sm:$0xff]
      %v4473 = vld [vmem:[#allocation4 + $0x58] sm:$0xff]
      %v4474 = vld [vmem:[#allocation4 + $0x60] sm:$0xff]
      %v4475 = vld [vmem:[#allocation4 + $0x68] sm:$0xff]
      %v4476 = vld [vmem:[#allocation4 + $0x70] sm:$0xff]
      %v4477 = vld [vmem:[#allocation4 + $0x78] sm:$0xff]
      %v4478 = vadd.f32 %v4462, %v4463
      %v4479 = vadd.f32 %v4478, %v4464
      %v4480 = vadd.f32 %v4479, %v4465
      %v4481 = vadd.f32 %v4480, %v4466
      %v4482 = vadd.f32 %v4481, %v4467
      %v4483 = vadd.f32 %v4482, %v4468
      %v4484 = vadd.f32 %v4483, %v4469
      %v4485 = vrot.slane %v4484, 4
      %v4486 = vadd.f32 %v4484, %v4485
      %v4487 = vrot.slane %v4486, 2
      %v4488 = vadd.f32 %v4486, %v4487
      %v4489 = vrot.slane %v4488, 1
      %v4490 = vadd.f32 %v4488, %v4489
      %v4491 = vadd.f32 %v4470, %v4471
      %v4492 = vadd.f32 %v4491, %v4472
      %v4493 = vadd.f32 %v4492, %v4473
      %v4494 = vadd.f32 %v4493, %v4474
      %v4495 = vadd.f32 %v4494, %v4475
      %v4496 = vadd.f32 %v4495, %v4476
      %v4497 = vadd.f32 %v4496, %v4477
      %v4498 = vrot.slane %v4497, 4
      %v4499 = vadd.f32 %v4497, %v4498
      %v4500 = vrot.slane %v4499, 2
      %v4501 = vadd.f32 %v4499, %v4500
      %v4502 = vrot.slane %v4501, 1
      %v4503 = vadd.f32 %v4501, %v4502
      %v4504 = vmul.f32 %v4490, 0.015625
      %v4505 = vmul.f32 %v4503, 0.015625
      %v4506 = vsub.f32 %v4462, %v4504
      %v4507 = vsub.f32 %v4463, %v4504
      %v4508 = vsub.f32 %v4464, %v4504
      %v4509 = vsub.f32 %v4465, %v4504
      %v4510 = vsub.f32 %v4466, %v4504
      %v4511 = vsub.f32 %v4467, %v4504
      %v4512 = vsub.f32 %v4468, %v4504
      %v4513 = vsub.f32 %v4469, %v4504
      %v4514 = vsub.f32 %v4470, %v4505
      %v4515 = vsub.f32 %v4471, %v4505
      %v4516 = vsub.f32 %v4472, %v4505
      %v4517 = vsub.f32 %v4473, %v4505
      %v4518 = vsub.f32 %v4474, %v4505
      %v4519 = vsub.f32 %v4475, %v4505
      %v4520 = vsub.f32 %v4476, %v4505
      %v4521 = vsub.f32 %v4477, %v4505
      %v4522 = vmul.f32 %v4506, %v4506
      %v4523 = vmul.f32 %v4507, %v4507
      %v4524 = vmul.f32 %v4508, %v4508
      %v4525 = vmul.f32 %v4509, %v4509
      %v4526 = vmul.f32 %v4510, %v4510
      %v4527 = vmul.f32 %v4511, %v4511
      %v4528 = vmul.f32 %v4512, %v4512
      %v4529 = vmul.f32 %v4513, %v4513
      %v4530 = vmul.f32 %v4514, %v4514
      %v4531 = vmul.f32 %v4515, %v4515
      %v4532 = vmul.f32 %v4516, %v4516
      %v4533 = vmul.f32 %v4517, %v4517
      %v4534 = vmul.f32 %v4518, %v4518
      %v4535 = vmul.f32 %v4519, %v4519
      %v4536 = vmul.f32 %v4520, %v4520
      %v4537 = vmul.f32 %v4521, %v4521
      %v4538 = vadd.f32 %v4522, %v4523
      %v4539 = vadd.f32 %v4538, %v4524
      %v4540 = vadd.f32 %v4539, %v4525
      %v4541 = vadd.f32 %v4540, %v4526
      %v4542 = vadd.f32 %v4541, %v4527
      %v4543 = vadd.f32 %v4542, %v4528
      %v4544 = vadd.f32 %v4543, %v4529
      %v4545 = vrot.slane %v4544, 4
      %v4546 = vadd.f32 %v4544, %v4545
      %v4547 = vrot.slane %v4546, 2
      %v4548 = vadd.f32 %v4546, %v4547
      %v4549 = vrot.slane %v4548, 1
      %v4550 = vadd.f32 %v4548, %v4549
      %v4551 = vadd.f32 %v4530, %v4531
      %v4552 = vadd.f32 %v4551, %v4532
      %v4553 = vadd.f32 %v4552, %v4533
      %v4554 = vadd.f32 %v4553, %v4534
      %v4555 = vadd.f32 %v4554, %v4535
      %v4556 = vadd.f32 %v4555, %v4536
      %v4557 = vadd.f32 %v4556, %v4537
      %v4558 = vrot.slane %v4557, 4
      %v4559 = vadd.f32 %v4557, %v4558
      %v4560 = vrot.slane %v4559, 2
      %v4561 = vadd.f32 %v4559, %v4560
      %v4562 = vrot.slane %v4561, 1
      %v4563 = vadd.f32 %v4561, %v4562
      %v4564 = vmul.f32 %v4550, 0.015625
      %v4565 = vmul.f32 %v4563, 0.015625
      %v4566 = vadd.f32 %v4564, 1e-05
      %v4567 = vadd.f32 %v4565, 1e-05
      %v4568 = vrsqrt.pop %v4566
      %v4569 = vrsqrt.pop %v4567
      %v4570 = vmul.f32 %v4506, %v4568
      %v4571 = vmul.f32 %v4507, %v4568
      %v4572 = vmul.f32 %v4508, %v4568
      %v4573 = vmul.f32 %v4509, %v4568
      %v4574 = vmul.f32 %v4510, %v4568
      %v4575 = vmul.f32 %v4511, %v4568
      %v4576 = vmul.f32 %v4512, %v4568
      %v4577 = vmul.f32 %v4513, %v4568
      %v4578 = vmul.f32 %v4514, %v4569
      %v4579 = vmul.f32 %v4515, %v4569
      %v4580 = vmul.f32 %v4516, %v4569
      %v4581 = vmul.f32 %v4517, %v4569
      %v4582 = vmul.f32 %v4518, %v4569
      %v4583 = vmul.f32 %v4519, %v4569
      %v4584 = vmul.f32 %v4520, %v4569
      %v4585 = vmul.f32 %v4521, %v4569
      %v4586 = vld [vmem:[#allocation2] sm:$0xff]
      %v4587 = vld [vmem:[#allocation2 + $0x8] sm:$0xff]
      %v4588 = vld [vmem:[#allocation2 + $0x10] sm:$0xff]
      %v4589 = vld [vmem:[#allocation2 + $0x18] sm:$0xff]
      %v4590 = vld [vmem:[#allocation2 + $0x20] sm:$0xff]
      %v4591 = vld [vmem:[#allocation2 + $0x28] sm:$0xff]
      %v4592 = vld [vmem:[#allocation2 + $0x30] sm:$0xff]
      %v4593 = vld [vmem:[#allocation2 + $0x38] sm:$0xff]
      %v4594 = vld [vmem:[#allocation2 + $0x40] sm:$0xff]
      %v4595 = vld [vmem:[#allocation2 + $0x48] sm:$0xff]
      %v4596 = vld [vmem:[#allocation2 + $0x50] sm:$0xff]
      %v4597 = vld [vmem:[#allocation2 + $0x58] sm:$0xff]
      %v4598 = vld [vmem:[#allocation2 + $0x60] sm:$0xff]
      %v4599 = vld [vmem:[#allocation2 + $0x68] sm:$0xff]
      %v4600 = vld [vmem:[#allocation2 + $0x70] sm:$0xff]
      %v4601 = vld [vmem:[#allocation2 + $0x78] sm:$0xff]
      %v4602 = vadd.f32 %v4570, %v4586
      %v4603 = vadd.f32 %v4571, %v4587
      %v4604 = vadd.f32 %v4572, %v4588
      %v4605 = vadd.f32 %v4573, %v4589
      %v4606 = vadd.f32 %v4574, %v4590
      %v4607 = vadd.f32 %v4575, %v4591
      %v4608 = vadd.f32 %v4576, %v4592
      %v4609 = vadd.f32 %v4577, %v4593
      %v4610 = vadd.f32 %v4578, %v4594
      %v4611 = vadd.f32 %v4579, %v4595
      %v4612 = vadd.f32 %v4580, %v4596
      %v4613 = vadd.f32 %v4581, %v4597
      %v4614 = vadd.f32 %v4582, %v4598
      %v4615 = vadd.f32 %v4583, %v4599
      %v4616 = vadd.f32 %v4584, %v4600
      %v4617 = vadd.f32 %v4585, %v4601
      %4618 = vst [vmem:[#allocation2] sm:$0xff] %v4602
      %4619 = vst [vmem:[#allocation2 + $0x8] sm:$0xff] %v4603
      %4620 = vst [vmem:[#allocation2 + $0x10] sm:$0xff] %v4604
      %4621 = vst [vmem:[#allocation2 + $0x18] sm:$0xff] %v4605
      %4622 = vst [vmem:[#allocation2 + $0x20] sm:$0xff] %v4606
      %4623 = vst [vmem:[#allocation2 + $0x28] sm:$0xff] %v4607
      %4624 = vst [vmem:[#allocation2 + $0x30] sm:$0xff] %v4608
      %4625 = vst [vmem:[#allocation2 + $0x38] sm:$0xff] %v4609
      %4626 = vst [vmem:[#allocation2 + $0x40] sm:$0xff] %v4610
      %4627 = vst [vmem:[#allocation2 + $0x48] sm:$0xff] %v4611
      %4628 = vst [vmem:[#allocation2 + $0x50] sm:$0xff] %v4612
      %4629 = vst [vmem:[#allocation2 + $0x58] sm:$0xff] %v4613
      %4630 = vst [vmem:[#allocation2 + $0x60] sm:$0xff] %v4614
      %4631 = vst [vmem:[#allocation2 + $0x68] sm:$0xff] %v4615
      %4632 = vst [vmem:[#allocation2 + $0x70] sm:$0xff] %v4616
      %4633 = vst [vmem:[#allocation2 + $0x78] sm:$0xff] %v4617
      %p4634 = scmp.eq.s32.totalorder %s18, 1
      // Predicated region
      $region33: #{res_blocks.1} parent=27 // pred_check
        %p4635 = pneg %p4634
      $region34: #{res_blocks.1} parent=27 // pred_check_branch
        %4637 = sbr.rel (%p4635) target = $region36
      $region35: #{res_blocks.1} parent=27 // pred_region
        %v4638 = vld [vmem:[#allocation2] sm:$0xff]
        %v4639 = vld [vmem:[#allocation2 + $0x8] sm:$0xff]
        %v4640 = vld [vmem:[#allocation2 + $0x10] sm:$0xff]
        %v4641 = vld [vmem:[#allocation2 + $0x18] sm:$0xff]
        %v4642 = vld [vmem:[#allocation2 + $0x20] sm:$0xff]
        %v4643 = vld [vmem:[#allocation2 + $0x28] sm:$0xff]
        %v4644 = vld [vmem:[#allocation2 + $0x30] sm:$0xff]
        %v4645 = vld [vmem:[#allocation2 + $0x38] sm:$0xff]
        %v4646 = vld [vmem:[#allocation2 + $0x40] sm:$0xff]
        %v4647 = vld [vmem:[#allocation2 + $0x48] sm:$0xff]
        %v4648 = vld [vmem:[#allocation2 + $0x50] sm:$0xff]
        %v4649 = vld [vmem:[#allocation2 + $0x58] sm:$0xff]
        %v4650 = vld [vmem:[#allocation2 + $0x60] sm:$0xff]
        %v4651 = vld [vmem:[#allocation2 + $0x68] sm:$0xff]
        %v4652 = vld [vmem:[#allocation2 + $0x70] sm:$0xff]
        %v4653 = vld [vmem:[#allocation2 + $0x78] sm:$0xff]
        %4654 = vst [vmem:[%s182] sm:$0xff] %v4638
        %4655 = vst [vmem:[%s182 + $0x8] sm:$0xff] %v4639
        %4656 = vst [vmem:[%s182 + $0x10] sm:$0xff] %v4640
        %4657 = vst [vmem:[%s182 + $0x18] sm:$0xff] %v4641
        %4658 = vst [vmem:[%s182 + $0x20] sm:$0xff] %v4642
        %4659 = vst [vmem:[%s182 + $0x28] sm:$0xff] %v4643
        %4660 = vst [vmem:[%s182 + $0x30] sm:$0xff] %v4644
        %4661 = vst [vmem:[%s182 + $0x38] sm:$0xff] %v4645
        %4662 = vst [vmem:[%s182 + $0x40] sm:$0xff] %v4646
        %4663 = vst [vmem:[%s182 + $0x48] sm:$0xff] %v4647
        %4664 = vst [vmem:[%s182 + $0x50] sm:$0xff] %v4648
        %4665 = vst [vmem:[%s182 + $0x58] sm:$0xff] %v4649
        %4666 = vst [vmem:[%s182 + $0x60] sm:$0xff] %v4650
        %4667 = vst [vmem:[%s182 + $0x68] sm:$0xff] %v4651
        %4668 = vst [vmem:[%s182 + $0x70] sm:$0xff] %v4652
        %4669 = vst [vmem:[%s182 + $0x78] sm:$0xff] %v4653
      $region36: #{res_blocks.1} parent=27 // pred_fallthru
        _
      %s4670 = smul.u32 2, %s17
      %p4671 = scmp.lt.s32.totalorder %s4670, 1
      %s4672 = scalar_select %p4671, %s4670, 1
      %s4673 = smul.addr %s4672, 8
      %s4674 = smul.addr %s4673, 8
      %s4675 = scalar_lea.vmem %s2, %s4674
      // Predicated region
      $region37: #{res_blocks.1} parent=27 // pred_check
        %p4676 = pneg %p95
      $region38: #{res_blocks.1} parent=27 // pred_check_branch
        %4678 = sbr.rel (%p4676) target = $region40
      $region39: #{res_blocks.1} parent=27 // pred_region
        %s4679 = smul.u32 2, %s17
      $region40: #{res_blocks.1} parent=27 // pred_fallthru
        _
      // Predicated region
      $region41: #{res_blocks.1} parent=27 // pred_check
        %p4680 = pneg %p95
      $region42: #{res_blocks.1} parent=27 // pred_check_branch
        %4682 = sbr.rel (%p4680) target = $region44
      $region43: #{res_blocks.1} parent=27 // pred_region
        %s4683 = smul.u32 2, %s17
        %p4684 = scmp.lt.s32.totalorder %s4683, 1
        %s4685 = scalar_select %p4684, %s4683, 1
        %s4686 = smul.addr %s4685, 8
        %s4687 = smul.addr %s4686, 8
        %s4688 = scalar_lea.vmem %s2, %s4687
      $region44: #{res_blocks.1} parent=27 // pred_fallthru
        _
    $region28: #{res_blocks.1} parent=5 // pred_fallthru
      _
    %p4689 = scmp.le.s32.totalorder 2, %s8
    // Predicated region
    $region45: #{res_blocks.1} parent=5 // pred_check
      %p4690 = pneg %p4689
    $region46: #{res_blocks.1} parent=5 // pred_check_branch
      %4692 = sbr.rel (%p4690) target = $region48
    $region47: #{res_blocks.1} parent=5 // pred_region
      %s4693 = ssub.s32 %s8, 2
    $region48: #{res_blocks.1} parent=5 // pred_fallthru
      _
  $region6: #{res_blocks.1} parent=0 // loop_footer
    %s12 = sadd.s32 1, %s8
  $region7: #{res_blocks.1} parent=0 // loop_footer_branch
    %7 = sbr.rel target = $region3
  $region8: #{res_blocks.1} parent=0 // loop_exit
    _

</llo_original>
